<compile_context>
chip_gen: v6e
topology: v6e:2x2x1
jax: 0.10.0
libtpu: 0.0.40
codegen_flags: <defaults>
</compile_context>

<pallas_src>
import math

import jax
import jax.numpy as jnp
from jax.experimental import pallas as pl
from jax.experimental.pallas import tpu as pltpu


# ----------------------------- Pallas kernel -------------------------------

def irradiance_kernel(mask_ref, rad_ndl_ref, out_ref):
    """One grid step == one tile of texels (texels on the lane axis).

    mask_ref    : (1, tile) f32    seam mask (1.0 valid texel, 0.0 on UV seam)
    rad_ndl_ref : (4, S, tile)     rows 0..2 = per-sample incoming radiance rgb,
                                   row 3    = <normal, light_dir> (unclamped)
    out_ref     : (3, tile) f32    irradiance
    """
    n_samples = rad_ndl_ref.shape[1]
    tile = rad_ndl_ref.shape[2]
    scale = 2.0 * math.pi / n_samples            # 2*pi / sample_l[0]

    # Per-texel weight: seam mask folded with 2*pi/S.  Kept 2-D (1, tile) and
    # hoisted once (JAX does not CSE broadcast_in_dim).
    w = mask_ref[...] * scale                                   # (1, tile)

    # Sublane chunk for the S reduction: 16 rows for 16-bit inputs (one packed
    # bf16 tile row-group), 8 rows for f32.
    chunk = 16 if jnp.dtype(rad_ndl_ref.dtype).itemsize == 2 else 8
    chunk = min(chunk, n_samples)
    if n_samples % chunk != 0:
        chunk = math.gcd(chunk, n_samples) or n_samples

    # Chunked reduction: never materialize the full (S, tile) f32 ndl (which
    # would overflow the 64-vreg file and be re-read once per channel).
    acc = [jnp.zeros((1, tile), jnp.float32) for _ in range(3)]
    for s0 in range(0, n_samples, chunk):
        sl = pl.ds(s0, chunk)
        ndl_c = jnp.clip(rad_ndl_ref[3, sl, :].astype(jnp.float32), 0.0, 1.0)
        for ch in range(3):
            acc[ch] = acc[ch] + jnp.sum(
                rad_ndl_ref[ch, sl, :].astype(jnp.float32) * ndl_c,
                axis=0, keepdims=True)                          # (1, tile)

    out_ref[...] = jnp.concatenate(acc, axis=0) * w             # dense (3, tile) store


# --------------------------- tiling / VMEM sizing ---------------------------

def _vmem_capacity_bytes():
    """Physical VMEM of the current TPU generation (fallback: 128 MiB)."""
    try:
        return int(pltpu.get_tpu_info().vmem_capacity_bytes)
    except Exception:  # interpret mode / very old runtime
        return 128 << 20


def _pick_tile(n_texels, n_samples, rad_ndl_itemsize, vmem_phys):
    """Generation-aware texel tile: as large as the VMEM budget allows, with a
    bigger cap on v7x (shortest steps, fastest HBM) and at least 2 grid steps
    for small textures (v7x has 2 TensorCores)."""
    # Double-buffered input/output blocks per texel + in-kernel f32 intermediates.
    per_texel_db = 2 * (1 * 4                          # seam mask block (f32)
                        + 4 * n_samples * rad_ndl_itemsize   # packed rad+ndl block
                        + 3 * 4)                       # output block (f32)
    per_texel_scratch = (2 * 16 + 6) * 4               # ndl chunk + rad chunk + acc (f32)
    budget = min(int(vmem_phys * 0.75), 96 << 20) - (4 << 20)
    tile_budget = max(128, budget // (per_texel_db + per_texel_scratch))

    # v7x: 64 MiB VMEM but ~3.2 TB/s HBM -> favour the largest tiles.
    tile_cap = 16384 if vmem_phys <= (64 << 20) else 8192

    # Keep the grid at >= 2 steps for small textures (both v7x TCs busy).
    half = max(128, (n_texels // 2 // 128) * 128) if n_texels >= 256 else 128

    tile = min(tile_cap, tile_budget, half)
    return max(128, (tile // 128) * 128)


# ------------------------------ wrapper --------------------------------------

def tracer_irradiance(seam_mask, rad_ndl, *, tile=None):
    """Irradiance integration + seam zeroing (TracerO3d.forward texel loop).

    seam_mask : (1, N) f32   1.0 for valid texels, 0.0 on UV seams
    rad_ndl   : (4, S, N)    rows 0..2 = per-sample incoming radiance rgb,
                             row 3    = <normal, light_dir> (unclamped); bf16
                             recommended in HBM (kernel upcasts to f32)
    returns   : (N, 3) f32   irradiance texture (flattened)
    """
    _, n_texels = seam_mask.shape
    n_samples = rad_ndl.shape[1]

    vmem_phys = _vmem_capacity_bytes()
    itemsize = jnp.dtype(rad_ndl.dtype).itemsize
    if tile is None:
        tile = _pick_tile(n_texels, n_samples, itemsize, vmem_phys)
    tile = min(tile, ((n_texels + 127) // 128) * 128)
    assert tile % 128 == 0, "texel tile must be lane-aligned (multiple of 128)"

    # Pad the texel axis to a tile multiple: padded texels get seam mask 0 so
    # they contribute nothing, and are sliced off below.
    n_pad = int(pl.cdiv(n_texels, tile)) * tile
    if n_pad != n_texels:
        pad = n_pad - n_texels
        seam_mask = jnp.pad(seam_mask, ((0, 0), (0, pad)))
        rad_ndl = jnp.pad(rad_ndl, ((0, 0), (0, 0), (0, pad)))
    grid = (n_pad // tile,)

    # VMEM limit tracking the chosen tile (double-buffered blocks + kernel
    # scratch + headroom), capped below the generation's physical capacity.
    block_bytes = 2 * (1 * tile * 4 + 4 * n_samples * tile * itemsize + 3 * tile * 4)
    scratch_bytes = (2 * 16 + 6) * tile * 4
    vmem_limit = int(min(max(block_bytes + scratch_bytes + (4 << 20), 16 << 20),
                         min(int(vmem_phys * 0.75), 96 << 20)))

    irr_t = pl.pallas_call(
        irradiance_kernel,
        out_shape=jax.ShapeDtypeStruct((3, n_pad), jnp.float32),
        grid_spec=pltpu.PrefetchScalarGridSpec(
            num_scalar_prefetch=0,
            grid=grid,
            in_specs=[
                pl.BlockSpec((1, tile), lambda i: (0, i)),
                pl.BlockSpec((4, n_samples, tile), lambda i: (0, 0, i)),
            ],
            out_specs=pl.BlockSpec((3, tile), lambda i: (0, i)),
        ),
        compiler_params=pltpu.CompilerParams(
            dimension_semantics=("parallel",),
            vmem_limit_bytes=vmem_limit),
    )(seam_mask, rad_ndl)

    # Tiny (3, N) -> (N, 3) relayout of the OUTPUT only (a last dim of 3 inside
    # the kernel would force masked partial stores).
    return irr_t[:, :n_texels].T


# ------------------------------ plain-JAX glue ------------------------------

def generate_dir_uniform(normal, num_sample, key):
    """Deterministic stand-in for generate_dir(normal, S, None, 'uniform', None):
    uniform hemisphere sampling in a tangent frame around each normal.  Returns
    the directions (needed only by the ray-casting stand-in / reference) and the
    per-sample <normal, dir> plane, which is the only quantity the kernel needs.
    # TODO(synk): exact generate_dir() semantics not available in the module source.
    """
    n_texels = normal.shape[0]
    k1, k2 = jax.random.split(key)
    u1 = jax.random.uniform(k1, (num_sample, n_texels), jnp.float32)
    u2 = jax.random.uniform(k2, (num_sample, n_texels), jnp.float32)
    cos_t = u1
    sin_t = jnp.sqrt(jnp.maximum(0.0, 1.0 - cos_t * cos_t))
    phi = 2.0 * jnp.pi * u2
    lx, ly, lz = sin_t * jnp.cos(phi), sin_t * jnp.sin(phi), cos_t   # (S, N)

    n = normal / jnp.clip(jnp.linalg.norm(normal, axis=-1, keepdims=True), 1e-6)
    helper = jnp.where(jnp.abs(n[:, 2:3]) < 0.999,
                       jnp.array([0.0, 0.0, 1.0], jnp.float32),
                       jnp.array([1.0, 0.0, 0.0], jnp.float32))
    t = jnp.cross(helper, n)
    t = t / jnp.clip(jnp.linalg.norm(t, axis=-1, keepdims=True), 1e-6)
    b = jnp.cross(n, t)
    nT, tT, bT = n.T, t.T, b.T                                       # (3, N)

    # dirs[c, s, n] = lx*t[c] + ly*b[c] + lz*n[c]
    dirs = (lx[None] * tT[:, None, :]
            + ly[None] * bT[:, None, :]
            + lz[None] * nT[:, None, :])                             # (3, S, N)

    # <normal, dir>, computed here so the kernel never reads the 3-channel
    # direction tensor from HBM (for a unit normal this equals cos_theta).
    ndl = jnp.sum(normal.T[:, None, :] * dirs, axis=0)               # (S, N)
    return dirs, ndl


if __name__ == "__main__":
    key = jax.random.PRNGKey(0)
    # Small shapes consistent with the module: index texture H x W with
    # H*W % 512 == 0, sample_l[0] = 64.
    H, W = 64, 64
    N = H * W          # 4096 texels
    S = 64             # train.sample_light default

    k_nrm, k_dir, k_rad, k_idx = jax.random.split(key, 4)

    # Synthetic stand-ins for the rasterize / cube2pano / cv2 precompute stage.
    # TODO(synk): generate_positions + calcute_position_normal_texture need
    # nvdiffrast/open3d/cv2; replaced by deterministic synthetic textures.
    normal_texture = jax.random.normal(k_nrm, (N, 3), jnp.float32)
    normal_texture = normal_texture / jnp.clip(
        jnp.linalg.norm(normal_texture, axis=-1, keepdims=True), 1e-6)

    # Synthetic index texture: seam texels are where the channel sum is exactly 0.
    index_texture = (jax.random.uniform(k_idx, (H, W, 3)) > 0.1).astype(jnp.float32) * 255.0
    seam_mask = (index_texture.reshape(N, 3).sum(axis=-1) != 0.0).astype(jnp.float32)   # (N,)

    # generate_dir stand-in: directions + <normal, dir> plane.
    light_dir, ndl = generate_dir_uniform(normal_texture, S, k_dir)    # (3,S,N), (S,N)

    # Synthetic stand-in for query_irf (open3d cast_rays + grid_sample).
    # TODO(synk): query_irf requires an Open3D RaycastingScene; radiance is synthetic.
    radiance = jax.random.uniform(k_rad, (3, S, N), jnp.float32)       # (3, S, N)

    # Pack radiance rgb + ndl into a single (4, S, N) bf16 HBM tensor: one big
    # DMA per grid step and ~33% less traffic than shipping 3-channel dirs.
    rad_ndl = jnp.concatenate([radiance, ndl[None]], axis=0).astype(jnp.bfloat16)
    seam_mask_2d = seam_mask[None, :]                                   # (1, N) f32

    irr = tracer_irradiance(seam_mask_2d, rad_ndl)
    irr = jax.block_until_ready(irr)

    # Pure-JAX reference of the hot path (forward's batch loop + seam zeroing),
    # using the same bf16-rounded inputs upcast to f32.
    rad_f32 = rad_ndl[0:3].astype(jnp.float32)                          # (3, S, N)
    ndl_ref = jnp.clip(rad_ndl[3].astype(jnp.float32), 0.0, 1.0)        # (S, N)
    irr_ref = jnp.sum(rad_f32 * ndl_ref[None], axis=1) * (2.0 * math.pi / S)   # (3, N)
    irr_ref = (irr_ref * seam_mask[None, :]).T                          # (N, 3)

    assert irr.shape == (N, 3)
    assert jnp.allclose(irr, irr_ref, atol=1e-3, rtol=1e-3)

    # module returns the irradiance texture in image shape
    irr_texture = irr.reshape(H, W, 3)
    assert irr_texture.shape == (H, W, 3)

    print("KERNEL_OK")
</pallas_src>

<mosaic_0001>
module attributes {stable_mosaic.version = 11 : i64} {
  func.func @irradiance_kernel(%arg0: i32, %arg1: memref<1x2048xf32, #tpu.memory_space<vmem>>, %arg2: memref<4x64x2048xbf16, #tpu.memory_space<vmem>>, %arg3: memref<3x2048xf32, #tpu.memory_space<vmem>>) attributes {dimension_semantics = [#tpu.dimension_semantics<parallel>], iteration_bounds = array<i64: 2>, scalar_prefetch = 0 : i64, scratch_operands = 0 : i64, tpu.core_type = #tpu.core_type<tc>, window_params = [{transform_indices = @transform_0, window_bounds = array<i64: 1, 2048>}, {transform_indices = @transform_1, window_bounds = array<i64: 4, 64, 2048>}, {transform_indices = @transform_2, window_bounds = array<i64: 3, 2048>}]} {
    %c0 = arith.constant 0 : index
    %c0_0 = arith.constant 0 : index
    %0 = vector.load %arg1[%c0, %c0_0] : memref<1x2048xf32, #tpu.memory_space<vmem>>, vector<1x2048xf32>
    %cst = arith.constant 0.0981747731 : f32
    %1 = vector.broadcast %cst : f32 to vector<1x2048xf32>
    %2 = arith.mulf %0, %1 : vector<1x2048xf32>
    %cst_1 = arith.constant 0.000000e+00 : f32
    %3 = vector.broadcast %cst_1 : f32 to vector<1x2048xf32>
    %cst_2 = arith.constant 0.000000e+00 : f32
    %4 = vector.broadcast %cst_2 : f32 to vector<1x2048xf32>
    %cst_3 = arith.constant 0.000000e+00 : f32
    %5 = vector.broadcast %cst_3 : f32 to vector<1x2048xf32>
    %c3 = arith.constant 3 : index
    %c0_4 = arith.constant 0 : index
    %c0_5 = arith.constant 0 : index
    %6 = vector.load %arg2[%c3, %c0_4, %c0_5] : memref<4x64x2048xbf16, #tpu.memory_space<vmem>>, vector<1x16x2048xbf16>
    %7 = vector.shape_cast %6 : vector<1x16x2048xbf16> to vector<16x2048xbf16>
    %8 = arith.extf %7 : vector<16x2048xbf16> to vector<16x2048xf32>
    %cst_6 = arith.constant 0.000000e+00 : f32
    %cst_7 = arith.constant 1.000000e+00 : f32
    %9 = vector.broadcast %cst_6 : f32 to vector<16x2048xf32>
    %10 = arith.maximumf %9, %8 : vector<16x2048xf32>
    %11 = vector.broadcast %cst_7 : f32 to vector<16x2048xf32>
    %12 = arith.minimumf %11, %10 : vector<16x2048xf32>
    %c0_8 = arith.constant 0 : index
    %c0_9 = arith.constant 0 : index
    %c0_10 = arith.constant 0 : index
    %13 = vector.load %arg2[%c0_8, %c0_9, %c0_10] : memref<4x64x2048xbf16, #tpu.memory_space<vmem>>, vector<1x16x2048xbf16>
    %14 = vector.shape_cast %13 : vector<1x16x2048xbf16> to vector<16x2048xbf16>
    %15 = arith.extf %14 : vector<16x2048xbf16> to vector<16x2048xf32>
    %16 = arith.mulf %15, %12 : vector<16x2048xf32>
    %cst_11 = arith.constant dense<0.000000e+00> : vector<2048xf32>
    %17 = vector.multi_reduction <add>, %16, %cst_11 [0] : vector<16x2048xf32> to vector<2048xf32>
    %18 = vector.shape_cast %17 : vector<2048xf32> to vector<1x2048xf32>
    %19 = arith.addf %3, %18 : vector<1x2048xf32>
    %c1 = arith.constant 1 : index
    %c0_12 = arith.constant 0 : index
    %c0_13 = arith.constant 0 : index
    %20 = vector.load %arg2[%c1, %c0_12, %c0_13] : memref<4x64x2048xbf16, #tpu.memory_space<vmem>>, vector<1x16x2048xbf16>
    %21 = vector.shape_cast %20 : vector<1x16x2048xbf16> to vector<16x2048xbf16>
    %22 = arith.extf %21 : vector<16x2048xbf16> to vector<16x2048xf32>
    %23 = arith.mulf %22, %12 : vector<16x2048xf32>
    %cst_14 = arith.constant dense<0.000000e+00> : vector<2048xf32>
    %24 = vector.multi_reduction <add>, %23, %cst_14 [0] : vector<16x2048xf32> to vector<2048xf32>
    %25 = vector.shape_cast %24 : vector<2048xf32> to vector<1x2048xf32>
    %26 = arith.addf %4, %25 : vector<1x2048xf32>
    %c2 = arith.constant 2 : index
    %c0_15 = arith.constant 0 : index
    %c0_16 = arith.constant 0 : index
    %27 = vector.load %arg2[%c2, %c0_15, %c0_16] : memref<4x64x2048xbf16, #tpu.memory_space<vmem>>, vector<1x16x2048xbf16>
    %28 = vector.shape_cast %27 : vector<1x16x2048xbf16> to vector<16x2048xbf16>
    %29 = arith.extf %28 : vector<16x2048xbf16> to vector<16x2048xf32>
    %30 = arith.mulf %29, %12 : vector<16x2048xf32>
    %cst_17 = arith.constant dense<0.000000e+00> : vector<2048xf32>
    %31 = vector.multi_reduction <add>, %30, %cst_17 [0] : vector<16x2048xf32> to vector<2048xf32>
    %32 = vector.shape_cast %31 : vector<2048xf32> to vector<1x2048xf32>
    %33 = arith.addf %5, %32 : vector<1x2048xf32>
    %c3_18 = arith.constant 3 : index
    %c16 = arith.constant 16 : index
    %c0_19 = arith.constant 0 : index
    %34 = vector.load %arg2[%c3_18, %c16, %c0_19] : memref<4x64x2048xbf16, #tpu.memory_space<vmem>>, vector<1x16x2048xbf16>
    %35 = vector.shape_cast %34 : vector<1x16x2048xbf16> to vector<16x2048xbf16>
    %36 = arith.extf %35 : vector<16x2048xbf16> to vector<16x2048xf32>
    %cst_20 = arith.constant 0.000000e+00 : f32
    %cst_21 = arith.constant 1.000000e+00 : f32
    %37 = vector.broadcast %cst_20 : f32 to vector<16x2048xf32>
    %38 = arith.maximumf %37, %36 : vector<16x2048xf32>
    %39 = vector.broadcast %cst_21 : f32 to vector<16x2048xf32>
    %40 = arith.minimumf %39, %38 : vector<16x2048xf32>
    %c0_22 = arith.constant 0 : index
    %c16_23 = arith.constant 16 : index
    %c0_24 = arith.constant 0 : index
    %41 = vector.load %arg2[%c0_22, %c16_23, %c0_24] : memref<4x64x2048xbf16, #tpu.memory_space<vmem>>, vector<1x16x2048xbf16>
    %42 = vector.shape_cast %41 : vector<1x16x2048xbf16> to vector<16x2048xbf16>
    %43 = arith.extf %42 : vector<16x2048xbf16> to vector<16x2048xf32>
    %44 = arith.mulf %43, %40 : vector<16x2048xf32>
    %cst_25 = arith.constant dense<0.000000e+00> : vector<2048xf32>
    %45 = vector.multi_reduction <add>, %44, %cst_25 [0] : vector<16x2048xf32> to vector<2048xf32>
    %46 = vector.shape_cast %45 : vector<2048xf32> to vector<1x2048xf32>
    %47 = arith.addf %19, %46 : vector<1x2048xf32>
    %c1_26 = arith.constant 1 : index
    %c16_27 = arith.constant 16 : index
    %c0_28 = arith.constant 0 : index
    %48 = vector.load %arg2[%c1_26, %c16_27, %c0_28] : memref<4x64x2048xbf16, #tpu.memory_space<vmem>>, vector<1x16x2048xbf16>
    %49 = vector.shape_cast %48 : vector<1x16x2048xbf16> to vector<16x2048xbf16>
    %50 = arith.extf %49 : vector<16x2048xbf16> to vector<16x2048xf32>
    %51 = arith.mulf %50, %40 : vector<16x2048xf32>
    %cst_29 = arith.constant dense<0.000000e+00> : vector<2048xf32>
    %52 = vector.multi_reduction <add>, %51, %cst_29 [0] : vector<16x2048xf32> to vector<2048xf32>
    %53 = vector.shape_cast %52 : vector<2048xf32> to vector<1x2048xf32>
    %54 = arith.addf %26, %53 : vector<1x2048xf32>
    %c2_30 = arith.constant 2 : index
    %c16_31 = arith.constant 16 : index
    %c0_32 = arith.constant 0 : index
    %55 = vector.load %arg2[%c2_30, %c16_31, %c0_32] : memref<4x64x2048xbf16, #tpu.memory_space<vmem>>, vector<1x16x2048xbf16>
    %56 = vector.shape_cast %55 : vector<1x16x2048xbf16> to vector<16x2048xbf16>
    %57 = arith.extf %56 : vector<16x2048xbf16> to vector<16x2048xf32>
    %58 = arith.mulf %57, %40 : vector<16x2048xf32>
    %cst_33 = arith.constant dense<0.000000e+00> : vector<2048xf32>
    %59 = vector.multi_reduction <add>, %58, %cst_33 [0] : vector<16x2048xf32> to vector<2048xf32>
    %60 = vector.shape_cast %59 : vector<2048xf32> to vector<1x2048xf32>
    %61 = arith.addf %33, %60 : vector<1x2048xf32>
    %c3_34 = arith.constant 3 : index
    %c32 = arith.constant 32 : index
    %c0_35 = arith.constant 0 : index
    %62 = vector.load %arg2[%c3_34, %c32, %c0_35] : memref<4x64x2048xbf16, #tpu.memory_space<vmem>>, vector<1x16x2048xbf16>
    %63 = vector.shape_cast %62 : vector<1x16x2048xbf16> to vector<16x2048xbf16>
    %64 = arith.extf %63 : vector<16x2048xbf16> to vector<16x2048xf32>
    %cst_36 = arith.constant 0.000000e+00 : f32
    %cst_37 = arith.constant 1.000000e+00 : f32
    %65 = vector.broadcast %cst_36 : f32 to vector<16x2048xf32>
    %66 = arith.maximumf %65, %64 : vector<16x2048xf32>
    %67 = vector.broadcast %cst_37 : f32 to vector<16x2048xf32>
    %68 = arith.minimumf %67, %66 : vector<16x2048xf32>
    %c0_38 = arith.constant 0 : index
    %c32_39 = arith.constant 32 : index
    %c0_40 = arith.constant 0 : index
    %69 = vector.load %arg2[%c0_38, %c32_39, %c0_40] : memref<4x64x2048xbf16, #tpu.memory_space<vmem>>, vector<1x16x2048xbf16>
    %70 = vector.shape_cast %69 : vector<1x16x2048xbf16> to vector<16x2048xbf16>
    %71 = arith.extf %70 : vector<16x2048xbf16> to vector<16x2048xf32>
    %72 = arith.mulf %71, %68 : vector<16x2048xf32>
    %cst_41 = arith.constant dense<0.000000e+00> : vector<2048xf32>
    %73 = vector.multi_reduction <add>, %72, %cst_41 [0] : vector<16x2048xf32> to vector<2048xf32>
    %74 = vector.shape_cast %73 : vector<2048xf32> to vector<1x2048xf32>
    %75 = arith.addf %47, %74 : vector<1x2048xf32>
    %c1_42 = arith.constant 1 : index
    %c32_43 = arith.constant 32 : index
    %c0_44 = arith.constant 0 : index
    %76 = vector.load %arg2[%c1_42, %c32_43, %c0_44] : memref<4x64x2048xbf16, #tpu.memory_space<vmem>>, vector<1x16x2048xbf16>
    %77 = vector.shape_cast %76 : vector<1x16x2048xbf16> to vector<16x2048xbf16>
    %78 = arith.extf %77 : vector<16x2048xbf16> to vector<16x2048xf32>
    %79 = arith.mulf %78, %68 : vector<16x2048xf32>
    %cst_45 = arith.constant dense<0.000000e+00> : vector<2048xf32>
    %80 = vector.multi_reduction <add>, %79, %cst_45 [0] : vector<16x2048xf32> to vector<2048xf32>
    %81 = vector.shape_cast %80 : vector<2048xf32> to vector<1x2048xf32>
    %82 = arith.addf %54, %81 : vector<1x2048xf32>
    %c2_46 = arith.constant 2 : index
    %c32_47 = arith.constant 32 : index
    %c0_48 = arith.constant 0 : index
    %83 = vector.load %arg2[%c2_46, %c32_47, %c0_48] : memref<4x64x2048xbf16, #tpu.memory_space<vmem>>, vector<1x16x2048xbf16>
    %84 = vector.shape_cast %83 : vector<1x16x2048xbf16> to vector<16x2048xbf16>
    %85 = arith.extf %84 : vector<16x2048xbf16> to vector<16x2048xf32>
    %86 = arith.mulf %85, %68 : vector<16x2048xf32>
    %cst_49 = arith.constant dense<0.000000e+00> : vector<2048xf32>
    %87 = vector.multi_reduction <add>, %86, %cst_49 [0] : vector<16x2048xf32> to vector<2048xf32>
    %88 = vector.shape_cast %87 : vector<2048xf32> to vector<1x2048xf32>
    %89 = arith.addf %61, %88 : vector<1x2048xf32>
    %c3_50 = arith.constant 3 : index
    %c48 = arith.constant 48 : index
    %c0_51 = arith.constant 0 : index
    %90 = vector.load %arg2[%c3_50, %c48, %c0_51] : memref<4x64x2048xbf16, #tpu.memory_space<vmem>>, vector<1x16x2048xbf16>
    %91 = vector.shape_cast %90 : vector<1x16x2048xbf16> to vector<16x2048xbf16>
    %92 = arith.extf %91 : vector<16x2048xbf16> to vector<16x2048xf32>
    %cst_52 = arith.constant 0.000000e+00 : f32
    %cst_53 = arith.constant 1.000000e+00 : f32
    %93 = vector.broadcast %cst_52 : f32 to vector<16x2048xf32>
    %94 = arith.maximumf %93, %92 : vector<16x2048xf32>
    %95 = vector.broadcast %cst_53 : f32 to vector<16x2048xf32>
    %96 = arith.minimumf %95, %94 : vector<16x2048xf32>
    %c0_54 = arith.constant 0 : index
    %c48_55 = arith.constant 48 : index
    %c0_56 = arith.constant 0 : index
    %97 = vector.load %arg2[%c0_54, %c48_55, %c0_56] : memref<4x64x2048xbf16, #tpu.memory_space<vmem>>, vector<1x16x2048xbf16>
    %98 = vector.shape_cast %97 : vector<1x16x2048xbf16> to vector<16x2048xbf16>
    %99 = arith.extf %98 : vector<16x2048xbf16> to vector<16x2048xf32>
    %100 = arith.mulf %99, %96 : vector<16x2048xf32>
    %cst_57 = arith.constant dense<0.000000e+00> : vector<2048xf32>
    %101 = vector.multi_reduction <add>, %100, %cst_57 [0] : vector<16x2048xf32> to vector<2048xf32>
    %102 = vector.shape_cast %101 : vector<2048xf32> to vector<1x2048xf32>
    %103 = arith.addf %75, %102 : vector<1x2048xf32>
    %c1_58 = arith.constant 1 : index
    %c48_59 = arith.constant 48 : index
    %c0_60 = arith.constant 0 : index
    %104 = vector.load %arg2[%c1_58, %c48_59, %c0_60] : memref<4x64x2048xbf16, #tpu.memory_space<vmem>>, vector<1x16x2048xbf16>
    %105 = vector.shape_cast %104 : vector<1x16x2048xbf16> to vector<16x2048xbf16>
    %106 = arith.extf %105 : vector<16x2048xbf16> to vector<16x2048xf32>
    %107 = arith.mulf %106, %96 : vector<16x2048xf32>
    %cst_61 = arith.constant dense<0.000000e+00> : vector<2048xf32>
    %108 = vector.multi_reduction <add>, %107, %cst_61 [0] : vector<16x2048xf32> to vector<2048xf32>
    %109 = vector.shape_cast %108 : vector<2048xf32> to vector<1x2048xf32>
    %110 = arith.addf %82, %109 : vector<1x2048xf32>
    %c2_62 = arith.constant 2 : index
    %c48_63 = arith.constant 48 : index
    %c0_64 = arith.constant 0 : index
    %111 = vector.load %arg2[%c2_62, %c48_63, %c0_64] : memref<4x64x2048xbf16, #tpu.memory_space<vmem>>, vector<1x16x2048xbf16>
    %112 = vector.shape_cast %111 : vector<1x16x2048xbf16> to vector<16x2048xbf16>
    %113 = arith.extf %112 : vector<16x2048xbf16> to vector<16x2048xf32>
    %114 = arith.mulf %113, %96 : vector<16x2048xf32>
    %cst_65 = arith.constant dense<0.000000e+00> : vector<2048xf32>
    %115 = vector.multi_reduction <add>, %114, %cst_65 [0] : vector<16x2048xf32> to vector<2048xf32>
    %116 = vector.shape_cast %115 : vector<2048xf32> to vector<1x2048xf32>
    %117 = arith.addf %89, %116 : vector<1x2048xf32>
    %118 = tpu.concatenate %103, %110, %117 in 0 : vector<1x2048xf32>, vector<1x2048xf32>, vector<1x2048xf32> -> vector<3x2048xf32>
    %119 = vector.broadcast %2 : vector<1x2048xf32> to vector<3x2048xf32>
    %120 = arith.mulf %118, %119 : vector<3x2048xf32>
    %c0_66 = arith.constant 0 : index
    %c0_67 = arith.constant 0 : index
    %121 = vector.load %arg3[%c0_66, %c0_67] : memref<3x2048xf32, #tpu.memory_space<vmem>>, vector<3x2048xf32>
    tpu.vector_store %arg3[%c0_66, %c0_67], %120 {strides = array<i32>} : memref<3x2048xf32, #tpu.memory_space<vmem>>, vector<3x2048xf32>,
    return
  }
  func.func @transform_0(%arg0: i32) -> (i32, i32) {
    %c0_i32 = arith.constant 0 : i32
    %c0_i32_0 = arith.constant 0 : i32
    return %c0_i32, %arg0 : i32, i32
  }
  func.func @transform_1(%arg0: i32) -> (i32, i32, i32) {
    %c0_i32 = arith.constant 0 : i32
    %c0_i32_0 = arith.constant 0 : i32
    %c0_i32_1 = arith.constant 0 : i32
    return %c0_i32, %c0_i32_0, %arg0 : i32, i32, i32
  }
  func.func @transform_2(%arg0: i32) -> (i32, i32) {
    %c0_i32 = arith.constant 0 : i32
    %c0_i32_0 = arith.constant 0 : i32
    return %c0_i32, %arg0 : i32, i32
  }
}

</mosaic_0001>

<llo_original>
// kernel: tpu_custom_call.1
$region0: #{tpu_custom_call.1}
  #allocation0 [shape = 'u32[]', space=smem, size = 0x4, offset = 0x4, fixed_abs, tag = 'smem constant byte address 0x4 - core index']
  #allocation1 [shape = 'u32[144,128]{1,0:T(1,128)}', space=vmem, size = 0x12000, scoped, tag = 'internal scratch']
  %s0 = inlined_call_operand.hbm [shape: f32[1,4096], index: 0, kind: input, shape index: {}]
  %s1 = inlined_call_operand.hbm [shape: bf16[4,64,4096], index: 1, kind: input, shape index: {}]
  %s2 = inlined_call_operand.hbm [shape: f32[3,4096], index: 2, kind: output, shape index: {}]
  %s3 = sld [smem:[#allocation0]]
  $region49: #{tpu_custom_call.1} parent=0
    _
  %s5 = ssub.s32 1, %s3
  %s6 = scalar_select 0, %s5, %s3
  $region1: #{tpu_custom_call.1} parent=0
    #allocation2 [shape = 'u8[16384]{0}', space=vmem, size = 0x4000, scoped, tag = 'input window, operand 0']
    #allocation3 [shape = 's32[2]{0}', space=sflag, size = 0x8, scoped, tag = 'scoped memory for tpu_custom_call.1']
    #allocation4 [shape = 's32[2]{0}', space=sflag, size = 0x8, scoped, tag = 'scoped memory for tpu_custom_call.1']
    #allocation5 [shape = 'u8[2097152]{0}', space=vmem, size = 0x200000, scoped, tag = 'input window, operand 1']
    #allocation6 [shape = 's32[2]{0}', space=sflag, size = 0x8, scoped, tag = 'scoped memory for tpu_custom_call.1']
    #allocation7 [shape = 'u8[65536]{0}', space=vmem, size = 0x10000, scoped, tag = 'output window, operand 0']
    %7 = vsyncpa [#allocation3], 0
    %s8 = scalar_lea.sflag [#allocation3], 1
    %9 = vsyncpa %s8, 0
    %10 = vsyncpa [#allocation6], 0
    %s11 = scalar_lea.sflag [#allocation6], 1
    %12 = vsyncpa %s11, 0
    %13 = vsyncpa [#allocation4], 0
    %s14 = scalar_lea.sflag [#allocation4], 1
    %15 = vsyncpa %s14, 0
    loop: start=0, step=1, limit=4
    $region2: #{tpu_custom_call.1} parent=1 // loop_pre_header
      _
    $region3: #{tpu_custom_call.1} parent=1 // loop_header
      %s17 = sphi 0, %s21
      %p18 = scmp.ge.s32.totalorder %s17, 4
      %s27 = sphi 0, %s29
      %s30 = sphi 0, %s27
      %s31 = sphi 0, %s30
      %s47 = sphi 0, %s31
      %s53 = sphi 0, %s55
      %s56 = sphi 0, %s53
      %s57 = sphi 0, %s56
      %s73 = sphi 0, %s57
      %s79 = sphi 0, %s81
      %s82 = sphi 0, %s79
      %s83 = sphi 0, %s82
      %s99 = sphi 0, %s83
    $region4: #{tpu_custom_call.1} parent=1 // loop_header_branch
      %20 = sbr.rel (%p18) target = $region8
    $region5: #{tpu_custom_call.1} parent=1 // loop_body
      %s22 = ssub.s32 %s17, 1
      %s23 = ssub.s32 %s17, 2
      %s24 = sadd.s32 %s17, 1
      %s25 = ssub.s32 %s17, %s24
      %p26 = scmp.eq.s32.totalorder %s25, 0
      %s28 = sadd.s32 %s27, 1
      %s29 = scalar_select %p26, %s27, %s28
      %p32 = pneg %p26
      %p33 = scmp.eq.s32.totalorder %s17, 1
      %p34 = por %p32, %p33
      %p35 = scmp.ne.s32.totalorder %s27, %s30
      %p36 = scmp.eq.s32.totalorder %s17, 0
      %p37 = por %p35, %p36
      %p38 = scmp.ne.s32.totalorder %s27, %s30
      %p39 = scmp.eq.s32.totalorder %s22, 1
      %p40 = por %p38, %p39
      %p41 = scmp.ne.s32.totalorder %s30, %s31
      %p42 = scmp.eq.s32.totalorder %s22, 0
      %p43 = por %p41, %p42
      %p44 = scmp.ne.s32.totalorder %s30, %s31
      %p45 = scmp.eq.s32.totalorder %s23, 1
      %p46 = por %p44, %p45
      %p48 = scmp.ne.s32.totalorder %s31, %s47
      %p49 = scmp.eq.s32.totalorder %s23, 0
      %p50 = por %p48, %p49
      %s51 = ssub.s32 %s17, %s24
      %p52 = scmp.eq.s32.totalorder %s51, 0
      %s54 = sadd.s32 %s53, 1
      %s55 = scalar_select %p52, %s53, %s54
      %p58 = pneg %p52
      %p59 = scmp.eq.s32.totalorder %s17, 1
      %p60 = por %p58, %p59
      %p61 = scmp.ne.s32.totalorder %s53, %s56
      %p62 = scmp.eq.s32.totalorder %s17, 0
      %p63 = por %p61, %p62
      %p64 = scmp.ne.s32.totalorder %s53, %s56
      %p65 = scmp.eq.s32.totalorder %s22, 1
      %p66 = por %p64, %p65
      %p67 = scmp.ne.s32.totalorder %s56, %s57
      %p68 = scmp.eq.s32.totalorder %s22, 0
      %p69 = por %p67, %p68
      %p70 = scmp.ne.s32.totalorder %s56, %s57
      %p71 = scmp.eq.s32.totalorder %s23, 1
      %p72 = por %p70, %p71
      %p74 = scmp.ne.s32.totalorder %s57, %s73
      %p75 = scmp.eq.s32.totalorder %s23, 0
      %p76 = por %p74, %p75
      %s77 = ssub.s32 %s17, %s24
      %p78 = scmp.eq.s32.totalorder %s77, 0
      %s80 = sadd.s32 %s79, 1
      %s81 = scalar_select %p78, %s79, %s80
      %p84 = pneg %p78
      %p85 = scmp.eq.s32.totalorder %s17, 1
      %p86 = por %p84, %p85
      %p87 = scmp.ne.s32.totalorder %s79, %s82
      %p88 = scmp.eq.s32.totalorder %s17, 0
      %p89 = por %p87, %p88
      %p90 = scmp.ne.s32.totalorder %s79, %s82
      %p91 = scmp.eq.s32.totalorder %s22, 1
      %p92 = por %p90, %p91
      %p93 = scmp.ne.s32.totalorder %s82, %s83
      %p94 = scmp.eq.s32.totalorder %s22, 0
      %p95 = por %p93, %p94
      %p96 = scmp.ne.s32.totalorder %s82, %s83
      %p97 = scmp.eq.s32.totalorder %s23, 1
      %p98 = por %p96, %p97
      %p100 = scmp.ne.s32.totalorder %s83, %s99
      %p101 = scmp.eq.s32.totalorder %s23, 0
      %p102 = por %p100, %p101
      %p103 = scmp.le.s32.totalorder 1, %s17
      %p104 = scmp.lt.s32.totalorder %s17, 3
      %p105 = pnand %p103, %p104
      %p106 = pneg %p105
      // Predicated region
      $region9: #{tpu_custom_call.1} parent=5 // pred_check
        _
      $region10: #{tpu_custom_call.1} parent=5 // pred_check_branch
        %108 = sbr.rel (%p105) target = $region12
      $region11: #{tpu_custom_call.1} parent=5 // pred_region
        %s109 = ssub.s32 %s17, 1
      $region12: #{tpu_custom_call.1} parent=5 // pred_fallthru
        _
      %p110 = scmp.lt.s32.totalorder %s17, 2
      // Predicated region
      $region13: #{tpu_custom_call.1} parent=5 // pred_check
        %p111 = pneg %p110
      $region14: #{tpu_custom_call.1} parent=5 // pred_check_branch
        %113 = sbr.rel (%p111) target = $region16
      $region15: #{tpu_custom_call.1} parent=5 // pred_region
        // Predicated region
        $region17: #{tpu_custom_call.1} parent=15 // pred_check
          %p114 = pneg %p37
        $region18: #{tpu_custom_call.1} parent=15 // pred_check_branch
          %116 = sbr.rel (%p114) target = $region20
        $region19: #{tpu_custom_call.1} parent=15 // pred_region
          %s117 = sand.u32 %s27, 1
          %s118 = scalar_lea.sflag [#allocation3], %s117
          %s119 = sand.u32 %s27, 1
          %s120 = smul.addr %s119, 16
          %s121 = scalar_lea.vmem [#allocation2], %s120
          %s122 = smul.u32 16, %s17
          %s124 = ssub.s32 256, 256
          %125 = vsyncadd %s118, %s124
          %s126 = smul.addr %s122, 16
          %s127 = scalar_lea.hbm %s0, %s126
          %s129 = sshll.u32 %s121, 4
          %s130 = int_to_ptr.vmem [resolvable:$true] %s129
          %132 = dma.hbm_to_vmem [thread:$0]  %s127, 256, %s130, %s118
        $region20: #{tpu_custom_call.1} parent=15 // pred_fallthru
          _
        // Predicated region
        $region21: #{tpu_custom_call.1} parent=15 // pred_check
          %p133 = pneg %p63
        $region22: #{tpu_custom_call.1} parent=15 // pred_check_branch
          %135 = sbr.rel (%p133) target = $region24
        $region23: #{tpu_custom_call.1} parent=15 // pred_region
          %s136 = sand.u32 %s53, 1
          %s137 = scalar_lea.sflag [#allocation6], %s136
          %s138 = sand.u32 %s53, 1
          %s139 = smul.addr %s138, 2048
          %s140 = scalar_lea.vmem [#allocation5], %s139
          %s141 = smul.u32 16, %s17
          %s143 = ssub.s32 32768, 32768
          %144 = vsyncadd %s137, %s143
          %s145 = smul.addr %s141, 64
          %s146 = scalar_lea.hbm %s1, %s145
          %s147 = sshll.u32 %s140, 4
          %s148 = int_to_ptr.vmem [resolvable:$true] %s147
          %153 = dma.hbm_to_vmem [thread:$0]  %s146, 32768, %s148, %s137, 2048, 1024, 64
        $region24: #{tpu_custom_call.1} parent=15 // pred_fallthru
          _
      $region16: #{tpu_custom_call.1} parent=5 // pred_fallthru
        _
      %p154 = scmp.le.s32.totalorder 1, %s17
      %p155 = scmp.lt.s32.totalorder %s17, 3
      %p156 = pnand %p154, %p155
      %p157 = pneg %p156
      // Predicated region
      $region25: #{tpu_custom_call.1} parent=5 // pred_check
        _
      $region26: #{tpu_custom_call.1} parent=5 // pred_check_branch
        %159 = sbr.rel (%p156) target = $region28
      $region27: #{tpu_custom_call.1} parent=5 // pred_region
        %s160 = ssub.s32 %s17, 1
        %s161 = sand.u32 %s30, 1
        %s162 = scalar_lea.sflag [#allocation3], %s161
        %s163 = sand.u32 %s30, 1
        %s164 = smul.addr %s163, 16
        %s165 = scalar_lea.vmem [#allocation2], %s164
        // Predicated region
        $region29: #{tpu_custom_call.1} parent=27 // pred_check
          %p166 = pneg %p43
        $region30: #{tpu_custom_call.1} parent=27 // pred_check_branch
          %168 = sbr.rel (%p166) target = $region32
        $region31: #{tpu_custom_call.1} parent=27 // pred_region
          %169 = dma.done %s162, 256
        $region32: #{tpu_custom_call.1} parent=27 // pred_fallthru
          _
        %s170 = sand.u32 %s56, 1
        %s171 = scalar_lea.sflag [#allocation6], %s170
        %s172 = sand.u32 %s56, 1
        %s173 = smul.addr %s172, 2048
        %s174 = scalar_lea.vmem [#allocation5], %s173
        // Predicated region
        $region33: #{tpu_custom_call.1} parent=27 // pred_check
          %p175 = pneg %p69
        $region34: #{tpu_custom_call.1} parent=27 // pred_check_branch
          %177 = sbr.rel (%p175) target = $region36
        $region35: #{tpu_custom_call.1} parent=27 // pred_region
          %178 = dma.done %s171, 32768
        $region36: #{tpu_custom_call.1} parent=27 // pred_fallthru
          _
        %s179 = sand.u32 %s30, 1
        %s180 = scalar_lea.sflag [#allocation3], %s179
        %s181 = sand.u32 %s30, 1
        %s182 = smul.addr %s181, 16
        %s183 = scalar_lea.vmem [#allocation2], %s182
        %p184 = pneg %p43
        %p185 = pneg %p40
        %s186 = sand.u32 %s56, 1
        %s187 = scalar_lea.sflag [#allocation6], %s186
        %s188 = sand.u32 %s56, 1
        %s189 = smul.addr %s188, 2048
        %s190 = scalar_lea.vmem [#allocation5], %s189
        %p191 = pneg %p69
        %p192 = pneg %p66
        %p193 = pneg %p95
        %p194 = pneg %p92
        %s195 = sand.u32 %s82, 1
        %s196 = scalar_lea.sflag [#allocation4], %s195
        %s197 = sand.u32 %s82, 1
        %s198 = smul.addr %s197, 64
        %s199 = scalar_lea.vmem [#allocation7], %s198
        %s200 = smul.u32 16, %s22
        %s201 = smul.u32 16, %s22
        %s202 = smul.u32 16, %s22
        %v203 = vld [vmem:[%s165] sm:$0xff]
        %v204 = vld [vmem:[%s165 + $0x8] sm:$0xff]
        %v205 = vmul.f32 %v203, 0.09817477
        %v206 = vmul.f32 %v204, 0.09817477
        %s207 = scalar_lea.vmem %s174, 1536 [#allocation5]
        %v208 = vld [vmem:[%s207] sm:$0xff]
        %v209 = vld [vmem:[%s207 + $0x8] sm:$0xff]
        %v210 = vld [vmem:[%s207 + $0x10] sm:$0xff]
        %v211 = vld [vmem:[%s207 + $0x18] sm:$0xff]
        %v212 = vld [vmem:[%s207 + $0x20] sm:$0xff]
        %v213 = vld [vmem:[%s207 + $0x28] sm:$0xff]
        %v214 = vld [vmem:[%s207 + $0x30] sm:$0xff]
        %v215 = vld [vmem:[%s207 + $0x38] sm:$0xff]
        %v216 = vld [vmem:[%s207 + $0x40] sm:$0xff]
        %v217 = vld [vmem:[%s207 + $0x48] sm:$0xff]
        %v218 = vld [vmem:[%s207 + $0x50] sm:$0xff]
        %v219 = vld [vmem:[%s207 + $0x58] sm:$0xff]
        %v220 = vld [vmem:[%s207 + $0x60] sm:$0xff]
        %v221 = vld [vmem:[%s207 + $0x68] sm:$0xff]
        %v222 = vld [vmem:[%s207 + $0x70] sm:$0xff]
        %v223 = vld [vmem:[%s207 + $0x78] sm:$0xff]
        %v224 = vunpack.c.l.bf16 %v208
        %v225 = vunpack.c.h.bf16 %v208
        %v226 = vunpack.c.l.bf16 %v209
        %v227 = vunpack.c.h.bf16 %v209
        %v228 = vunpack.c.l.bf16 %v210
        %v229 = vunpack.c.h.bf16 %v210
        %v230 = vunpack.c.l.bf16 %v211
        %v231 = vunpack.c.h.bf16 %v211
        %v232 = vunpack.c.l.bf16 %v212
        %v233 = vunpack.c.h.bf16 %v212
        %v234 = vunpack.c.l.bf16 %v213
        %v235 = vunpack.c.h.bf16 %v213
        %v236 = vunpack.c.l.bf16 %v214
        %v237 = vunpack.c.h.bf16 %v214
        %v238 = vunpack.c.l.bf16 %v215
        %v239 = vunpack.c.h.bf16 %v215
        %v240 = vunpack.c.l.bf16 %v216
        %v241 = vunpack.c.h.bf16 %v216
        %v242 = vunpack.c.l.bf16 %v217
        %v243 = vunpack.c.h.bf16 %v217
        %v244 = vunpack.c.l.bf16 %v218
        %v245 = vunpack.c.h.bf16 %v218
        %v246 = vunpack.c.l.bf16 %v219
        %v247 = vunpack.c.h.bf16 %v219
        %v248 = vunpack.c.l.bf16 %v220
        %v249 = vunpack.c.h.bf16 %v220
        %v250 = vunpack.c.l.bf16 %v221
        %v251 = vunpack.c.h.bf16 %v221
        %v252 = vunpack.c.l.bf16 %v222
        %v253 = vunpack.c.h.bf16 %v222
        %v254 = vunpack.c.l.bf16 %v223
        %v255 = vunpack.c.h.bf16 %v223
        %v256 = vmax.f32 %v224, 0.0
        %v257 = vmax.f32 %v225, 0.0
        %v258 = vmax.f32 %v226, 0.0
        %v259 = vmax.f32 %v227, 0.0
        %v260 = vmax.f32 %v228, 0.0
        %v261 = vmax.f32 %v229, 0.0
        %v262 = vmax.f32 %v230, 0.0
        %v263 = vmax.f32 %v231, 0.0
        %v264 = vmax.f32 %v232, 0.0
        %v265 = vmax.f32 %v233, 0.0
        %v266 = vmax.f32 %v234, 0.0
        %v267 = vmax.f32 %v235, 0.0
        %v268 = vmax.f32 %v236, 0.0
        %v269 = vmax.f32 %v237, 0.0
        %v270 = vmax.f32 %v238, 0.0
        %v271 = vmax.f32 %v239, 0.0
        %v272 = vmax.f32 %v240, 0.0
        %v273 = vmax.f32 %v241, 0.0
        %v274 = vmax.f32 %v242, 0.0
        %v275 = vmax.f32 %v243, 0.0
        %v276 = vmax.f32 %v244, 0.0
        %v277 = vmax.f32 %v245, 0.0
        %v278 = vmax.f32 %v246, 0.0
        %v279 = vmax.f32 %v247, 0.0
        %v280 = vmax.f32 %v248, 0.0
        %v281 = vmax.f32 %v249, 0.0
        %v282 = vmax.f32 %v250, 0.0
        %v283 = vmax.f32 %v251, 0.0
        %v284 = vmax.f32 %v252, 0.0
        %v285 = vmax.f32 %v253, 0.0
        %v286 = vmax.f32 %v254, 0.0
        %v287 = vmax.f32 %v255, 0.0
        %v288 = vmin.f32 %v256, 1.0
        %v289 = vmin.f32 %v257, 1.0
        %v290 = vmin.f32 %v258, 1.0
        %v291 = vmin.f32 %v259, 1.0
        %v292 = vmin.f32 %v260, 1.0
        %v293 = vmin.f32 %v261, 1.0
        %v294 = vmin.f32 %v262, 1.0
        %v295 = vmin.f32 %v263, 1.0
        %v296 = vmin.f32 %v264, 1.0
        %v297 = vmin.f32 %v265, 1.0
        %v298 = vmin.f32 %v266, 1.0
        %v299 = vmin.f32 %v267, 1.0
        %v300 = vmin.f32 %v268, 1.0
        %v301 = vmin.f32 %v269, 1.0
        %v302 = vmin.f32 %v270, 1.0
        %v303 = vmin.f32 %v271, 1.0
        %v304 = vmin.f32 %v272, 1.0
        %v305 = vmin.f32 %v273, 1.0
        %v306 = vmin.f32 %v274, 1.0
        %v307 = vmin.f32 %v275, 1.0
        %v308 = vmin.f32 %v276, 1.0
        %v309 = vmin.f32 %v277, 1.0
        %v310 = vmin.f32 %v278, 1.0
        %v311 = vmin.f32 %v279, 1.0
        %v312 = vmin.f32 %v280, 1.0
        %v313 = vmin.f32 %v281, 1.0
        %v314 = vmin.f32 %v282, 1.0
        %v315 = vmin.f32 %v283, 1.0
        %v316 = vmin.f32 %v284, 1.0
        %v317 = vmin.f32 %v285, 1.0
        %v318 = vmin.f32 %v286, 1.0
        %v319 = vmin.f32 %v287, 1.0
        %v320 = vld [vmem:[%s174] sm:$0xff]
        %v321 = vld [vmem:[%s174 + $0x8] sm:$0xff]
        %v322 = vld [vmem:[%s174 + $0x10] sm:$0xff]
        %v323 = vld [vmem:[%s174 + $0x18] sm:$0xff]
        %v324 = vld [vmem:[%s174 + $0x20] sm:$0xff]
        %v325 = vld [vmem:[%s174 + $0x28] sm:$0xff]
        %v326 = vld [vmem:[%s174 + $0x30] sm:$0xff]
        %v327 = vld [vmem:[%s174 + $0x38] sm:$0xff]
        %v328 = vld [vmem:[%s174 + $0x40] sm:$0xff]
        %v329 = vld [vmem:[%s174 + $0x48] sm:$0xff]
        %v330 = vld [vmem:[%s174 + $0x50] sm:$0xff]
        %v331 = vld [vmem:[%s174 + $0x58] sm:$0xff]
        %v332 = vld [vmem:[%s174 + $0x60] sm:$0xff]
        %v333 = vld [vmem:[%s174 + $0x68] sm:$0xff]
        %v334 = vld [vmem:[%s174 + $0x70] sm:$0xff]
        %v335 = vld [vmem:[%s174 + $0x78] sm:$0xff]
        %v336 = vunpack.c.l.bf16 %v320
        %v337 = vunpack.c.h.bf16 %v320
        %v338 = vunpack.c.l.bf16 %v321
        %v339 = vunpack.c.h.bf16 %v321
        %v340 = vunpack.c.l.bf16 %v322
        %v341 = vunpack.c.h.bf16 %v322
        %v342 = vunpack.c.l.bf16 %v323
        %v343 = vunpack.c.h.bf16 %v323
        %v344 = vunpack.c.l.bf16 %v324
        %v345 = vunpack.c.h.bf16 %v324
        %v346 = vunpack.c.l.bf16 %v325
        %v347 = vunpack.c.h.bf16 %v325
        %v348 = vunpack.c.l.bf16 %v326
        %v349 = vunpack.c.h.bf16 %v326
        %v350 = vunpack.c.l.bf16 %v327
        %v351 = vunpack.c.h.bf16 %v327
        %v352 = vunpack.c.l.bf16 %v328
        %v353 = vunpack.c.h.bf16 %v328
        %v354 = vunpack.c.l.bf16 %v329
        %v355 = vunpack.c.h.bf16 %v329
        %v356 = vunpack.c.l.bf16 %v330
        %v357 = vunpack.c.h.bf16 %v330
        %v358 = vunpack.c.l.bf16 %v331
        %v359 = vunpack.c.h.bf16 %v331
        %v360 = vunpack.c.l.bf16 %v332
        %v361 = vunpack.c.h.bf16 %v332
        %v362 = vunpack.c.l.bf16 %v333
        %v363 = vunpack.c.h.bf16 %v333
        %v364 = vunpack.c.l.bf16 %v334
        %v365 = vunpack.c.h.bf16 %v334
        %v366 = vunpack.c.l.bf16 %v335
        %v367 = vunpack.c.h.bf16 %v335
        %v368 = vmul.f32 %v336, %v288
        %v369 = vmul.f32 %v337, %v289
        %v370 = vmul.f32 %v338, %v290
        %v371 = vmul.f32 %v339, %v291
        %v372 = vmul.f32 %v340, %v292
        %v373 = vmul.f32 %v341, %v293
        %v374 = vmul.f32 %v342, %v294
        %v375 = vmul.f32 %v343, %v295
        %v376 = vmul.f32 %v344, %v296
        %v377 = vmul.f32 %v345, %v297
        %v378 = vmul.f32 %v346, %v298
        %v379 = vmul.f32 %v347, %v299
        %v380 = vmul.f32 %v348, %v300
        %v381 = vmul.f32 %v349, %v301
        %v382 = vmul.f32 %v350, %v302
        %v383 = vmul.f32 %v351, %v303
        %v384 = vmul.f32 %v352, %v304
        %v385 = vmul.f32 %v353, %v305
        %v386 = vmul.f32 %v354, %v306
        %v387 = vmul.f32 %v355, %v307
        %v388 = vmul.f32 %v356, %v308
        %v389 = vmul.f32 %v357, %v309
        %v390 = vmul.f32 %v358, %v310
        %v391 = vmul.f32 %v359, %v311
        %v392 = vmul.f32 %v360, %v312
        %v393 = vmul.f32 %v361, %v313
        %v394 = vmul.f32 %v362, %v314
        %v395 = vmul.f32 %v363, %v315
        %v396 = vmul.f32 %v364, %v316
        %v397 = vmul.f32 %v365, %v317
        %v398 = vmul.f32 %v366, %v318
        %v399 = vmul.f32 %v367, %v319
        %v400 = vadd.f32 %v368, %v384
        %v401 = vrot.slane %v400, 4
        %v402 = vadd.f32 %v400, %v401
        %v403 = vrot.slane %v402, 2
        %v404 = vadd.f32 %v402, %v403
        %v405 = vrot.slane %v404, 1
        %v406 = vadd.f32 %v404, %v405
        %v407 = vadd.f32 %v369, %v385
        %v408 = vrot.slane %v407, 4
        %v409 = vadd.f32 %v407, %v408
        %v410 = vrot.slane %v409, 2
        %v411 = vadd.f32 %v409, %v410
        %v412 = vrot.slane %v411, 1
        %v413 = vadd.f32 %v411, %v412
        %v414 = vadd.f32 %v370, %v386
        %v415 = vrot.slane %v414, 4
        %v416 = vadd.f32 %v414, %v415
        %v417 = vrot.slane %v416, 2
        %v418 = vadd.f32 %v416, %v417
        %v419 = vrot.slane %v418, 1
        %v420 = vadd.f32 %v418, %v419
        %v421 = vadd.f32 %v371, %v387
        %v422 = vrot.slane %v421, 4
        %v423 = vadd.f32 %v421, %v422
        %v424 = vrot.slane %v423, 2
        %v425 = vadd.f32 %v423, %v424
        %v426 = vrot.slane %v425, 1
        %v427 = vadd.f32 %v425, %v426
        %v428 = vadd.f32 %v372, %v388
        %v429 = vrot.slane %v428, 4
        %v430 = vadd.f32 %v428, %v429
        %v431 = vrot.slane %v430, 2
        %v432 = vadd.f32 %v430, %v431
        %v433 = vrot.slane %v432, 1
        %v434 = vadd.f32 %v432, %v433
        %v435 = vadd.f32 %v373, %v389
        %v436 = vrot.slane %v435, 4
        %v437 = vadd.f32 %v435, %v436
        %v438 = vrot.slane %v437, 2
        %v439 = vadd.f32 %v437, %v438
        %v440 = vrot.slane %v439, 1
        %v441 = vadd.f32 %v439, %v440
        %v442 = vadd.f32 %v374, %v390
        %v443 = vrot.slane %v442, 4
        %v444 = vadd.f32 %v442, %v443
        %v445 = vrot.slane %v444, 2
        %v446 = vadd.f32 %v444, %v445
        %v447 = vrot.slane %v446, 1
        %v448 = vadd.f32 %v446, %v447
        %v449 = vadd.f32 %v375, %v391
        %v450 = vrot.slane %v449, 4
        %v451 = vadd.f32 %v449, %v450
        %v452 = vrot.slane %v451, 2
        %v453 = vadd.f32 %v451, %v452
        %v454 = vrot.slane %v453, 1
        %v455 = vadd.f32 %v453, %v454
        %v456 = vadd.f32 %v376, %v392
        %v457 = vrot.slane %v456, 4
        %v458 = vadd.f32 %v456, %v457
        %v459 = vrot.slane %v458, 2
        %v460 = vadd.f32 %v458, %v459
        %v461 = vrot.slane %v460, 1
        %v462 = vadd.f32 %v460, %v461
        %v463 = vadd.f32 %v377, %v393
        %v464 = vrot.slane %v463, 4
        %v465 = vadd.f32 %v463, %v464
        %v466 = vrot.slane %v465, 2
        %v467 = vadd.f32 %v465, %v466
        %v468 = vrot.slane %v467, 1
        %v469 = vadd.f32 %v467, %v468
        %v470 = vadd.f32 %v378, %v394
        %v471 = vrot.slane %v470, 4
        %v472 = vadd.f32 %v470, %v471
        %v473 = vrot.slane %v472, 2
        %v474 = vadd.f32 %v472, %v473
        %v475 = vrot.slane %v474, 1
        %v476 = vadd.f32 %v474, %v475
        %v477 = vadd.f32 %v379, %v395
        %v478 = vrot.slane %v477, 4
        %v479 = vadd.f32 %v477, %v478
        %v480 = vrot.slane %v479, 2
        %v481 = vadd.f32 %v479, %v480
        %v482 = vrot.slane %v481, 1
        %v483 = vadd.f32 %v481, %v482
        %v484 = vadd.f32 %v380, %v396
        %v485 = vrot.slane %v484, 4
        %v486 = vadd.f32 %v484, %v485
        %v487 = vrot.slane %v486, 2
        %v488 = vadd.f32 %v486, %v487
        %v489 = vrot.slane %v488, 1
        %v490 = vadd.f32 %v488, %v489
        %v491 = vadd.f32 %v381, %v397
        %v492 = vrot.slane %v491, 4
        %v493 = vadd.f32 %v491, %v492
        %v494 = vrot.slane %v493, 2
        %v495 = vadd.f32 %v493, %v494
        %v496 = vrot.slane %v495, 1
        %v497 = vadd.f32 %v495, %v496
        %v498 = vadd.f32 %v382, %v398
        %v499 = vrot.slane %v498, 4
        %v500 = vadd.f32 %v498, %v499
        %v501 = vrot.slane %v500, 2
        %v502 = vadd.f32 %v500, %v501
        %v503 = vrot.slane %v502, 1
        %v504 = vadd.f32 %v502, %v503
        %v505 = vadd.f32 %v383, %v399
        %v506 = vrot.slane %v505, 4
        %v507 = vadd.f32 %v505, %v506
        %v508 = vrot.slane %v507, 2
        %v509 = vadd.f32 %v507, %v508
        %v510 = vrot.slane %v509, 1
        %v511 = vadd.f32 %v509, %v510
        %v512 = vadd.f32 %v406, 0.0
        %v513 = vadd.f32 %v413, 0.0
        %v514 = vadd.f32 %v420, 0.0
        %v515 = vadd.f32 %v427, 0.0
        %v516 = vadd.f32 %v434, 0.0
        %v517 = vadd.f32 %v441, 0.0
        %v518 = vadd.f32 %v448, 0.0
        %v519 = vadd.f32 %v455, 0.0
        %v520 = vadd.f32 %v462, 0.0
        %v521 = vadd.f32 %v469, 0.0
        %v522 = vadd.f32 %v476, 0.0
        %v523 = vadd.f32 %v483, 0.0
        %v524 = vadd.f32 %v490, 0.0
        %v525 = vadd.f32 %v497, 0.0
        %v526 = vadd.f32 %v504, 0.0
        %v527 = vadd.f32 %v511, 0.0
        %s528 = scalar_lea.vmem %s174, 512 [#allocation5]
        %v529 = vld [vmem:[%s528] sm:$0xff]
        %v530 = vld [vmem:[%s528 + $0x8] sm:$0xff]
        %v531 = vld [vmem:[%s528 + $0x10] sm:$0xff]
        %v532 = vld [vmem:[%s528 + $0x18] sm:$0xff]
        %v533 = vld [vmem:[%s528 + $0x20] sm:$0xff]
        %v534 = vld [vmem:[%s528 + $0x28] sm:$0xff]
        %v535 = vld [vmem:[%s528 + $0x30] sm:$0xff]
        %v536 = vld [vmem:[%s528 + $0x38] sm:$0xff]
        %v537 = vld [vmem:[%s528 + $0x40] sm:$0xff]
        %v538 = vld [vmem:[%s528 + $0x48] sm:$0xff]
        %v539 = vld [vmem:[%s528 + $0x50] sm:$0xff]
        %v540 = vld [vmem:[%s528 + $0x58] sm:$0xff]
        %v541 = vld [vmem:[%s528 + $0x60] sm:$0xff]
        %v542 = vld [vmem:[%s528 + $0x68] sm:$0xff]
        %v543 = vld [vmem:[%s528 + $0x70] sm:$0xff]
        %v544 = vld [vmem:[%s528 + $0x78] sm:$0xff]
        %v545 = vunpack.c.l.bf16 %v529
        %v546 = vunpack.c.h.bf16 %v529
        %v547 = vunpack.c.l.bf16 %v530
        %v548 = vunpack.c.h.bf16 %v530
        %v549 = vunpack.c.l.bf16 %v531
        %v550 = vunpack.c.h.bf16 %v531
        %v551 = vunpack.c.l.bf16 %v532
        %v552 = vunpack.c.h.bf16 %v532
        %v553 = vunpack.c.l.bf16 %v533
        %v554 = vunpack.c.h.bf16 %v533
        %v555 = vunpack.c.l.bf16 %v534
        %v556 = vunpack.c.h.bf16 %v534
        %v557 = vunpack.c.l.bf16 %v535
        %v558 = vunpack.c.h.bf16 %v535
        %v559 = vunpack.c.l.bf16 %v536
        %v560 = vunpack.c.h.bf16 %v536
        %v561 = vunpack.c.l.bf16 %v537
        %v562 = vunpack.c.h.bf16 %v537
        %v563 = vunpack.c.l.bf16 %v538
        %v564 = vunpack.c.h.bf16 %v538
        %v565 = vunpack.c.l.bf16 %v539
        %v566 = vunpack.c.h.bf16 %v539
        %v567 = vunpack.c.l.bf16 %v540
        %v568 = vunpack.c.h.bf16 %v540
        %v569 = vunpack.c.l.bf16 %v541
        %v570 = vunpack.c.h.bf16 %v541
        %v571 = vunpack.c.l.bf16 %v542
        %v572 = vunpack.c.h.bf16 %v542
        %v573 = vunpack.c.l.bf16 %v543
        %v574 = vunpack.c.h.bf16 %v543
        %v575 = vunpack.c.l.bf16 %v544
        %v576 = vunpack.c.h.bf16 %v544
        %v577 = vmul.f32 %v545, %v288
        %v578 = vmul.f32 %v546, %v289
        %v579 = vmul.f32 %v547, %v290
        %v580 = vmul.f32 %v548, %v291
        %v581 = vmul.f32 %v549, %v292
        %v582 = vmul.f32 %v550, %v293
        %v583 = vmul.f32 %v551, %v294
        %v584 = vmul.f32 %v552, %v295
        %v585 = vmul.f32 %v553, %v296
        %v586 = vmul.f32 %v554, %v297
        %v587 = vmul.f32 %v555, %v298
        %v588 = vmul.f32 %v556, %v299
        %v589 = vmul.f32 %v557, %v300
        %v590 = vmul.f32 %v558, %v301
        %v591 = vmul.f32 %v559, %v302
        %v592 = vmul.f32 %v560, %v303
        %v593 = vmul.f32 %v561, %v304
        %v594 = vmul.f32 %v562, %v305
        %v595 = vmul.f32 %v563, %v306
        %v596 = vmul.f32 %v564, %v307
        %v597 = vmul.f32 %v565, %v308
        %v598 = vmul.f32 %v566, %v309
        %v599 = vmul.f32 %v567, %v310
        %v600 = vmul.f32 %v568, %v311
        %v601 = vmul.f32 %v569, %v312
        %v602 = vmul.f32 %v570, %v313
        %v603 = vmul.f32 %v571, %v314
        %v604 = vmul.f32 %v572, %v315
        %v605 = vmul.f32 %v573, %v316
        %v606 = vmul.f32 %v574, %v317
        %v607 = vmul.f32 %v575, %v318
        %v608 = vmul.f32 %v576, %v319
        %v609 = vadd.f32 %v577, %v593
        %v610 = vrot.slane %v609, 4
        %v611 = vadd.f32 %v609, %v610
        %v612 = vrot.slane %v611, 2
        %v613 = vadd.f32 %v611, %v612
        %v614 = vrot.slane %v613, 1
        %v615 = vadd.f32 %v613, %v614
        %v616 = vadd.f32 %v578, %v594
        %v617 = vrot.slane %v616, 4
        %v618 = vadd.f32 %v616, %v617
        %v619 = vrot.slane %v618, 2
        %v620 = vadd.f32 %v618, %v619
        %v621 = vrot.slane %v620, 1
        %v622 = vadd.f32 %v620, %v621
        %v623 = vadd.f32 %v579, %v595
        %v624 = vrot.slane %v623, 4
        %v625 = vadd.f32 %v623, %v624
        %v626 = vrot.slane %v625, 2
        %v627 = vadd.f32 %v625, %v626
        %v628 = vrot.slane %v627, 1
        %v629 = vadd.f32 %v627, %v628
        %v630 = vadd.f32 %v580, %v596
        %v631 = vrot.slane %v630, 4
        %v632 = vadd.f32 %v630, %v631
        %v633 = vrot.slane %v632, 2
        %v634 = vadd.f32 %v632, %v633
        %v635 = vrot.slane %v634, 1
        %v636 = vadd.f32 %v634, %v635
        %v637 = vadd.f32 %v581, %v597
        %v638 = vrot.slane %v637, 4
        %v639 = vadd.f32 %v637, %v638
        %v640 = vrot.slane %v639, 2
        %v641 = vadd.f32 %v639, %v640
        %v642 = vrot.slane %v641, 1
        %v643 = vadd.f32 %v641, %v642
        %v644 = vadd.f32 %v582, %v598
        %v645 = vrot.slane %v644, 4
        %v646 = vadd.f32 %v644, %v645
        %v647 = vrot.slane %v646, 2
        %v648 = vadd.f32 %v646, %v647
        %v649 = vrot.slane %v648, 1
        %v650 = vadd.f32 %v648, %v649
        %v651 = vadd.f32 %v583, %v599
        %v652 = vrot.slane %v651, 4
        %v653 = vadd.f32 %v651, %v652
        %v654 = vrot.slane %v653, 2
        %v655 = vadd.f32 %v653, %v654
        %v656 = vrot.slane %v655, 1
        %v657 = vadd.f32 %v655, %v656
        %v658 = vadd.f32 %v584, %v600
        %v659 = vrot.slane %v658, 4
        %v660 = vadd.f32 %v658, %v659
        %v661 = vrot.slane %v660, 2
        %v662 = vadd.f32 %v660, %v661
        %v663 = vrot.slane %v662, 1
        %v664 = vadd.f32 %v662, %v663
        %v665 = vadd.f32 %v585, %v601
        %v666 = vrot.slane %v665, 4
        %v667 = vadd.f32 %v665, %v666
        %v668 = vrot.slane %v667, 2
        %v669 = vadd.f32 %v667, %v668
        %v670 = vrot.slane %v669, 1
        %v671 = vadd.f32 %v669, %v670
        %v672 = vadd.f32 %v586, %v602
        %v673 = vrot.slane %v672, 4
        %v674 = vadd.f32 %v672, %v673
        %v675 = vrot.slane %v674, 2
        %v676 = vadd.f32 %v674, %v675
        %v677 = vrot.slane %v676, 1
        %v678 = vadd.f32 %v676, %v677
        %v679 = vadd.f32 %v587, %v603
        %v680 = vrot.slane %v679, 4
        %v681 = vadd.f32 %v679, %v680
        %v682 = vrot.slane %v681, 2
        %v683 = vadd.f32 %v681, %v682
        %v684 = vrot.slane %v683, 1
        %v685 = vadd.f32 %v683, %v684
        %v686 = vadd.f32 %v588, %v604
        %v687 = vrot.slane %v686, 4
        %v688 = vadd.f32 %v686, %v687
        %v689 = vrot.slane %v688, 2
        %v690 = vadd.f32 %v688, %v689
        %v691 = vrot.slane %v690, 1
        %v692 = vadd.f32 %v690, %v691
        %v693 = vadd.f32 %v589, %v605
        %v694 = vrot.slane %v693, 4
        %v695 = vadd.f32 %v693, %v694
        %v696 = vrot.slane %v695, 2
        %v697 = vadd.f32 %v695, %v696
        %v698 = vrot.slane %v697, 1
        %v699 = vadd.f32 %v697, %v698
        %v700 = vadd.f32 %v590, %v606
        %v701 = vrot.slane %v700, 4
        %v702 = vadd.f32 %v700, %v701
        %v703 = vrot.slane %v702, 2
        %v704 = vadd.f32 %v702, %v703
        %v705 = vrot.slane %v704, 1
        %v706 = vadd.f32 %v704, %v705
        %v707 = vadd.f32 %v591, %v607
        %v708 = vrot.slane %v707, 4
        %v709 = vadd.f32 %v707, %v708
        %v710 = vrot.slane %v709, 2
        %v711 = vadd.f32 %v709, %v710
        %v712 = vrot.slane %v711, 1
        %v713 = vadd.f32 %v711, %v712
        %v714 = vadd.f32 %v592, %v608
        %v715 = vrot.slane %v714, 4
        %v716 = vadd.f32 %v714, %v715
        %v717 = vrot.slane %v716, 2
        %v718 = vadd.f32 %v716, %v717
        %v719 = vrot.slane %v718, 1
        %v720 = vadd.f32 %v718, %v719
        %v721 = vadd.f32 %v615, 0.0
        %v722 = vadd.f32 %v622, 0.0
        %v723 = vadd.f32 %v629, 0.0
        %v724 = vadd.f32 %v636, 0.0
        %v725 = vadd.f32 %v643, 0.0
        %v726 = vadd.f32 %v650, 0.0
        %v727 = vadd.f32 %v657, 0.0
        %v728 = vadd.f32 %v664, 0.0
        %v729 = vadd.f32 %v671, 0.0
        %v730 = vadd.f32 %v678, 0.0
        %v731 = vadd.f32 %v685, 0.0
        %v732 = vadd.f32 %v692, 0.0
        %v733 = vadd.f32 %v699, 0.0
        %v734 = vadd.f32 %v706, 0.0
        %v735 = vadd.f32 %v713, 0.0
        %v736 = vadd.f32 %v720, 0.0
        %s737 = scalar_lea.vmem %s174, 1024 [#allocation5]
        %v738 = vld [vmem:[%s737] sm:$0xff]
        %v739 = vld [vmem:[%s737 + $0x8] sm:$0xff]
        %v740 = vld [vmem:[%s737 + $0x10] sm:$0xff]
        %v741 = vld [vmem:[%s737 + $0x18] sm:$0xff]
        %v742 = vld [vmem:[%s737 + $0x20] sm:$0xff]
        %v743 = vld [vmem:[%s737 + $0x28] sm:$0xff]
        %v744 = vld [vmem:[%s737 + $0x30] sm:$0xff]
        %v745 = vld [vmem:[%s737 + $0x38] sm:$0xff]
        %v746 = vld [vmem:[%s737 + $0x40] sm:$0xff]
        %v747 = vld [vmem:[%s737 + $0x48] sm:$0xff]
        %v748 = vld [vmem:[%s737 + $0x50] sm:$0xff]
        %v749 = vld [vmem:[%s737 + $0x58] sm:$0xff]
        %v750 = vld [vmem:[%s737 + $0x60] sm:$0xff]
        %v751 = vld [vmem:[%s737 + $0x68] sm:$0xff]
        %v752 = vld [vmem:[%s737 + $0x70] sm:$0xff]
        %v753 = vld [vmem:[%s737 + $0x78] sm:$0xff]
        %v754 = vunpack.c.l.bf16 %v738
        %v755 = vunpack.c.h.bf16 %v738
        %v756 = vunpack.c.l.bf16 %v739
        %v757 = vunpack.c.h.bf16 %v739
        %v758 = vunpack.c.l.bf16 %v740
        %v759 = vunpack.c.h.bf16 %v740
        %v760 = vunpack.c.l.bf16 %v741
        %v761 = vunpack.c.h.bf16 %v741
        %v762 = vunpack.c.l.bf16 %v742
        %v763 = vunpack.c.h.bf16 %v742
        %v764 = vunpack.c.l.bf16 %v743
        %v765 = vunpack.c.h.bf16 %v743
        %v766 = vunpack.c.l.bf16 %v744
        %v767 = vunpack.c.h.bf16 %v744
        %v768 = vunpack.c.l.bf16 %v745
        %v769 = vunpack.c.h.bf16 %v745
        %v770 = vunpack.c.l.bf16 %v746
        %v771 = vunpack.c.h.bf16 %v746
        %v772 = vunpack.c.l.bf16 %v747
        %v773 = vunpack.c.h.bf16 %v747
        %v774 = vunpack.c.l.bf16 %v748
        %v775 = vunpack.c.h.bf16 %v748
        %v776 = vunpack.c.l.bf16 %v749
        %v777 = vunpack.c.h.bf16 %v749
        %v778 = vunpack.c.l.bf16 %v750
        %v779 = vunpack.c.h.bf16 %v750
        %v780 = vunpack.c.l.bf16 %v751
        %v781 = vunpack.c.h.bf16 %v751
        %v782 = vunpack.c.l.bf16 %v752
        %v783 = vunpack.c.h.bf16 %v752
        %v784 = vunpack.c.l.bf16 %v753
        %v785 = vunpack.c.h.bf16 %v753
        %v786 = vmul.f32 %v754, %v288
        %v787 = vmul.f32 %v755, %v289
        %v788 = vmul.f32 %v756, %v290
        %v789 = vmul.f32 %v757, %v291
        %v790 = vmul.f32 %v758, %v292
        %v791 = vmul.f32 %v759, %v293
        %v792 = vmul.f32 %v760, %v294
        %v793 = vmul.f32 %v761, %v295
        %v794 = vmul.f32 %v762, %v296
        %v795 = vmul.f32 %v763, %v297
        %v796 = vmul.f32 %v764, %v298
        %v797 = vmul.f32 %v765, %v299
        %v798 = vmul.f32 %v766, %v300
        %v799 = vmul.f32 %v767, %v301
        %v800 = vmul.f32 %v768, %v302
        %v801 = vmul.f32 %v769, %v303
        %v802 = vmul.f32 %v770, %v304
        %v803 = vmul.f32 %v771, %v305
        %v804 = vmul.f32 %v772, %v306
        %v805 = vmul.f32 %v773, %v307
        %v806 = vmul.f32 %v774, %v308
        %v807 = vmul.f32 %v775, %v309
        %v808 = vmul.f32 %v776, %v310
        %v809 = vmul.f32 %v777, %v311
        %v810 = vmul.f32 %v778, %v312
        %v811 = vmul.f32 %v779, %v313
        %v812 = vmul.f32 %v780, %v314
        %v813 = vmul.f32 %v781, %v315
        %v814 = vmul.f32 %v782, %v316
        %v815 = vmul.f32 %v783, %v317
        %v816 = vmul.f32 %v784, %v318
        %v817 = vmul.f32 %v785, %v319
        %v818 = vadd.f32 %v786, %v802
        %v819 = vrot.slane %v818, 4
        %v820 = vadd.f32 %v818, %v819
        %v821 = vrot.slane %v820, 2
        %v822 = vadd.f32 %v820, %v821
        %v823 = vrot.slane %v822, 1
        %v824 = vadd.f32 %v822, %v823
        %v825 = vadd.f32 %v787, %v803
        %v826 = vrot.slane %v825, 4
        %v827 = vadd.f32 %v825, %v826
        %v828 = vrot.slane %v827, 2
        %v829 = vadd.f32 %v827, %v828
        %v830 = vrot.slane %v829, 1
        %v831 = vadd.f32 %v829, %v830
        %v832 = vadd.f32 %v788, %v804
        %v833 = vrot.slane %v832, 4
        %v834 = vadd.f32 %v832, %v833
        %v835 = vrot.slane %v834, 2
        %v836 = vadd.f32 %v834, %v835
        %v837 = vrot.slane %v836, 1
        %v838 = vadd.f32 %v836, %v837
        %v839 = vadd.f32 %v789, %v805
        %v840 = vrot.slane %v839, 4
        %v841 = vadd.f32 %v839, %v840
        %v842 = vrot.slane %v841, 2
        %v843 = vadd.f32 %v841, %v842
        %v844 = vrot.slane %v843, 1
        %v845 = vadd.f32 %v843, %v844
        %v846 = vadd.f32 %v790, %v806
        %v847 = vrot.slane %v846, 4
        %v848 = vadd.f32 %v846, %v847
        %v849 = vrot.slane %v848, 2
        %v850 = vadd.f32 %v848, %v849
        %v851 = vrot.slane %v850, 1
        %v852 = vadd.f32 %v850, %v851
        %v853 = vadd.f32 %v791, %v807
        %v854 = vrot.slane %v853, 4
        %v855 = vadd.f32 %v853, %v854
        %v856 = vrot.slane %v855, 2
        %v857 = vadd.f32 %v855, %v856
        %v858 = vrot.slane %v857, 1
        %v859 = vadd.f32 %v857, %v858
        %v860 = vadd.f32 %v792, %v808
        %v861 = vrot.slane %v860, 4
        %v862 = vadd.f32 %v860, %v861
        %v863 = vrot.slane %v862, 2
        %v864 = vadd.f32 %v862, %v863
        %v865 = vrot.slane %v864, 1
        %v866 = vadd.f32 %v864, %v865
        %v867 = vadd.f32 %v793, %v809
        %v868 = vrot.slane %v867, 4
        %v869 = vadd.f32 %v867, %v868
        %v870 = vrot.slane %v869, 2
        %v871 = vadd.f32 %v869, %v870
        %v872 = vrot.slane %v871, 1
        %v873 = vadd.f32 %v871, %v872
        %v874 = vadd.f32 %v794, %v810
        %v875 = vrot.slane %v874, 4
        %v876 = vadd.f32 %v874, %v875
        %v877 = vrot.slane %v876, 2
        %v878 = vadd.f32 %v876, %v877
        %v879 = vrot.slane %v878, 1
        %v880 = vadd.f32 %v878, %v879
        %v881 = vadd.f32 %v795, %v811
        %v882 = vrot.slane %v881, 4
        %v883 = vadd.f32 %v881, %v882
        %v884 = vrot.slane %v883, 2
        %v885 = vadd.f32 %v883, %v884
        %v886 = vrot.slane %v885, 1
        %v887 = vadd.f32 %v885, %v886
        %v888 = vadd.f32 %v796, %v812
        %v889 = vrot.slane %v888, 4
        %v890 = vadd.f32 %v888, %v889
        %v891 = vrot.slane %v890, 2
        %v892 = vadd.f32 %v890, %v891
        %v893 = vrot.slane %v892, 1
        %v894 = vadd.f32 %v892, %v893
        %v895 = vadd.f32 %v797, %v813
        %v896 = vrot.slane %v895, 4
        %v897 = vadd.f32 %v895, %v896
        %v898 = vrot.slane %v897, 2
        %v899 = vadd.f32 %v897, %v898
        %v900 = vrot.slane %v899, 1
        %v901 = vadd.f32 %v899, %v900
        %v902 = vadd.f32 %v798, %v814
        %v903 = vrot.slane %v902, 4
        %v904 = vadd.f32 %v902, %v903
        %v905 = vrot.slane %v904, 2
        %v906 = vadd.f32 %v904, %v905
        %v907 = vrot.slane %v906, 1
        %v908 = vadd.f32 %v906, %v907
        %v909 = vadd.f32 %v799, %v815
        %v910 = vrot.slane %v909, 4
        %v911 = vadd.f32 %v909, %v910
        %v912 = vrot.slane %v911, 2
        %v913 = vadd.f32 %v911, %v912
        %v914 = vrot.slane %v913, 1
        %v915 = vadd.f32 %v913, %v914
        %v916 = vadd.f32 %v800, %v816
        %v917 = vrot.slane %v916, 4
        %v918 = vadd.f32 %v916, %v917
        %v919 = vrot.slane %v918, 2
        %v920 = vadd.f32 %v918, %v919
        %v921 = vrot.slane %v920, 1
        %v922 = vadd.f32 %v920, %v921
        %v923 = vadd.f32 %v801, %v817
        %v924 = vrot.slane %v923, 4
        %v925 = vadd.f32 %v923, %v924
        %v926 = vrot.slane %v925, 2
        %v927 = vadd.f32 %v925, %v926
        %v928 = vrot.slane %v927, 1
        %v929 = vadd.f32 %v927, %v928
        %v930 = vadd.f32 %v824, 0.0
        %v931 = vadd.f32 %v831, 0.0
        %v932 = vadd.f32 %v838, 0.0
        %v933 = vadd.f32 %v845, 0.0
        %v934 = vadd.f32 %v852, 0.0
        %v935 = vadd.f32 %v859, 0.0
        %v936 = vadd.f32 %v866, 0.0
        %v937 = vadd.f32 %v873, 0.0
        %v938 = vadd.f32 %v880, 0.0
        %v939 = vadd.f32 %v887, 0.0
        %v940 = vadd.f32 %v894, 0.0
        %v941 = vadd.f32 %v901, 0.0
        %v942 = vadd.f32 %v908, 0.0
        %v943 = vadd.f32 %v915, 0.0
        %v944 = vadd.f32 %v922, 0.0
        %v945 = vadd.f32 %v929, 0.0
        %v946 = vld [vmem:[%s207 + $0x80] sm:$0xff]
        %v947 = vld [vmem:[%s207 + $0x88] sm:$0xff]
        %v948 = vld [vmem:[%s207 + $0x90] sm:$0xff]
        %v949 = vld [vmem:[%s207 + $0x98] sm:$0xff]
        %v950 = vld [vmem:[%s207 + $0xa0] sm:$0xff]
        %v951 = vld [vmem:[%s207 + $0xa8] sm:$0xff]
        %v952 = vld [vmem:[%s207 + $0xb0] sm:$0xff]
        %v953 = vld [vmem:[%s207 + $0xb8] sm:$0xff]
        %v954 = vld [vmem:[%s207 + $0xc0] sm:$0xff]
        %v955 = vld [vmem:[%s207 + $0xc8] sm:$0xff]
        %v956 = vld [vmem:[%s207 + $0xd0] sm:$0xff]
        %v957 = vld [vmem:[%s207 + $0xd8] sm:$0xff]
        %v958 = vld [vmem:[%s207 + $0xe0] sm:$0xff]
        %v959 = vld [vmem:[%s207 + $0xe8] sm:$0xff]
        %v960 = vld [vmem:[%s207 + $0xf0] sm:$0xff]
        %v961 = vld [vmem:[%s207 + $0xf8] sm:$0xff]
        %v962 = vunpack.c.l.bf16 %v946
        %v963 = vunpack.c.h.bf16 %v946
        %v964 = vunpack.c.l.bf16 %v947
        %v965 = vunpack.c.h.bf16 %v947
        %v966 = vunpack.c.l.bf16 %v948
        %v967 = vunpack.c.h.bf16 %v948
        %v968 = vunpack.c.l.bf16 %v949
        %v969 = vunpack.c.h.bf16 %v949
        %v970 = vunpack.c.l.bf16 %v950
        %v971 = vunpack.c.h.bf16 %v950
        %v972 = vunpack.c.l.bf16 %v951
        %v973 = vunpack.c.h.bf16 %v951
        %v974 = vunpack.c.l.bf16 %v952
        %v975 = vunpack.c.h.bf16 %v952
        %v976 = vunpack.c.l.bf16 %v953
        %v977 = vunpack.c.h.bf16 %v953
        %v978 = vunpack.c.l.bf16 %v954
        %v979 = vunpack.c.h.bf16 %v954
        %v980 = vunpack.c.l.bf16 %v955
        %v981 = vunpack.c.h.bf16 %v955
        %v982 = vunpack.c.l.bf16 %v956
        %v983 = vunpack.c.h.bf16 %v956
        %v984 = vunpack.c.l.bf16 %v957
        %v985 = vunpack.c.h.bf16 %v957
        %v986 = vunpack.c.l.bf16 %v958
        %v987 = vunpack.c.h.bf16 %v958
        %v988 = vunpack.c.l.bf16 %v959
        %v989 = vunpack.c.h.bf16 %v959
        %v990 = vunpack.c.l.bf16 %v960
        %v991 = vunpack.c.h.bf16 %v960
        %v992 = vunpack.c.l.bf16 %v961
        %v993 = vunpack.c.h.bf16 %v961
        %v994 = vmax.f32 %v962, 0.0
        %v995 = vmax.f32 %v963, 0.0
        %v996 = vmax.f32 %v964, 0.0
        %v997 = vmax.f32 %v965, 0.0
        %v998 = vmax.f32 %v966, 0.0
        %v999 = vmax.f32 %v967, 0.0
        %v1000 = vmax.f32 %v968, 0.0
        %v1001 = vmax.f32 %v969, 0.0
        %v1002 = vmax.f32 %v970, 0.0
        %v1003 = vmax.f32 %v971, 0.0
        %v1004 = vmax.f32 %v972, 0.0
        %v1005 = vmax.f32 %v973, 0.0
        %v1006 = vmax.f32 %v974, 0.0
        %v1007 = vmax.f32 %v975, 0.0
        %v1008 = vmax.f32 %v976, 0.0
        %v1009 = vmax.f32 %v977, 0.0
        %v1010 = vmax.f32 %v978, 0.0
        %v1011 = vmax.f32 %v979, 0.0
        %v1012 = vmax.f32 %v980, 0.0
        %v1013 = vmax.f32 %v981, 0.0
        %v1014 = vmax.f32 %v982, 0.0
        %v1015 = vmax.f32 %v983, 0.0
        %v1016 = vmax.f32 %v984, 0.0
        %v1017 = vmax.f32 %v985, 0.0
        %v1018 = vmax.f32 %v986, 0.0
        %v1019 = vmax.f32 %v987, 0.0
        %v1020 = vmax.f32 %v988, 0.0
        %v1021 = vmax.f32 %v989, 0.0
        %v1022 = vmax.f32 %v990, 0.0
        %v1023 = vmax.f32 %v991, 0.0
        %v1024 = vmax.f32 %v992, 0.0
        %v1025 = vmax.f32 %v993, 0.0
        %v1026 = vmin.f32 %v994, 1.0
        %v1027 = vmin.f32 %v995, 1.0
        %v1028 = vmin.f32 %v996, 1.0
        %v1029 = vmin.f32 %v997, 1.0
        %v1030 = vmin.f32 %v998, 1.0
        %v1031 = vmin.f32 %v999, 1.0
        %v1032 = vmin.f32 %v1000, 1.0
        %v1033 = vmin.f32 %v1001, 1.0
        %v1034 = vmin.f32 %v1002, 1.0
        %v1035 = vmin.f32 %v1003, 1.0
        %v1036 = vmin.f32 %v1004, 1.0
        %v1037 = vmin.f32 %v1005, 1.0
        %v1038 = vmin.f32 %v1006, 1.0
        %v1039 = vmin.f32 %v1007, 1.0
        %v1040 = vmin.f32 %v1008, 1.0
        %v1041 = vmin.f32 %v1009, 1.0
        %v1042 = vmin.f32 %v1010, 1.0
        %v1043 = vmin.f32 %v1011, 1.0
        %v1044 = vmin.f32 %v1012, 1.0
        %v1045 = vmin.f32 %v1013, 1.0
        %v1046 = vmin.f32 %v1014, 1.0
        %v1047 = vmin.f32 %v1015, 1.0
        %v1048 = vmin.f32 %v1016, 1.0
        %v1049 = vmin.f32 %v1017, 1.0
        %v1050 = vmin.f32 %v1018, 1.0
        %v1051 = vmin.f32 %v1019, 1.0
        %v1052 = vmin.f32 %v1020, 1.0
        %v1053 = vmin.f32 %v1021, 1.0
        %v1054 = vmin.f32 %v1022, 1.0
        %v1055 = vmin.f32 %v1023, 1.0
        %v1056 = vmin.f32 %v1024, 1.0
        %v1057 = vmin.f32 %v1025, 1.0
        %v1058 = vld [vmem:[%s174 + $0x80] sm:$0xff]
        %v1059 = vld [vmem:[%s174 + $0x88] sm:$0xff]
        %v1060 = vld [vmem:[%s174 + $0x90] sm:$0xff]
        %v1061 = vld [vmem:[%s174 + $0x98] sm:$0xff]
        %v1062 = vld [vmem:[%s174 + $0xa0] sm:$0xff]
        %v1063 = vld [vmem:[%s174 + $0xa8] sm:$0xff]
        %v1064 = vld [vmem:[%s174 + $0xb0] sm:$0xff]
        %v1065 = vld [vmem:[%s174 + $0xb8] sm:$0xff]
        %v1066 = vld [vmem:[%s174 + $0xc0] sm:$0xff]
        %v1067 = vld [vmem:[%s174 + $0xc8] sm:$0xff]
        %v1068 = vld [vmem:[%s174 + $0xd0] sm:$0xff]
        %v1069 = vld [vmem:[%s174 + $0xd8] sm:$0xff]
        %v1070 = vld [vmem:[%s174 + $0xe0] sm:$0xff]
        %v1071 = vld [vmem:[%s174 + $0xe8] sm:$0xff]
        %v1072 = vld [vmem:[%s174 + $0xf0] sm:$0xff]
        %v1073 = vld [vmem:[%s174 + $0xf8] sm:$0xff]
        %v1074 = vunpack.c.l.bf16 %v1058
        %v1075 = vunpack.c.h.bf16 %v1058
        %v1076 = vunpack.c.l.bf16 %v1059
        %v1077 = vunpack.c.h.bf16 %v1059
        %v1078 = vunpack.c.l.bf16 %v1060
        %v1079 = vunpack.c.h.bf16 %v1060
        %v1080 = vunpack.c.l.bf16 %v1061
        %v1081 = vunpack.c.h.bf16 %v1061
        %v1082 = vunpack.c.l.bf16 %v1062
        %v1083 = vunpack.c.h.bf16 %v1062
        %v1084 = vunpack.c.l.bf16 %v1063
        %v1085 = vunpack.c.h.bf16 %v1063
        %v1086 = vunpack.c.l.bf16 %v1064
        %v1087 = vunpack.c.h.bf16 %v1064
        %v1088 = vunpack.c.l.bf16 %v1065
        %v1089 = vunpack.c.h.bf16 %v1065
        %v1090 = vunpack.c.l.bf16 %v1066
        %v1091 = vunpack.c.h.bf16 %v1066
        %v1092 = vunpack.c.l.bf16 %v1067
        %v1093 = vunpack.c.h.bf16 %v1067
        %v1094 = vunpack.c.l.bf16 %v1068
        %v1095 = vunpack.c.h.bf16 %v1068
        %v1096 = vunpack.c.l.bf16 %v1069
        %v1097 = vunpack.c.h.bf16 %v1069
        %v1098 = vunpack.c.l.bf16 %v1070
        %v1099 = vunpack.c.h.bf16 %v1070
        %v1100 = vunpack.c.l.bf16 %v1071
        %v1101 = vunpack.c.h.bf16 %v1071
        %v1102 = vunpack.c.l.bf16 %v1072
        %v1103 = vunpack.c.h.bf16 %v1072
        %v1104 = vunpack.c.l.bf16 %v1073
        %v1105 = vunpack.c.h.bf16 %v1073
        %v1106 = vmul.f32 %v1074, %v1026
        %v1107 = vmul.f32 %v1075, %v1027
        %v1108 = vmul.f32 %v1076, %v1028
        %v1109 = vmul.f32 %v1077, %v1029
        %v1110 = vmul.f32 %v1078, %v1030
        %v1111 = vmul.f32 %v1079, %v1031
        %v1112 = vmul.f32 %v1080, %v1032
        %v1113 = vmul.f32 %v1081, %v1033
        %v1114 = vmul.f32 %v1082, %v1034
        %v1115 = vmul.f32 %v1083, %v1035
        %v1116 = vmul.f32 %v1084, %v1036
        %v1117 = vmul.f32 %v1085, %v1037
        %v1118 = vmul.f32 %v1086, %v1038
        %v1119 = vmul.f32 %v1087, %v1039
        %v1120 = vmul.f32 %v1088, %v1040
        %v1121 = vmul.f32 %v1089, %v1041
        %v1122 = vmul.f32 %v1090, %v1042
        %v1123 = vmul.f32 %v1091, %v1043
        %v1124 = vmul.f32 %v1092, %v1044
        %v1125 = vmul.f32 %v1093, %v1045
        %v1126 = vmul.f32 %v1094, %v1046
        %v1127 = vmul.f32 %v1095, %v1047
        %v1128 = vmul.f32 %v1096, %v1048
        %v1129 = vmul.f32 %v1097, %v1049
        %v1130 = vmul.f32 %v1098, %v1050
        %v1131 = vmul.f32 %v1099, %v1051
        %v1132 = vmul.f32 %v1100, %v1052
        %v1133 = vmul.f32 %v1101, %v1053
        %v1134 = vmul.f32 %v1102, %v1054
        %v1135 = vmul.f32 %v1103, %v1055
        %v1136 = vmul.f32 %v1104, %v1056
        %v1137 = vmul.f32 %v1105, %v1057
        %v1138 = vadd.f32 %v1106, %v1122
        %v1139 = vrot.slane %v1138, 4
        %v1140 = vadd.f32 %v1138, %v1139
        %v1141 = vrot.slane %v1140, 2
        %v1142 = vadd.f32 %v1140, %v1141
        %v1143 = vrot.slane %v1142, 1
        %v1144 = vadd.f32 %v1142, %v1143
        %v1145 = vadd.f32 %v1107, %v1123
        %v1146 = vrot.slane %v1145, 4
        %v1147 = vadd.f32 %v1145, %v1146
        %v1148 = vrot.slane %v1147, 2
        %v1149 = vadd.f32 %v1147, %v1148
        %v1150 = vrot.slane %v1149, 1
        %v1151 = vadd.f32 %v1149, %v1150
        %v1152 = vadd.f32 %v1108, %v1124
        %v1153 = vrot.slane %v1152, 4
        %v1154 = vadd.f32 %v1152, %v1153
        %v1155 = vrot.slane %v1154, 2
        %v1156 = vadd.f32 %v1154, %v1155
        %v1157 = vrot.slane %v1156, 1
        %v1158 = vadd.f32 %v1156, %v1157
        %v1159 = vadd.f32 %v1109, %v1125
        %v1160 = vrot.slane %v1159, 4
        %v1161 = vadd.f32 %v1159, %v1160
        %v1162 = vrot.slane %v1161, 2
        %v1163 = vadd.f32 %v1161, %v1162
        %v1164 = vrot.slane %v1163, 1
        %v1165 = vadd.f32 %v1163, %v1164
        %v1166 = vadd.f32 %v1110, %v1126
        %v1167 = vrot.slane %v1166, 4
        %v1168 = vadd.f32 %v1166, %v1167
        %v1169 = vrot.slane %v1168, 2
        %v1170 = vadd.f32 %v1168, %v1169
        %v1171 = vrot.slane %v1170, 1
        %v1172 = vadd.f32 %v1170, %v1171
        %v1173 = vadd.f32 %v1111, %v1127
        %v1174 = vrot.slane %v1173, 4
        %v1175 = vadd.f32 %v1173, %v1174
        %v1176 = vrot.slane %v1175, 2
        %v1177 = vadd.f32 %v1175, %v1176
        %v1178 = vrot.slane %v1177, 1
        %v1179 = vadd.f32 %v1177, %v1178
        %v1180 = vadd.f32 %v1112, %v1128
        %v1181 = vrot.slane %v1180, 4
        %v1182 = vadd.f32 %v1180, %v1181
        %v1183 = vrot.slane %v1182, 2
        %v1184 = vadd.f32 %v1182, %v1183
        %v1185 = vrot.slane %v1184, 1
        %v1186 = vadd.f32 %v1184, %v1185
        %v1187 = vadd.f32 %v1113, %v1129
        %v1188 = vrot.slane %v1187, 4
        %v1189 = vadd.f32 %v1187, %v1188
        %v1190 = vrot.slane %v1189, 2
        %v1191 = vadd.f32 %v1189, %v1190
        %v1192 = vrot.slane %v1191, 1
        %v1193 = vadd.f32 %v1191, %v1192
        %v1194 = vadd.f32 %v1114, %v1130
        %v1195 = vrot.slane %v1194, 4
        %v1196 = vadd.f32 %v1194, %v1195
        %v1197 = vrot.slane %v1196, 2
        %v1198 = vadd.f32 %v1196, %v1197
        %v1199 = vrot.slane %v1198, 1
        %v1200 = vadd.f32 %v1198, %v1199
        %v1201 = vadd.f32 %v1115, %v1131
        %v1202 = vrot.slane %v1201, 4
        %v1203 = vadd.f32 %v1201, %v1202
        %v1204 = vrot.slane %v1203, 2
        %v1205 = vadd.f32 %v1203, %v1204
        %v1206 = vrot.slane %v1205, 1
        %v1207 = vadd.f32 %v1205, %v1206
        %v1208 = vadd.f32 %v1116, %v1132
        %v1209 = vrot.slane %v1208, 4
        %v1210 = vadd.f32 %v1208, %v1209
        %v1211 = vrot.slane %v1210, 2
        %v1212 = vadd.f32 %v1210, %v1211
        %v1213 = vrot.slane %v1212, 1
        %v1214 = vadd.f32 %v1212, %v1213
        %v1215 = vadd.f32 %v1117, %v1133
        %v1216 = vrot.slane %v1215, 4
        %v1217 = vadd.f32 %v1215, %v1216
        %v1218 = vrot.slane %v1217, 2
        %v1219 = vadd.f32 %v1217, %v1218
        %v1220 = vrot.slane %v1219, 1
        %v1221 = vadd.f32 %v1219, %v1220
        %v1222 = vadd.f32 %v1118, %v1134
        %v1223 = vrot.slane %v1222, 4
        %v1224 = vadd.f32 %v1222, %v1223
        %v1225 = vrot.slane %v1224, 2
        %v1226 = vadd.f32 %v1224, %v1225
        %v1227 = vrot.slane %v1226, 1
        %v1228 = vadd.f32 %v1226, %v1227
        %v1229 = vadd.f32 %v1119, %v1135
        %v1230 = vrot.slane %v1229, 4
        %v1231 = vadd.f32 %v1229, %v1230
        %v1232 = vrot.slane %v1231, 2
        %v1233 = vadd.f32 %v1231, %v1232
        %v1234 = vrot.slane %v1233, 1
        %v1235 = vadd.f32 %v1233, %v1234
        %v1236 = vadd.f32 %v1120, %v1136
        %v1237 = vrot.slane %v1236, 4
        %v1238 = vadd.f32 %v1236, %v1237
        %v1239 = vrot.slane %v1238, 2
        %v1240 = vadd.f32 %v1238, %v1239
        %v1241 = vrot.slane %v1240, 1
        %v1242 = vadd.f32 %v1240, %v1241
        %v1243 = vadd.f32 %v1121, %v1137
        %v1244 = vrot.slane %v1243, 4
        %v1245 = vadd.f32 %v1243, %v1244
        %v1246 = vrot.slane %v1245, 2
        %v1247 = vadd.f32 %v1245, %v1246
        %v1248 = vrot.slane %v1247, 1
        %v1249 = vadd.f32 %v1247, %v1248
        %v1250 = vadd.f32 %v512, %v1144
        %v1251 = vadd.f32 %v513, %v1151
        %v1252 = vadd.f32 %v514, %v1158
        %v1253 = vadd.f32 %v515, %v1165
        %v1254 = vadd.f32 %v516, %v1172
        %v1255 = vadd.f32 %v517, %v1179
        %v1256 = vadd.f32 %v518, %v1186
        %v1257 = vadd.f32 %v519, %v1193
        %v1258 = vadd.f32 %v520, %v1200
        %v1259 = vadd.f32 %v521, %v1207
        %v1260 = vadd.f32 %v522, %v1214
        %v1261 = vadd.f32 %v523, %v1221
        %v1262 = vadd.f32 %v524, %v1228
        %v1263 = vadd.f32 %v525, %v1235
        %v1264 = vadd.f32 %v526, %v1242
        %v1265 = vadd.f32 %v527, %v1249
        %v1266 = vld [vmem:[%s528 + $0x80] sm:$0xff]
        %v1267 = vld [vmem:[%s528 + $0x88] sm:$0xff]
        %v1268 = vld [vmem:[%s528 + $0x90] sm:$0xff]
        %v1269 = vld [vmem:[%s528 + $0x98] sm:$0xff]
        %v1270 = vld [vmem:[%s528 + $0xa0] sm:$0xff]
        %v1271 = vld [vmem:[%s528 + $0xa8] sm:$0xff]
        %v1272 = vld [vmem:[%s528 + $0xb0] sm:$0xff]
        %v1273 = vld [vmem:[%s528 + $0xb8] sm:$0xff]
        %v1274 = vld [vmem:[%s528 + $0xc0] sm:$0xff]
        %v1275 = vld [vmem:[%s528 + $0xc8] sm:$0xff]
        %v1276 = vld [vmem:[%s528 + $0xd0] sm:$0xff]
        %v1277 = vld [vmem:[%s528 + $0xd8] sm:$0xff]
        %v1278 = vld [vmem:[%s528 + $0xe0] sm:$0xff]
        %v1279 = vld [vmem:[%s528 + $0xe8] sm:$0xff]
        %v1280 = vld [vmem:[%s528 + $0xf0] sm:$0xff]
        %v1281 = vld [vmem:[%s528 + $0xf8] sm:$0xff]
        %v1282 = vunpack.c.l.bf16 %v1266
        %v1283 = vunpack.c.h.bf16 %v1266
        %v1284 = vunpack.c.l.bf16 %v1267
        %v1285 = vunpack.c.h.bf16 %v1267
        %v1286 = vunpack.c.l.bf16 %v1268
        %v1287 = vunpack.c.h.bf16 %v1268
        %v1288 = vunpack.c.l.bf16 %v1269
        %v1289 = vunpack.c.h.bf16 %v1269
        %v1290 = vunpack.c.l.bf16 %v1270
        %v1291 = vunpack.c.h.bf16 %v1270
        %v1292 = vunpack.c.l.bf16 %v1271
        %v1293 = vunpack.c.h.bf16 %v1271
        %v1294 = vunpack.c.l.bf16 %v1272
        %v1295 = vunpack.c.h.bf16 %v1272
        %v1296 = vunpack.c.l.bf16 %v1273
        %v1297 = vunpack.c.h.bf16 %v1273
        %v1298 = vunpack.c.l.bf16 %v1274
        %v1299 = vunpack.c.h.bf16 %v1274
        %v1300 = vunpack.c.l.bf16 %v1275
        %v1301 = vunpack.c.h.bf16 %v1275
        %v1302 = vunpack.c.l.bf16 %v1276
        %v1303 = vunpack.c.h.bf16 %v1276
        %v1304 = vunpack.c.l.bf16 %v1277
        %v1305 = vunpack.c.h.bf16 %v1277
        %v1306 = vunpack.c.l.bf16 %v1278
        %v1307 = vunpack.c.h.bf16 %v1278
        %v1308 = vunpack.c.l.bf16 %v1279
        %v1309 = vunpack.c.h.bf16 %v1279
        %v1310 = vunpack.c.l.bf16 %v1280
        %v1311 = vunpack.c.h.bf16 %v1280
        %v1312 = vunpack.c.l.bf16 %v1281
        %v1313 = vunpack.c.h.bf16 %v1281
        %v1314 = vmul.f32 %v1282, %v1026
        %v1315 = vmul.f32 %v1283, %v1027
        %v1316 = vmul.f32 %v1284, %v1028
        %v1317 = vmul.f32 %v1285, %v1029
        %v1318 = vmul.f32 %v1286, %v1030
        %v1319 = vmul.f32 %v1287, %v1031
        %v1320 = vmul.f32 %v1288, %v1032
        %v1321 = vmul.f32 %v1289, %v1033
        %v1322 = vmul.f32 %v1290, %v1034
        %v1323 = vmul.f32 %v1291, %v1035
        %v1324 = vmul.f32 %v1292, %v1036
        %v1325 = vmul.f32 %v1293, %v1037
        %v1326 = vmul.f32 %v1294, %v1038
        %v1327 = vmul.f32 %v1295, %v1039
        %v1328 = vmul.f32 %v1296, %v1040
        %v1329 = vmul.f32 %v1297, %v1041
        %v1330 = vmul.f32 %v1298, %v1042
        %v1331 = vmul.f32 %v1299, %v1043
        %v1332 = vmul.f32 %v1300, %v1044
        %v1333 = vmul.f32 %v1301, %v1045
        %v1334 = vmul.f32 %v1302, %v1046
        %v1335 = vmul.f32 %v1303, %v1047
        %v1336 = vmul.f32 %v1304, %v1048
        %v1337 = vmul.f32 %v1305, %v1049
        %v1338 = vmul.f32 %v1306, %v1050
        %v1339 = vmul.f32 %v1307, %v1051
        %v1340 = vmul.f32 %v1308, %v1052
        %v1341 = vmul.f32 %v1309, %v1053
        %v1342 = vmul.f32 %v1310, %v1054
        %v1343 = vmul.f32 %v1311, %v1055
        %v1344 = vmul.f32 %v1312, %v1056
        %v1345 = vmul.f32 %v1313, %v1057
        %v1346 = vadd.f32 %v1314, %v1330
        %v1347 = vrot.slane %v1346, 4
        %v1348 = vadd.f32 %v1346, %v1347
        %v1349 = vrot.slane %v1348, 2
        %v1350 = vadd.f32 %v1348, %v1349
        %v1351 = vrot.slane %v1350, 1
        %v1352 = vadd.f32 %v1350, %v1351
        %v1353 = vadd.f32 %v1315, %v1331
        %v1354 = vrot.slane %v1353, 4
        %v1355 = vadd.f32 %v1353, %v1354
        %v1356 = vrot.slane %v1355, 2
        %v1357 = vadd.f32 %v1355, %v1356
        %v1358 = vrot.slane %v1357, 1
        %v1359 = vadd.f32 %v1357, %v1358
        %v1360 = vadd.f32 %v1316, %v1332
        %v1361 = vrot.slane %v1360, 4
        %v1362 = vadd.f32 %v1360, %v1361
        %v1363 = vrot.slane %v1362, 2
        %v1364 = vadd.f32 %v1362, %v1363
        %v1365 = vrot.slane %v1364, 1
        %v1366 = vadd.f32 %v1364, %v1365
        %v1367 = vadd.f32 %v1317, %v1333
        %v1368 = vrot.slane %v1367, 4
        %v1369 = vadd.f32 %v1367, %v1368
        %v1370 = vrot.slane %v1369, 2
        %v1371 = vadd.f32 %v1369, %v1370
        %v1372 = vrot.slane %v1371, 1
        %v1373 = vadd.f32 %v1371, %v1372
        %v1374 = vadd.f32 %v1318, %v1334
        %v1375 = vrot.slane %v1374, 4
        %v1376 = vadd.f32 %v1374, %v1375
        %v1377 = vrot.slane %v1376, 2
        %v1378 = vadd.f32 %v1376, %v1377
        %v1379 = vrot.slane %v1378, 1
        %v1380 = vadd.f32 %v1378, %v1379
        %v1381 = vadd.f32 %v1319, %v1335
        %v1382 = vrot.slane %v1381, 4
        %v1383 = vadd.f32 %v1381, %v1382
        %v1384 = vrot.slane %v1383, 2
        %v1385 = vadd.f32 %v1383, %v1384
        %v1386 = vrot.slane %v1385, 1
        %v1387 = vadd.f32 %v1385, %v1386
        %v1388 = vadd.f32 %v1320, %v1336
        %v1389 = vrot.slane %v1388, 4
        %v1390 = vadd.f32 %v1388, %v1389
        %v1391 = vrot.slane %v1390, 2
        %v1392 = vadd.f32 %v1390, %v1391
        %v1393 = vrot.slane %v1392, 1
        %v1394 = vadd.f32 %v1392, %v1393
        %v1395 = vadd.f32 %v1321, %v1337
        %v1396 = vrot.slane %v1395, 4
        %v1397 = vadd.f32 %v1395, %v1396
        %v1398 = vrot.slane %v1397, 2
        %v1399 = vadd.f32 %v1397, %v1398
        %v1400 = vrot.slane %v1399, 1
        %v1401 = vadd.f32 %v1399, %v1400
        %v1402 = vadd.f32 %v1322, %v1338
        %v1403 = vrot.slane %v1402, 4
        %v1404 = vadd.f32 %v1402, %v1403
        %v1405 = vrot.slane %v1404, 2
        %v1406 = vadd.f32 %v1404, %v1405
        %v1407 = vrot.slane %v1406, 1
        %v1408 = vadd.f32 %v1406, %v1407
        %v1409 = vadd.f32 %v1323, %v1339
        %v1410 = vrot.slane %v1409, 4
        %v1411 = vadd.f32 %v1409, %v1410
        %v1412 = vrot.slane %v1411, 2
        %v1413 = vadd.f32 %v1411, %v1412
        %v1414 = vrot.slane %v1413, 1
        %v1415 = vadd.f32 %v1413, %v1414
        %v1416 = vadd.f32 %v1324, %v1340
        %v1417 = vrot.slane %v1416, 4
        %v1418 = vadd.f32 %v1416, %v1417
        %v1419 = vrot.slane %v1418, 2
        %v1420 = vadd.f32 %v1418, %v1419
        %v1421 = vrot.slane %v1420, 1
        %v1422 = vadd.f32 %v1420, %v1421
        %v1423 = vadd.f32 %v1325, %v1341
        %v1424 = vrot.slane %v1423, 4
        %v1425 = vadd.f32 %v1423, %v1424
        %v1426 = vrot.slane %v1425, 2
        %v1427 = vadd.f32 %v1425, %v1426
        %v1428 = vrot.slane %v1427, 1
        %v1429 = vadd.f32 %v1427, %v1428
        %v1430 = vadd.f32 %v1326, %v1342
        %v1431 = vrot.slane %v1430, 4
        %v1432 = vadd.f32 %v1430, %v1431
        %v1433 = vrot.slane %v1432, 2
        %v1434 = vadd.f32 %v1432, %v1433
        %v1435 = vrot.slane %v1434, 1
        %v1436 = vadd.f32 %v1434, %v1435
        %v1437 = vadd.f32 %v1327, %v1343
        %v1438 = vrot.slane %v1437, 4
        %v1439 = vadd.f32 %v1437, %v1438
        %v1440 = vrot.slane %v1439, 2
        %v1441 = vadd.f32 %v1439, %v1440
        %v1442 = vrot.slane %v1441, 1
        %v1443 = vadd.f32 %v1441, %v1442
        %v1444 = vadd.f32 %v1328, %v1344
        %v1445 = vrot.slane %v1444, 4
        %v1446 = vadd.f32 %v1444, %v1445
        %v1447 = vrot.slane %v1446, 2
        %v1448 = vadd.f32 %v1446, %v1447
        %v1449 = vrot.slane %v1448, 1
        %v1450 = vadd.f32 %v1448, %v1449
        %v1451 = vadd.f32 %v1329, %v1345
        %v1452 = vrot.slane %v1451, 4
        %v1453 = vadd.f32 %v1451, %v1452
        %v1454 = vrot.slane %v1453, 2
        %v1455 = vadd.f32 %v1453, %v1454
        %v1456 = vrot.slane %v1455, 1
        %v1457 = vadd.f32 %v1455, %v1456
        %v1458 = vadd.f32 %v721, %v1352
        %v1459 = vadd.f32 %v722, %v1359
        %v1460 = vadd.f32 %v723, %v1366
        %v1461 = vadd.f32 %v724, %v1373
        %v1462 = vadd.f32 %v725, %v1380
        %v1463 = vadd.f32 %v726, %v1387
        %v1464 = vadd.f32 %v727, %v1394
        %v1465 = vadd.f32 %v728, %v1401
        %v1466 = vadd.f32 %v729, %v1408
        %v1467 = vadd.f32 %v730, %v1415
        %v1468 = vadd.f32 %v731, %v1422
        %v1469 = vadd.f32 %v732, %v1429
        %v1470 = vadd.f32 %v733, %v1436
        %v1471 = vadd.f32 %v734, %v1443
        %v1472 = vadd.f32 %v735, %v1450
        %v1473 = vadd.f32 %v736, %v1457
        %v1474 = vld [vmem:[%s737 + $0x80] sm:$0xff]
        %v1475 = vld [vmem:[%s737 + $0x88] sm:$0xff]
        %v1476 = vld [vmem:[%s737 + $0x90] sm:$0xff]
        %v1477 = vld [vmem:[%s737 + $0x98] sm:$0xff]
        %v1478 = vld [vmem:[%s737 + $0xa0] sm:$0xff]
        %v1479 = vld [vmem:[%s737 + $0xa8] sm:$0xff]
        %v1480 = vld [vmem:[%s737 + $0xb0] sm:$0xff]
        %v1481 = vld [vmem:[%s737 + $0xb8] sm:$0xff]
        %v1482 = vld [vmem:[%s737 + $0xc0] sm:$0xff]
        %v1483 = vld [vmem:[%s737 + $0xc8] sm:$0xff]
        %v1484 = vld [vmem:[%s737 + $0xd0] sm:$0xff]
        %v1485 = vld [vmem:[%s737 + $0xd8] sm:$0xff]
        %v1486 = vld [vmem:[%s737 + $0xe0] sm:$0xff]
        %v1487 = vld [vmem:[%s737 + $0xe8] sm:$0xff]
        %v1488 = vld [vmem:[%s737 + $0xf0] sm:$0xff]
        %v1489 = vld [vmem:[%s737 + $0xf8] sm:$0xff]
        %v1490 = vunpack.c.l.bf16 %v1474
        %v1491 = vunpack.c.h.bf16 %v1474
        %v1492 = vunpack.c.l.bf16 %v1475
        %v1493 = vunpack.c.h.bf16 %v1475
        %v1494 = vunpack.c.l.bf16 %v1476
        %v1495 = vunpack.c.h.bf16 %v1476
        %v1496 = vunpack.c.l.bf16 %v1477
        %v1497 = vunpack.c.h.bf16 %v1477
        %v1498 = vunpack.c.l.bf16 %v1478
        %v1499 = vunpack.c.h.bf16 %v1478
        %v1500 = vunpack.c.l.bf16 %v1479
        %v1501 = vunpack.c.h.bf16 %v1479
        %v1502 = vunpack.c.l.bf16 %v1480
        %v1503 = vunpack.c.h.bf16 %v1480
        %v1504 = vunpack.c.l.bf16 %v1481
        %v1505 = vunpack.c.h.bf16 %v1481
        %v1506 = vunpack.c.l.bf16 %v1482
        %v1507 = vunpack.c.h.bf16 %v1482
        %v1508 = vunpack.c.l.bf16 %v1483
        %v1509 = vunpack.c.h.bf16 %v1483
        %v1510 = vunpack.c.l.bf16 %v1484
        %v1511 = vunpack.c.h.bf16 %v1484
        %v1512 = vunpack.c.l.bf16 %v1485
        %v1513 = vunpack.c.h.bf16 %v1485
        %v1514 = vunpack.c.l.bf16 %v1486
        %v1515 = vunpack.c.h.bf16 %v1486
        %v1516 = vunpack.c.l.bf16 %v1487
        %v1517 = vunpack.c.h.bf16 %v1487
        %v1518 = vunpack.c.l.bf16 %v1488
        %v1519 = vunpack.c.h.bf16 %v1488
        %v1520 = vunpack.c.l.bf16 %v1489
        %v1521 = vunpack.c.h.bf16 %v1489
        %v1522 = vmul.f32 %v1490, %v1026
        %v1523 = vmul.f32 %v1491, %v1027
        %v1524 = vmul.f32 %v1492, %v1028
        %v1525 = vmul.f32 %v1493, %v1029
        %v1526 = vmul.f32 %v1494, %v1030
        %v1527 = vmul.f32 %v1495, %v1031
        %v1528 = vmul.f32 %v1496, %v1032
        %v1529 = vmul.f32 %v1497, %v1033
        %v1530 = vmul.f32 %v1498, %v1034
        %v1531 = vmul.f32 %v1499, %v1035
        %v1532 = vmul.f32 %v1500, %v1036
        %v1533 = vmul.f32 %v1501, %v1037
        %v1534 = vmul.f32 %v1502, %v1038
        %v1535 = vmul.f32 %v1503, %v1039
        %v1536 = vmul.f32 %v1504, %v1040
        %v1537 = vmul.f32 %v1505, %v1041
        %v1538 = vmul.f32 %v1506, %v1042
        %v1539 = vmul.f32 %v1507, %v1043
        %v1540 = vmul.f32 %v1508, %v1044
        %v1541 = vmul.f32 %v1509, %v1045
        %v1542 = vmul.f32 %v1510, %v1046
        %v1543 = vmul.f32 %v1511, %v1047
        %v1544 = vmul.f32 %v1512, %v1048
        %v1545 = vmul.f32 %v1513, %v1049
        %v1546 = vmul.f32 %v1514, %v1050
        %v1547 = vmul.f32 %v1515, %v1051
        %v1548 = vmul.f32 %v1516, %v1052
        %v1549 = vmul.f32 %v1517, %v1053
        %v1550 = vmul.f32 %v1518, %v1054
        %v1551 = vmul.f32 %v1519, %v1055
        %v1552 = vmul.f32 %v1520, %v1056
        %v1553 = vmul.f32 %v1521, %v1057
        %v1554 = vadd.f32 %v1522, %v1538
        %v1555 = vrot.slane %v1554, 4
        %v1556 = vadd.f32 %v1554, %v1555
        %v1557 = vrot.slane %v1556, 2
        %v1558 = vadd.f32 %v1556, %v1557
        %v1559 = vrot.slane %v1558, 1
        %v1560 = vadd.f32 %v1558, %v1559
        %v1561 = vadd.f32 %v1523, %v1539
        %v1562 = vrot.slane %v1561, 4
        %v1563 = vadd.f32 %v1561, %v1562
        %v1564 = vrot.slane %v1563, 2
        %v1565 = vadd.f32 %v1563, %v1564
        %v1566 = vrot.slane %v1565, 1
        %v1567 = vadd.f32 %v1565, %v1566
        %v1568 = vadd.f32 %v1524, %v1540
        %v1569 = vrot.slane %v1568, 4
        %v1570 = vadd.f32 %v1568, %v1569
        %v1571 = vrot.slane %v1570, 2
        %v1572 = vadd.f32 %v1570, %v1571
        %v1573 = vrot.slane %v1572, 1
        %v1574 = vadd.f32 %v1572, %v1573
        %v1575 = vadd.f32 %v1525, %v1541
        %v1576 = vrot.slane %v1575, 4
        %v1577 = vadd.f32 %v1575, %v1576
        %v1578 = vrot.slane %v1577, 2
        %v1579 = vadd.f32 %v1577, %v1578
        %v1580 = vrot.slane %v1579, 1
        %v1581 = vadd.f32 %v1579, %v1580
        %v1582 = vadd.f32 %v1526, %v1542
        %v1583 = vrot.slane %v1582, 4
        %v1584 = vadd.f32 %v1582, %v1583
        %v1585 = vrot.slane %v1584, 2
        %v1586 = vadd.f32 %v1584, %v1585
        %v1587 = vrot.slane %v1586, 1
        %v1588 = vadd.f32 %v1586, %v1587
        %v1589 = vadd.f32 %v1527, %v1543
        %v1590 = vrot.slane %v1589, 4
        %v1591 = vadd.f32 %v1589, %v1590
        %v1592 = vrot.slane %v1591, 2
        %v1593 = vadd.f32 %v1591, %v1592
        %v1594 = vrot.slane %v1593, 1
        %v1595 = vadd.f32 %v1593, %v1594
        %v1596 = vadd.f32 %v1528, %v1544
        %v1597 = vrot.slane %v1596, 4
        %v1598 = vadd.f32 %v1596, %v1597
        %v1599 = vrot.slane %v1598, 2
        %v1600 = vadd.f32 %v1598, %v1599
        %v1601 = vrot.slane %v1600, 1
        %v1602 = vadd.f32 %v1600, %v1601
        %v1603 = vadd.f32 %v1529, %v1545
        %v1604 = vrot.slane %v1603, 4
        %v1605 = vadd.f32 %v1603, %v1604
        %v1606 = vrot.slane %v1605, 2
        %v1607 = vadd.f32 %v1605, %v1606
        %v1608 = vrot.slane %v1607, 1
        %v1609 = vadd.f32 %v1607, %v1608
        %v1610 = vadd.f32 %v1530, %v1546
        %v1611 = vrot.slane %v1610, 4
        %v1612 = vadd.f32 %v1610, %v1611
        %v1613 = vrot.slane %v1612, 2
        %v1614 = vadd.f32 %v1612, %v1613
        %v1615 = vrot.slane %v1614, 1
        %v1616 = vadd.f32 %v1614, %v1615
        %v1617 = vadd.f32 %v1531, %v1547
        %v1618 = vrot.slane %v1617, 4
        %v1619 = vadd.f32 %v1617, %v1618
        %v1620 = vrot.slane %v1619, 2
        %v1621 = vadd.f32 %v1619, %v1620
        %v1622 = vrot.slane %v1621, 1
        %v1623 = vadd.f32 %v1621, %v1622
        %v1624 = vadd.f32 %v1532, %v1548
        %v1625 = vrot.slane %v1624, 4
        %v1626 = vadd.f32 %v1624, %v1625
        %v1627 = vrot.slane %v1626, 2
        %v1628 = vadd.f32 %v1626, %v1627
        %v1629 = vrot.slane %v1628, 1
        %v1630 = vadd.f32 %v1628, %v1629
        %v1631 = vadd.f32 %v1533, %v1549
        %v1632 = vrot.slane %v1631, 4
        %v1633 = vadd.f32 %v1631, %v1632
        %v1634 = vrot.slane %v1633, 2
        %v1635 = vadd.f32 %v1633, %v1634
        %v1636 = vrot.slane %v1635, 1
        %v1637 = vadd.f32 %v1635, %v1636
        %v1638 = vadd.f32 %v1534, %v1550
        %v1639 = vrot.slane %v1638, 4
        %v1640 = vadd.f32 %v1638, %v1639
        %v1641 = vrot.slane %v1640, 2
        %v1642 = vadd.f32 %v1640, %v1641
        %v1643 = vrot.slane %v1642, 1
        %v1644 = vadd.f32 %v1642, %v1643
        %v1645 = vadd.f32 %v1535, %v1551
        %v1646 = vrot.slane %v1645, 4
        %v1647 = vadd.f32 %v1645, %v1646
        %v1648 = vrot.slane %v1647, 2
        %v1649 = vadd.f32 %v1647, %v1648
        %v1650 = vrot.slane %v1649, 1
        %v1651 = vadd.f32 %v1649, %v1650
        %v1652 = vadd.f32 %v1536, %v1552
        %v1653 = vrot.slane %v1652, 4
        %v1654 = vadd.f32 %v1652, %v1653
        %v1655 = vrot.slane %v1654, 2
        %v1656 = vadd.f32 %v1654, %v1655
        %v1657 = vrot.slane %v1656, 1
        %v1658 = vadd.f32 %v1656, %v1657
        %v1659 = vadd.f32 %v1537, %v1553
        %v1660 = vrot.slane %v1659, 4
        %v1661 = vadd.f32 %v1659, %v1660
        %v1662 = vrot.slane %v1661, 2
        %v1663 = vadd.f32 %v1661, %v1662
        %v1664 = vrot.slane %v1663, 1
        %v1665 = vadd.f32 %v1663, %v1664
        %v1666 = vadd.f32 %v930, %v1560
        %v1667 = vadd.f32 %v931, %v1567
        %v1668 = vadd.f32 %v932, %v1574
        %v1669 = vadd.f32 %v933, %v1581
        %v1670 = vadd.f32 %v934, %v1588
        %v1671 = vadd.f32 %v935, %v1595
        %v1672 = vadd.f32 %v936, %v1602
        %v1673 = vadd.f32 %v937, %v1609
        %v1674 = vadd.f32 %v938, %v1616
        %v1675 = vadd.f32 %v939, %v1623
        %v1676 = vadd.f32 %v940, %v1630
        %v1677 = vadd.f32 %v941, %v1637
        %v1678 = vadd.f32 %v942, %v1644
        %v1679 = vadd.f32 %v943, %v1651
        %v1680 = vadd.f32 %v944, %v1658
        %v1681 = vadd.f32 %v945, %v1665
        %v1682 = vld [vmem:[%s207 + $0x100] sm:$0xff]
        %v1683 = vld [vmem:[%s207 + $0x108] sm:$0xff]
        %v1684 = vld [vmem:[%s207 + $0x110] sm:$0xff]
        %v1685 = vld [vmem:[%s207 + $0x118] sm:$0xff]
        %v1686 = vld [vmem:[%s207 + $0x120] sm:$0xff]
        %v1687 = vld [vmem:[%s207 + $0x128] sm:$0xff]
        %v1688 = vld [vmem:[%s207 + $0x130] sm:$0xff]
        %v1689 = vld [vmem:[%s207 + $0x138] sm:$0xff]
        %v1690 = vld [vmem:[%s207 + $0x140] sm:$0xff]
        %v1691 = vld [vmem:[%s207 + $0x148] sm:$0xff]
        %v1692 = vld [vmem:[%s207 + $0x150] sm:$0xff]
        %v1693 = vld [vmem:[%s207 + $0x158] sm:$0xff]
        %v1694 = vld [vmem:[%s207 + $0x160] sm:$0xff]
        %v1695 = vld [vmem:[%s207 + $0x168] sm:$0xff]
        %v1696 = vld [vmem:[%s207 + $0x170] sm:$0xff]
        %v1697 = vld [vmem:[%s207 + $0x178] sm:$0xff]
        %v1698 = vunpack.c.l.bf16 %v1682
        %v1699 = vunpack.c.h.bf16 %v1682
        %v1700 = vunpack.c.l.bf16 %v1683
        %v1701 = vunpack.c.h.bf16 %v1683
        %v1702 = vunpack.c.l.bf16 %v1684
        %v1703 = vunpack.c.h.bf16 %v1684
        %v1704 = vunpack.c.l.bf16 %v1685
        %v1705 = vunpack.c.h.bf16 %v1685
        %v1706 = vunpack.c.l.bf16 %v1686
        %v1707 = vunpack.c.h.bf16 %v1686
        %v1708 = vunpack.c.l.bf16 %v1687
        %v1709 = vunpack.c.h.bf16 %v1687
        %v1710 = vunpack.c.l.bf16 %v1688
        %v1711 = vunpack.c.h.bf16 %v1688
        %v1712 = vunpack.c.l.bf16 %v1689
        %v1713 = vunpack.c.h.bf16 %v1689
        %v1714 = vunpack.c.l.bf16 %v1690
        %v1715 = vunpack.c.h.bf16 %v1690
        %v1716 = vunpack.c.l.bf16 %v1691
        %v1717 = vunpack.c.h.bf16 %v1691
        %v1718 = vunpack.c.l.bf16 %v1692
        %v1719 = vunpack.c.h.bf16 %v1692
        %v1720 = vunpack.c.l.bf16 %v1693
        %v1721 = vunpack.c.h.bf16 %v1693
        %v1722 = vunpack.c.l.bf16 %v1694
        %v1723 = vunpack.c.h.bf16 %v1694
        %v1724 = vunpack.c.l.bf16 %v1695
        %v1725 = vunpack.c.h.bf16 %v1695
        %v1726 = vunpack.c.l.bf16 %v1696
        %v1727 = vunpack.c.h.bf16 %v1696
        %v1728 = vunpack.c.l.bf16 %v1697
        %v1729 = vunpack.c.h.bf16 %v1697
        %v1730 = vmax.f32 %v1698, 0.0
        %v1731 = vmax.f32 %v1699, 0.0
        %v1732 = vmax.f32 %v1700, 0.0
        %v1733 = vmax.f32 %v1701, 0.0
        %v1734 = vmax.f32 %v1702, 0.0
        %v1735 = vmax.f32 %v1703, 0.0
        %v1736 = vmax.f32 %v1704, 0.0
        %v1737 = vmax.f32 %v1705, 0.0
        %v1738 = vmax.f32 %v1706, 0.0
        %v1739 = vmax.f32 %v1707, 0.0
        %v1740 = vmax.f32 %v1708, 0.0
        %v1741 = vmax.f32 %v1709, 0.0
        %v1742 = vmax.f32 %v1710, 0.0
        %v1743 = vmax.f32 %v1711, 0.0
        %v1744 = vmax.f32 %v1712, 0.0
        %v1745 = vmax.f32 %v1713, 0.0
        %v1746 = vmax.f32 %v1714, 0.0
        %v1747 = vmax.f32 %v1715, 0.0
        %v1748 = vmax.f32 %v1716, 0.0
        %v1749 = vmax.f32 %v1717, 0.0
        %v1750 = vmax.f32 %v1718, 0.0
        %v1751 = vmax.f32 %v1719, 0.0
        %v1752 = vmax.f32 %v1720, 0.0
        %v1753 = vmax.f32 %v1721, 0.0
        %v1754 = vmax.f32 %v1722, 0.0
        %v1755 = vmax.f32 %v1723, 0.0
        %v1756 = vmax.f32 %v1724, 0.0
        %v1757 = vmax.f32 %v1725, 0.0
        %v1758 = vmax.f32 %v1726, 0.0
        %v1759 = vmax.f32 %v1727, 0.0
        %v1760 = vmax.f32 %v1728, 0.0
        %v1761 = vmax.f32 %v1729, 0.0
        %v1762 = vmin.f32 %v1730, 1.0
        %v1763 = vmin.f32 %v1731, 1.0
        %v1764 = vmin.f32 %v1732, 1.0
        %v1765 = vmin.f32 %v1733, 1.0
        %v1766 = vmin.f32 %v1734, 1.0
        %v1767 = vmin.f32 %v1735, 1.0
        %v1768 = vmin.f32 %v1736, 1.0
        %v1769 = vmin.f32 %v1737, 1.0
        %v1770 = vmin.f32 %v1738, 1.0
        %v1771 = vmin.f32 %v1739, 1.0
        %v1772 = vmin.f32 %v1740, 1.0
        %v1773 = vmin.f32 %v1741, 1.0
        %v1774 = vmin.f32 %v1742, 1.0
        %v1775 = vmin.f32 %v1743, 1.0
        %v1776 = vmin.f32 %v1744, 1.0
        %v1777 = vmin.f32 %v1745, 1.0
        %v1778 = vmin.f32 %v1746, 1.0
        %v1779 = vmin.f32 %v1747, 1.0
        %v1780 = vmin.f32 %v1748, 1.0
        %v1781 = vmin.f32 %v1749, 1.0
        %v1782 = vmin.f32 %v1750, 1.0
        %v1783 = vmin.f32 %v1751, 1.0
        %v1784 = vmin.f32 %v1752, 1.0
        %v1785 = vmin.f32 %v1753, 1.0
        %v1786 = vmin.f32 %v1754, 1.0
        %v1787 = vmin.f32 %v1755, 1.0
        %v1788 = vmin.f32 %v1756, 1.0
        %v1789 = vmin.f32 %v1757, 1.0
        %v1790 = vmin.f32 %v1758, 1.0
        %v1791 = vmin.f32 %v1759, 1.0
        %v1792 = vmin.f32 %v1760, 1.0
        %v1793 = vmin.f32 %v1761, 1.0
        %v1794 = vld [vmem:[%s174 + $0x100] sm:$0xff]
        %v1795 = vld [vmem:[%s174 + $0x108] sm:$0xff]
        %v1796 = vld [vmem:[%s174 + $0x110] sm:$0xff]
        %v1797 = vld [vmem:[%s174 + $0x118] sm:$0xff]
        %v1798 = vld [vmem:[%s174 + $0x120] sm:$0xff]
        %v1799 = vld [vmem:[%s174 + $0x128] sm:$0xff]
        %v1800 = vld [vmem:[%s174 + $0x130] sm:$0xff]
        %v1801 = vld [vmem:[%s174 + $0x138] sm:$0xff]
        %v1802 = vld [vmem:[%s174 + $0x140] sm:$0xff]
        %v1803 = vld [vmem:[%s174 + $0x148] sm:$0xff]
        %v1804 = vld [vmem:[%s174 + $0x150] sm:$0xff]
        %v1805 = vld [vmem:[%s174 + $0x158] sm:$0xff]
        %v1806 = vld [vmem:[%s174 + $0x160] sm:$0xff]
        %v1807 = vld [vmem:[%s174 + $0x168] sm:$0xff]
        %v1808 = vld [vmem:[%s174 + $0x170] sm:$0xff]
        %v1809 = vld [vmem:[%s174 + $0x178] sm:$0xff]
        %v1810 = vunpack.c.l.bf16 %v1794
        %v1811 = vunpack.c.h.bf16 %v1794
        %v1812 = vunpack.c.l.bf16 %v1795
        %v1813 = vunpack.c.h.bf16 %v1795
        %v1814 = vunpack.c.l.bf16 %v1796
        %v1815 = vunpack.c.h.bf16 %v1796
        %v1816 = vunpack.c.l.bf16 %v1797
        %v1817 = vunpack.c.h.bf16 %v1797
        %v1818 = vunpack.c.l.bf16 %v1798
        %v1819 = vunpack.c.h.bf16 %v1798
        %v1820 = vunpack.c.l.bf16 %v1799
        %v1821 = vunpack.c.h.bf16 %v1799
        %v1822 = vunpack.c.l.bf16 %v1800
        %v1823 = vunpack.c.h.bf16 %v1800
        %v1824 = vunpack.c.l.bf16 %v1801
        %v1825 = vunpack.c.h.bf16 %v1801
        %v1826 = vunpack.c.l.bf16 %v1802
        %v1827 = vunpack.c.h.bf16 %v1802
        %v1828 = vunpack.c.l.bf16 %v1803
        %v1829 = vunpack.c.h.bf16 %v1803
        %v1830 = vunpack.c.l.bf16 %v1804
        %v1831 = vunpack.c.h.bf16 %v1804
        %v1832 = vunpack.c.l.bf16 %v1805
        %v1833 = vunpack.c.h.bf16 %v1805
        %v1834 = vunpack.c.l.bf16 %v1806
        %v1835 = vunpack.c.h.bf16 %v1806
        %v1836 = vunpack.c.l.bf16 %v1807
        %v1837 = vunpack.c.h.bf16 %v1807
        %v1838 = vunpack.c.l.bf16 %v1808
        %v1839 = vunpack.c.h.bf16 %v1808
        %v1840 = vunpack.c.l.bf16 %v1809
        %v1841 = vunpack.c.h.bf16 %v1809
        %v1842 = vmul.f32 %v1810, %v1762
        %v1843 = vmul.f32 %v1811, %v1763
        %v1844 = vmul.f32 %v1812, %v1764
        %v1845 = vmul.f32 %v1813, %v1765
        %v1846 = vmul.f32 %v1814, %v1766
        %v1847 = vmul.f32 %v1815, %v1767
        %v1848 = vmul.f32 %v1816, %v1768
        %v1849 = vmul.f32 %v1817, %v1769
        %v1850 = vmul.f32 %v1818, %v1770
        %v1851 = vmul.f32 %v1819, %v1771
        %v1852 = vmul.f32 %v1820, %v1772
        %v1853 = vmul.f32 %v1821, %v1773
        %v1854 = vmul.f32 %v1822, %v1774
        %v1855 = vmul.f32 %v1823, %v1775
        %v1856 = vmul.f32 %v1824, %v1776
        %v1857 = vmul.f32 %v1825, %v1777
        %v1858 = vmul.f32 %v1826, %v1778
        %v1859 = vmul.f32 %v1827, %v1779
        %v1860 = vmul.f32 %v1828, %v1780
        %v1861 = vmul.f32 %v1829, %v1781
        %v1862 = vmul.f32 %v1830, %v1782
        %v1863 = vmul.f32 %v1831, %v1783
        %v1864 = vmul.f32 %v1832, %v1784
        %v1865 = vmul.f32 %v1833, %v1785
        %v1866 = vmul.f32 %v1834, %v1786
        %v1867 = vmul.f32 %v1835, %v1787
        %v1868 = vmul.f32 %v1836, %v1788
        %v1869 = vmul.f32 %v1837, %v1789
        %v1870 = vmul.f32 %v1838, %v1790
        %v1871 = vmul.f32 %v1839, %v1791
        %v1872 = vmul.f32 %v1840, %v1792
        %v1873 = vmul.f32 %v1841, %v1793
        %v1874 = vadd.f32 %v1842, %v1858
        %v1875 = vrot.slane %v1874, 4
        %v1876 = vadd.f32 %v1874, %v1875
        %v1877 = vrot.slane %v1876, 2
        %v1878 = vadd.f32 %v1876, %v1877
        %v1879 = vrot.slane %v1878, 1
        %v1880 = vadd.f32 %v1878, %v1879
        %v1881 = vadd.f32 %v1843, %v1859
        %v1882 = vrot.slane %v1881, 4
        %v1883 = vadd.f32 %v1881, %v1882
        %v1884 = vrot.slane %v1883, 2
        %v1885 = vadd.f32 %v1883, %v1884
        %v1886 = vrot.slane %v1885, 1
        %v1887 = vadd.f32 %v1885, %v1886
        %v1888 = vadd.f32 %v1844, %v1860
        %v1889 = vrot.slane %v1888, 4
        %v1890 = vadd.f32 %v1888, %v1889
        %v1891 = vrot.slane %v1890, 2
        %v1892 = vadd.f32 %v1890, %v1891
        %v1893 = vrot.slane %v1892, 1
        %v1894 = vadd.f32 %v1892, %v1893
        %v1895 = vadd.f32 %v1845, %v1861
        %v1896 = vrot.slane %v1895, 4
        %v1897 = vadd.f32 %v1895, %v1896
        %v1898 = vrot.slane %v1897, 2
        %v1899 = vadd.f32 %v1897, %v1898
        %v1900 = vrot.slane %v1899, 1
        %v1901 = vadd.f32 %v1899, %v1900
        %v1902 = vadd.f32 %v1846, %v1862
        %v1903 = vrot.slane %v1902, 4
        %v1904 = vadd.f32 %v1902, %v1903
        %v1905 = vrot.slane %v1904, 2
        %v1906 = vadd.f32 %v1904, %v1905
        %v1907 = vrot.slane %v1906, 1
        %v1908 = vadd.f32 %v1906, %v1907
        %v1909 = vadd.f32 %v1847, %v1863
        %v1910 = vrot.slane %v1909, 4
        %v1911 = vadd.f32 %v1909, %v1910
        %v1912 = vrot.slane %v1911, 2
        %v1913 = vadd.f32 %v1911, %v1912
        %v1914 = vrot.slane %v1913, 1
        %v1915 = vadd.f32 %v1913, %v1914
        %v1916 = vadd.f32 %v1848, %v1864
        %v1917 = vrot.slane %v1916, 4
        %v1918 = vadd.f32 %v1916, %v1917
        %v1919 = vrot.slane %v1918, 2
        %v1920 = vadd.f32 %v1918, %v1919
        %v1921 = vrot.slane %v1920, 1
        %v1922 = vadd.f32 %v1920, %v1921
        %v1923 = vadd.f32 %v1849, %v1865
        %v1924 = vrot.slane %v1923, 4
        %v1925 = vadd.f32 %v1923, %v1924
        %v1926 = vrot.slane %v1925, 2
        %v1927 = vadd.f32 %v1925, %v1926
        %v1928 = vrot.slane %v1927, 1
        %v1929 = vadd.f32 %v1927, %v1928
        %v1930 = vadd.f32 %v1850, %v1866
        %v1931 = vrot.slane %v1930, 4
        %v1932 = vadd.f32 %v1930, %v1931
        %v1933 = vrot.slane %v1932, 2
        %v1934 = vadd.f32 %v1932, %v1933
        %v1935 = vrot.slane %v1934, 1
        %v1936 = vadd.f32 %v1934, %v1935
        %v1937 = vadd.f32 %v1851, %v1867
        %v1938 = vrot.slane %v1937, 4
        %v1939 = vadd.f32 %v1937, %v1938
        %v1940 = vrot.slane %v1939, 2
        %v1941 = vadd.f32 %v1939, %v1940
        %v1942 = vrot.slane %v1941, 1
        %v1943 = vadd.f32 %v1941, %v1942
        %v1944 = vadd.f32 %v1852, %v1868
        %v1945 = vrot.slane %v1944, 4
        %v1946 = vadd.f32 %v1944, %v1945
        %v1947 = vrot.slane %v1946, 2
        %v1948 = vadd.f32 %v1946, %v1947
        %v1949 = vrot.slane %v1948, 1
        %v1950 = vadd.f32 %v1948, %v1949
        %v1951 = vadd.f32 %v1853, %v1869
        %v1952 = vrot.slane %v1951, 4
        %v1953 = vadd.f32 %v1951, %v1952
        %v1954 = vrot.slane %v1953, 2
        %v1955 = vadd.f32 %v1953, %v1954
        %v1956 = vrot.slane %v1955, 1
        %v1957 = vadd.f32 %v1955, %v1956
        %v1958 = vadd.f32 %v1854, %v1870
        %v1959 = vrot.slane %v1958, 4
        %v1960 = vadd.f32 %v1958, %v1959
        %v1961 = vrot.slane %v1960, 2
        %v1962 = vadd.f32 %v1960, %v1961
        %v1963 = vrot.slane %v1962, 1
        %v1964 = vadd.f32 %v1962, %v1963
        %v1965 = vadd.f32 %v1855, %v1871
        %v1966 = vrot.slane %v1965, 4
        %v1967 = vadd.f32 %v1965, %v1966
        %v1968 = vrot.slane %v1967, 2
        %v1969 = vadd.f32 %v1967, %v1968
        %v1970 = vrot.slane %v1969, 1
        %v1971 = vadd.f32 %v1969, %v1970
        %v1972 = vadd.f32 %v1856, %v1872
        %v1973 = vrot.slane %v1972, 4
        %v1974 = vadd.f32 %v1972, %v1973
        %v1975 = vrot.slane %v1974, 2
        %v1976 = vadd.f32 %v1974, %v1975
        %v1977 = vrot.slane %v1976, 1
        %v1978 = vadd.f32 %v1976, %v1977
        %v1979 = vadd.f32 %v1857, %v1873
        %v1980 = vrot.slane %v1979, 4
        %v1981 = vadd.f32 %v1979, %v1980
        %v1982 = vrot.slane %v1981, 2
        %v1983 = vadd.f32 %v1981, %v1982
        %v1984 = vrot.slane %v1983, 1
        %v1985 = vadd.f32 %v1983, %v1984
        %v1986 = vadd.f32 %v1250, %v1880
        %v1987 = vadd.f32 %v1251, %v1887
        %v1988 = vadd.f32 %v1252, %v1894
        %v1989 = vadd.f32 %v1253, %v1901
        %v1990 = vadd.f32 %v1254, %v1908
        %v1991 = vadd.f32 %v1255, %v1915
        %v1992 = vadd.f32 %v1256, %v1922
        %v1993 = vadd.f32 %v1257, %v1929
        %v1994 = vadd.f32 %v1258, %v1936
        %v1995 = vadd.f32 %v1259, %v1943
        %v1996 = vadd.f32 %v1260, %v1950
        %v1997 = vadd.f32 %v1261, %v1957
        %v1998 = vadd.f32 %v1262, %v1964
        %v1999 = vadd.f32 %v1263, %v1971
        %v2000 = vadd.f32 %v1264, %v1978
        %v2001 = vadd.f32 %v1265, %v1985
        %v2002 = vld [vmem:[%s528 + $0x100] sm:$0xff]
        %v2003 = vld [vmem:[%s528 + $0x108] sm:$0xff]
        %v2004 = vld [vmem:[%s528 + $0x110] sm:$0xff]
        %v2005 = vld [vmem:[%s528 + $0x118] sm:$0xff]
        %v2006 = vld [vmem:[%s528 + $0x120] sm:$0xff]
        %v2007 = vld [vmem:[%s528 + $0x128] sm:$0xff]
        %v2008 = vld [vmem:[%s528 + $0x130] sm:$0xff]
        %v2009 = vld [vmem:[%s528 + $0x138] sm:$0xff]
        %v2010 = vld [vmem:[%s528 + $0x140] sm:$0xff]
        %v2011 = vld [vmem:[%s528 + $0x148] sm:$0xff]
        %v2012 = vld [vmem:[%s528 + $0x150] sm:$0xff]
        %v2013 = vld [vmem:[%s528 + $0x158] sm:$0xff]
        %v2014 = vld [vmem:[%s528 + $0x160] sm:$0xff]
        %v2015 = vld [vmem:[%s528 + $0x168] sm:$0xff]
        %v2016 = vld [vmem:[%s528 + $0x170] sm:$0xff]
        %v2017 = vld [vmem:[%s528 + $0x178] sm:$0xff]
        %v2018 = vunpack.c.l.bf16 %v2002
        %v2019 = vunpack.c.h.bf16 %v2002
        %v2020 = vunpack.c.l.bf16 %v2003
        %v2021 = vunpack.c.h.bf16 %v2003
        %v2022 = vunpack.c.l.bf16 %v2004
        %v2023 = vunpack.c.h.bf16 %v2004
        %v2024 = vunpack.c.l.bf16 %v2005
        %v2025 = vunpack.c.h.bf16 %v2005
        %v2026 = vunpack.c.l.bf16 %v2006
        %v2027 = vunpack.c.h.bf16 %v2006
        %v2028 = vunpack.c.l.bf16 %v2007
        %v2029 = vunpack.c.h.bf16 %v2007
        %v2030 = vunpack.c.l.bf16 %v2008
        %v2031 = vunpack.c.h.bf16 %v2008
        %v2032 = vunpack.c.l.bf16 %v2009
        %v2033 = vunpack.c.h.bf16 %v2009
        %v2034 = vunpack.c.l.bf16 %v2010
        %v2035 = vunpack.c.h.bf16 %v2010
        %v2036 = vunpack.c.l.bf16 %v2011
        %v2037 = vunpack.c.h.bf16 %v2011
        %v2038 = vunpack.c.l.bf16 %v2012
        %v2039 = vunpack.c.h.bf16 %v2012
        %v2040 = vunpack.c.l.bf16 %v2013
        %v2041 = vunpack.c.h.bf16 %v2013
        %v2042 = vunpack.c.l.bf16 %v2014
        %v2043 = vunpack.c.h.bf16 %v2014
        %v2044 = vunpack.c.l.bf16 %v2015
        %v2045 = vunpack.c.h.bf16 %v2015
        %v2046 = vunpack.c.l.bf16 %v2016
        %v2047 = vunpack.c.h.bf16 %v2016
        %v2048 = vunpack.c.l.bf16 %v2017
        %v2049 = vunpack.c.h.bf16 %v2017
        %v2050 = vmul.f32 %v2018, %v1762
        %v2051 = vmul.f32 %v2019, %v1763
        %v2052 = vmul.f32 %v2020, %v1764
        %v2053 = vmul.f32 %v2021, %v1765
        %v2054 = vmul.f32 %v2022, %v1766
        %v2055 = vmul.f32 %v2023, %v1767
        %v2056 = vmul.f32 %v2024, %v1768
        %v2057 = vmul.f32 %v2025, %v1769
        %v2058 = vmul.f32 %v2026, %v1770
        %v2059 = vmul.f32 %v2027, %v1771
        %v2060 = vmul.f32 %v2028, %v1772
        %v2061 = vmul.f32 %v2029, %v1773
        %v2062 = vmul.f32 %v2030, %v1774
        %v2063 = vmul.f32 %v2031, %v1775
        %v2064 = vmul.f32 %v2032, %v1776
        %v2065 = vmul.f32 %v2033, %v1777
        %v2066 = vmul.f32 %v2034, %v1778
        %v2067 = vmul.f32 %v2035, %v1779
        %v2068 = vmul.f32 %v2036, %v1780
        %v2069 = vmul.f32 %v2037, %v1781
        %v2070 = vmul.f32 %v2038, %v1782
        %v2071 = vmul.f32 %v2039, %v1783
        %v2072 = vmul.f32 %v2040, %v1784
        %v2073 = vmul.f32 %v2041, %v1785
        %v2074 = vmul.f32 %v2042, %v1786
        %v2075 = vmul.f32 %v2043, %v1787
        %v2076 = vmul.f32 %v2044, %v1788
        %v2077 = vmul.f32 %v2045, %v1789
        %v2078 = vmul.f32 %v2046, %v1790
        %v2079 = vmul.f32 %v2047, %v1791
        %v2080 = vmul.f32 %v2048, %v1792
        %v2081 = vmul.f32 %v2049, %v1793
        %v2082 = vadd.f32 %v2050, %v2066
        %v2083 = vrot.slane %v2082, 4
        %v2084 = vadd.f32 %v2082, %v2083
        %v2085 = vrot.slane %v2084, 2
        %v2086 = vadd.f32 %v2084, %v2085
        %v2087 = vrot.slane %v2086, 1
        %v2088 = vadd.f32 %v2086, %v2087
        %v2089 = vadd.f32 %v2051, %v2067
        %v2090 = vrot.slane %v2089, 4
        %v2091 = vadd.f32 %v2089, %v2090
        %v2092 = vrot.slane %v2091, 2
        %v2093 = vadd.f32 %v2091, %v2092
        %v2094 = vrot.slane %v2093, 1
        %v2095 = vadd.f32 %v2093, %v2094
        %v2096 = vadd.f32 %v2052, %v2068
        %v2097 = vrot.slane %v2096, 4
        %v2098 = vadd.f32 %v2096, %v2097
        %v2099 = vrot.slane %v2098, 2
        %v2100 = vadd.f32 %v2098, %v2099
        %v2101 = vrot.slane %v2100, 1
        %v2102 = vadd.f32 %v2100, %v2101
        %v2103 = vadd.f32 %v2053, %v2069
        %v2104 = vrot.slane %v2103, 4
        %v2105 = vadd.f32 %v2103, %v2104
        %v2106 = vrot.slane %v2105, 2
        %v2107 = vadd.f32 %v2105, %v2106
        %v2108 = vrot.slane %v2107, 1
        %v2109 = vadd.f32 %v2107, %v2108
        %v2110 = vadd.f32 %v2054, %v2070
        %v2111 = vrot.slane %v2110, 4
        %v2112 = vadd.f32 %v2110, %v2111
        %v2113 = vrot.slane %v2112, 2
        %v2114 = vadd.f32 %v2112, %v2113
        %v2115 = vrot.slane %v2114, 1
        %v2116 = vadd.f32 %v2114, %v2115
        %v2117 = vadd.f32 %v2055, %v2071
        %v2118 = vrot.slane %v2117, 4
        %v2119 = vadd.f32 %v2117, %v2118
        %v2120 = vrot.slane %v2119, 2
        %v2121 = vadd.f32 %v2119, %v2120
        %v2122 = vrot.slane %v2121, 1
        %v2123 = vadd.f32 %v2121, %v2122
        %v2124 = vadd.f32 %v2056, %v2072
        %v2125 = vrot.slane %v2124, 4
        %v2126 = vadd.f32 %v2124, %v2125
        %v2127 = vrot.slane %v2126, 2
        %v2128 = vadd.f32 %v2126, %v2127
        %v2129 = vrot.slane %v2128, 1
        %v2130 = vadd.f32 %v2128, %v2129
        %v2131 = vadd.f32 %v2057, %v2073
        %v2132 = vrot.slane %v2131, 4
        %v2133 = vadd.f32 %v2131, %v2132
        %v2134 = vrot.slane %v2133, 2
        %v2135 = vadd.f32 %v2133, %v2134
        %v2136 = vrot.slane %v2135, 1
        %v2137 = vadd.f32 %v2135, %v2136
        %v2138 = vadd.f32 %v2058, %v2074
        %v2139 = vrot.slane %v2138, 4
        %v2140 = vadd.f32 %v2138, %v2139
        %v2141 = vrot.slane %v2140, 2
        %v2142 = vadd.f32 %v2140, %v2141
        %v2143 = vrot.slane %v2142, 1
        %v2144 = vadd.f32 %v2142, %v2143
        %v2145 = vadd.f32 %v2059, %v2075
        %v2146 = vrot.slane %v2145, 4
        %v2147 = vadd.f32 %v2145, %v2146
        %v2148 = vrot.slane %v2147, 2
        %v2149 = vadd.f32 %v2147, %v2148
        %v2150 = vrot.slane %v2149, 1
        %v2151 = vadd.f32 %v2149, %v2150
        %v2152 = vadd.f32 %v2060, %v2076
        %v2153 = vrot.slane %v2152, 4
        %v2154 = vadd.f32 %v2152, %v2153
        %v2155 = vrot.slane %v2154, 2
        %v2156 = vadd.f32 %v2154, %v2155
        %v2157 = vrot.slane %v2156, 1
        %v2158 = vadd.f32 %v2156, %v2157
        %v2159 = vadd.f32 %v2061, %v2077
        %v2160 = vrot.slane %v2159, 4
        %v2161 = vadd.f32 %v2159, %v2160
        %v2162 = vrot.slane %v2161, 2
        %v2163 = vadd.f32 %v2161, %v2162
        %v2164 = vrot.slane %v2163, 1
        %v2165 = vadd.f32 %v2163, %v2164
        %v2166 = vadd.f32 %v2062, %v2078
        %v2167 = vrot.slane %v2166, 4
        %v2168 = vadd.f32 %v2166, %v2167
        %v2169 = vrot.slane %v2168, 2
        %v2170 = vadd.f32 %v2168, %v2169
        %v2171 = vrot.slane %v2170, 1
        %v2172 = vadd.f32 %v2170, %v2171
        %v2173 = vadd.f32 %v2063, %v2079
        %v2174 = vrot.slane %v2173, 4
        %v2175 = vadd.f32 %v2173, %v2174
        %v2176 = vrot.slane %v2175, 2
        %v2177 = vadd.f32 %v2175, %v2176
        %v2178 = vrot.slane %v2177, 1
        %v2179 = vadd.f32 %v2177, %v2178
        %v2180 = vadd.f32 %v2064, %v2080
        %v2181 = vrot.slane %v2180, 4
        %v2182 = vadd.f32 %v2180, %v2181
        %v2183 = vrot.slane %v2182, 2
        %v2184 = vadd.f32 %v2182, %v2183
        %v2185 = vrot.slane %v2184, 1
        %v2186 = vadd.f32 %v2184, %v2185
        %v2187 = vadd.f32 %v2065, %v2081
        %v2188 = vrot.slane %v2187, 4
        %v2189 = vadd.f32 %v2187, %v2188
        %v2190 = vrot.slane %v2189, 2
        %v2191 = vadd.f32 %v2189, %v2190
        %v2192 = vrot.slane %v2191, 1
        %v2193 = vadd.f32 %v2191, %v2192
        %v2194 = vadd.f32 %v1458, %v2088
        %v2195 = vadd.f32 %v1459, %v2095
        %v2196 = vadd.f32 %v1460, %v2102
        %v2197 = vadd.f32 %v1461, %v2109
        %v2198 = vadd.f32 %v1462, %v2116
        %v2199 = vadd.f32 %v1463, %v2123
        %v2200 = vadd.f32 %v1464, %v2130
        %v2201 = vadd.f32 %v1465, %v2137
        %v2202 = vadd.f32 %v1466, %v2144
        %v2203 = vadd.f32 %v1467, %v2151
        %v2204 = vadd.f32 %v1468, %v2158
        %v2205 = vadd.f32 %v1469, %v2165
        %v2206 = vadd.f32 %v1470, %v2172
        %v2207 = vadd.f32 %v1471, %v2179
        %v2208 = vadd.f32 %v1472, %v2186
        %v2209 = vadd.f32 %v1473, %v2193
        %v2210 = vld [vmem:[%s737 + $0x100] sm:$0xff]
        %v2211 = vld [vmem:[%s737 + $0x108] sm:$0xff]
        %v2212 = vld [vmem:[%s737 + $0x110] sm:$0xff]
        %v2213 = vld [vmem:[%s737 + $0x118] sm:$0xff]
        %v2214 = vld [vmem:[%s737 + $0x120] sm:$0xff]
        %v2215 = vld [vmem:[%s737 + $0x128] sm:$0xff]
        %v2216 = vld [vmem:[%s737 + $0x130] sm:$0xff]
        %v2217 = vld [vmem:[%s737 + $0x138] sm:$0xff]
        %v2218 = vld [vmem:[%s737 + $0x140] sm:$0xff]
        %v2219 = vld [vmem:[%s737 + $0x148] sm:$0xff]
        %v2220 = vld [vmem:[%s737 + $0x150] sm:$0xff]
        %v2221 = vld [vmem:[%s737 + $0x158] sm:$0xff]
        %v2222 = vld [vmem:[%s737 + $0x160] sm:$0xff]
        %v2223 = vld [vmem:[%s737 + $0x168] sm:$0xff]
        %v2224 = vld [vmem:[%s737 + $0x170] sm:$0xff]
        %v2225 = vld [vmem:[%s737 + $0x178] sm:$0xff]
        %v2226 = vunpack.c.l.bf16 %v2210
        %v2227 = vunpack.c.h.bf16 %v2210
        %v2228 = vunpack.c.l.bf16 %v2211
        %v2229 = vunpack.c.h.bf16 %v2211
        %v2230 = vunpack.c.l.bf16 %v2212
        %v2231 = vunpack.c.h.bf16 %v2212
        %v2232 = vunpack.c.l.bf16 %v2213
        %v2233 = vunpack.c.h.bf16 %v2213
        %v2234 = vunpack.c.l.bf16 %v2214
        %v2235 = vunpack.c.h.bf16 %v2214
        %v2236 = vunpack.c.l.bf16 %v2215
        %v2237 = vunpack.c.h.bf16 %v2215
        %v2238 = vunpack.c.l.bf16 %v2216
        %v2239 = vunpack.c.h.bf16 %v2216
        %v2240 = vunpack.c.l.bf16 %v2217
        %v2241 = vunpack.c.h.bf16 %v2217
        %v2242 = vunpack.c.l.bf16 %v2218
        %v2243 = vunpack.c.h.bf16 %v2218
        %v2244 = vunpack.c.l.bf16 %v2219
        %v2245 = vunpack.c.h.bf16 %v2219
        %v2246 = vunpack.c.l.bf16 %v2220
        %v2247 = vunpack.c.h.bf16 %v2220
        %v2248 = vunpack.c.l.bf16 %v2221
        %v2249 = vunpack.c.h.bf16 %v2221
        %v2250 = vunpack.c.l.bf16 %v2222
        %v2251 = vunpack.c.h.bf16 %v2222
        %v2252 = vunpack.c.l.bf16 %v2223
        %v2253 = vunpack.c.h.bf16 %v2223
        %v2254 = vunpack.c.l.bf16 %v2224
        %v2255 = vunpack.c.h.bf16 %v2224
        %v2256 = vunpack.c.l.bf16 %v2225
        %v2257 = vunpack.c.h.bf16 %v2225
        %v2258 = vmul.f32 %v2226, %v1762
        %v2259 = vmul.f32 %v2227, %v1763
        %v2260 = vmul.f32 %v2228, %v1764
        %v2261 = vmul.f32 %v2229, %v1765
        %v2262 = vmul.f32 %v2230, %v1766
        %v2263 = vmul.f32 %v2231, %v1767
        %v2264 = vmul.f32 %v2232, %v1768
        %v2265 = vmul.f32 %v2233, %v1769
        %v2266 = vmul.f32 %v2234, %v1770
        %v2267 = vmul.f32 %v2235, %v1771
        %v2268 = vmul.f32 %v2236, %v1772
        %v2269 = vmul.f32 %v2237, %v1773
        %v2270 = vmul.f32 %v2238, %v1774
        %v2271 = vmul.f32 %v2239, %v1775
        %v2272 = vmul.f32 %v2240, %v1776
        %v2273 = vmul.f32 %v2241, %v1777
        %v2274 = vmul.f32 %v2242, %v1778
        %v2275 = vmul.f32 %v2243, %v1779
        %v2276 = vmul.f32 %v2244, %v1780
        %v2277 = vmul.f32 %v2245, %v1781
        %v2278 = vmul.f32 %v2246, %v1782
        %v2279 = vmul.f32 %v2247, %v1783
        %v2280 = vmul.f32 %v2248, %v1784
        %v2281 = vmul.f32 %v2249, %v1785
        %v2282 = vmul.f32 %v2250, %v1786
        %v2283 = vmul.f32 %v2251, %v1787
        %v2284 = vmul.f32 %v2252, %v1788
        %v2285 = vmul.f32 %v2253, %v1789
        %v2286 = vmul.f32 %v2254, %v1790
        %v2287 = vmul.f32 %v2255, %v1791
        %v2288 = vmul.f32 %v2256, %v1792
        %v2289 = vmul.f32 %v2257, %v1793
        %v2290 = vadd.f32 %v2258, %v2274
        %v2291 = vrot.slane %v2290, 4
        %v2292 = vadd.f32 %v2290, %v2291
        %v2293 = vrot.slane %v2292, 2
        %v2294 = vadd.f32 %v2292, %v2293
        %v2295 = vrot.slane %v2294, 1
        %v2296 = vadd.f32 %v2294, %v2295
        %v2297 = vadd.f32 %v2259, %v2275
        %v2298 = vrot.slane %v2297, 4
        %v2299 = vadd.f32 %v2297, %v2298
        %v2300 = vrot.slane %v2299, 2
        %v2301 = vadd.f32 %v2299, %v2300
        %v2302 = vrot.slane %v2301, 1
        %v2303 = vadd.f32 %v2301, %v2302
        %v2304 = vadd.f32 %v2260, %v2276
        %v2305 = vrot.slane %v2304, 4
        %v2306 = vadd.f32 %v2304, %v2305
        %v2307 = vrot.slane %v2306, 2
        %v2308 = vadd.f32 %v2306, %v2307
        %v2309 = vrot.slane %v2308, 1
        %v2310 = vadd.f32 %v2308, %v2309
        %v2311 = vadd.f32 %v2261, %v2277
        %v2312 = vrot.slane %v2311, 4
        %v2313 = vadd.f32 %v2311, %v2312
        %v2314 = vrot.slane %v2313, 2
        %v2315 = vadd.f32 %v2313, %v2314
        %v2316 = vrot.slane %v2315, 1
        %v2317 = vadd.f32 %v2315, %v2316
        %v2318 = vadd.f32 %v2262, %v2278
        %v2319 = vrot.slane %v2318, 4
        %v2320 = vadd.f32 %v2318, %v2319
        %v2321 = vrot.slane %v2320, 2
        %v2322 = vadd.f32 %v2320, %v2321
        %v2323 = vrot.slane %v2322, 1
        %v2324 = vadd.f32 %v2322, %v2323
        %v2325 = vadd.f32 %v2263, %v2279
        %v2326 = vrot.slane %v2325, 4
        %v2327 = vadd.f32 %v2325, %v2326
        %v2328 = vrot.slane %v2327, 2
        %v2329 = vadd.f32 %v2327, %v2328
        %v2330 = vrot.slane %v2329, 1
        %v2331 = vadd.f32 %v2329, %v2330
        %v2332 = vadd.f32 %v2264, %v2280
        %v2333 = vrot.slane %v2332, 4
        %v2334 = vadd.f32 %v2332, %v2333
        %v2335 = vrot.slane %v2334, 2
        %v2336 = vadd.f32 %v2334, %v2335
        %v2337 = vrot.slane %v2336, 1
        %v2338 = vadd.f32 %v2336, %v2337
        %v2339 = vadd.f32 %v2265, %v2281
        %v2340 = vrot.slane %v2339, 4
        %v2341 = vadd.f32 %v2339, %v2340
        %v2342 = vrot.slane %v2341, 2
        %v2343 = vadd.f32 %v2341, %v2342
        %v2344 = vrot.slane %v2343, 1
        %v2345 = vadd.f32 %v2343, %v2344
        %v2346 = vadd.f32 %v2266, %v2282
        %v2347 = vrot.slane %v2346, 4
        %v2348 = vadd.f32 %v2346, %v2347
        %v2349 = vrot.slane %v2348, 2
        %v2350 = vadd.f32 %v2348, %v2349
        %v2351 = vrot.slane %v2350, 1
        %v2352 = vadd.f32 %v2350, %v2351
        %v2353 = vadd.f32 %v2267, %v2283
        %v2354 = vrot.slane %v2353, 4
        %v2355 = vadd.f32 %v2353, %v2354
        %v2356 = vrot.slane %v2355, 2
        %v2357 = vadd.f32 %v2355, %v2356
        %v2358 = vrot.slane %v2357, 1
        %v2359 = vadd.f32 %v2357, %v2358
        %v2360 = vadd.f32 %v2268, %v2284
        %v2361 = vrot.slane %v2360, 4
        %v2362 = vadd.f32 %v2360, %v2361
        %v2363 = vrot.slane %v2362, 2
        %v2364 = vadd.f32 %v2362, %v2363
        %v2365 = vrot.slane %v2364, 1
        %v2366 = vadd.f32 %v2364, %v2365
        %v2367 = vadd.f32 %v2269, %v2285
        %v2368 = vrot.slane %v2367, 4
        %v2369 = vadd.f32 %v2367, %v2368
        %v2370 = vrot.slane %v2369, 2
        %v2371 = vadd.f32 %v2369, %v2370
        %v2372 = vrot.slane %v2371, 1
        %v2373 = vadd.f32 %v2371, %v2372
        %v2374 = vadd.f32 %v2270, %v2286
        %v2375 = vrot.slane %v2374, 4
        %v2376 = vadd.f32 %v2374, %v2375
        %v2377 = vrot.slane %v2376, 2
        %v2378 = vadd.f32 %v2376, %v2377
        %v2379 = vrot.slane %v2378, 1
        %v2380 = vadd.f32 %v2378, %v2379
        %v2381 = vadd.f32 %v2271, %v2287
        %v2382 = vrot.slane %v2381, 4
        %v2383 = vadd.f32 %v2381, %v2382
        %v2384 = vrot.slane %v2383, 2
        %v2385 = vadd.f32 %v2383, %v2384
        %v2386 = vrot.slane %v2385, 1
        %v2387 = vadd.f32 %v2385, %v2386
        %v2388 = vadd.f32 %v2272, %v2288
        %v2389 = vrot.slane %v2388, 4
        %v2390 = vadd.f32 %v2388, %v2389
        %v2391 = vrot.slane %v2390, 2
        %v2392 = vadd.f32 %v2390, %v2391
        %v2393 = vrot.slane %v2392, 1
        %v2394 = vadd.f32 %v2392, %v2393
        %v2395 = vadd.f32 %v2273, %v2289
        %v2396 = vrot.slane %v2395, 4
        %v2397 = vadd.f32 %v2395, %v2396
        %v2398 = vrot.slane %v2397, 2
        %v2399 = vadd.f32 %v2397, %v2398
        %v2400 = vrot.slane %v2399, 1
        %v2401 = vadd.f32 %v2399, %v2400
        %v2402 = vadd.f32 %v1666, %v2296
        %v2403 = vadd.f32 %v1667, %v2303
        %v2404 = vadd.f32 %v1668, %v2310
        %v2405 = vadd.f32 %v1669, %v2317
        %v2406 = vadd.f32 %v1670, %v2324
        %v2407 = vadd.f32 %v1671, %v2331
        %v2408 = vadd.f32 %v1672, %v2338
        %v2409 = vadd.f32 %v1673, %v2345
        %v2410 = vadd.f32 %v1674, %v2352
        %v2411 = vadd.f32 %v1675, %v2359
        %v2412 = vadd.f32 %v1676, %v2366
        %v2413 = vadd.f32 %v1677, %v2373
        %v2414 = vadd.f32 %v1678, %v2380
        %v2415 = vadd.f32 %v1679, %v2387
        %v2416 = vadd.f32 %v1680, %v2394
        %v2417 = vadd.f32 %v1681, %v2401
        %v2418 = vld [vmem:[%s207 + $0x180] sm:$0xff]
        %v2419 = vld [vmem:[%s207 + $0x188] sm:$0xff]
        %v2420 = vld [vmem:[%s207 + $0x190] sm:$0xff]
        %v2421 = vld [vmem:[%s207 + $0x198] sm:$0xff]
        %v2422 = vld [vmem:[%s207 + $0x1a0] sm:$0xff]
        %v2423 = vld [vmem:[%s207 + $0x1a8] sm:$0xff]
        %v2424 = vld [vmem:[%s207 + $0x1b0] sm:$0xff]
        %v2425 = vld [vmem:[%s207 + $0x1b8] sm:$0xff]
        %v2426 = vld [vmem:[%s207 + $0x1c0] sm:$0xff]
        %v2427 = vld [vmem:[%s207 + $0x1c8] sm:$0xff]
        %v2428 = vld [vmem:[%s207 + $0x1d0] sm:$0xff]
        %v2429 = vld [vmem:[%s207 + $0x1d8] sm:$0xff]
        %v2430 = vld [vmem:[%s207 + $0x1e0] sm:$0xff]
        %v2431 = vld [vmem:[%s207 + $0x1e8] sm:$0xff]
        %v2432 = vld [vmem:[%s207 + $0x1f0] sm:$0xff]
        %v2433 = vld [vmem:[%s207 + $0x1f8] sm:$0xff]
        %v2434 = vunpack.c.l.bf16 %v2418
        %v2435 = vunpack.c.h.bf16 %v2418
        %v2436 = vunpack.c.l.bf16 %v2419
        %v2437 = vunpack.c.h.bf16 %v2419
        %v2438 = vunpack.c.l.bf16 %v2420
        %v2439 = vunpack.c.h.bf16 %v2420
        %v2440 = vunpack.c.l.bf16 %v2421
        %v2441 = vunpack.c.h.bf16 %v2421
        %v2442 = vunpack.c.l.bf16 %v2422
        %v2443 = vunpack.c.h.bf16 %v2422
        %v2444 = vunpack.c.l.bf16 %v2423
        %v2445 = vunpack.c.h.bf16 %v2423
        %v2446 = vunpack.c.l.bf16 %v2424
        %v2447 = vunpack.c.h.bf16 %v2424
        %v2448 = vunpack.c.l.bf16 %v2425
        %v2449 = vunpack.c.h.bf16 %v2425
        %v2450 = vunpack.c.l.bf16 %v2426
        %v2451 = vunpack.c.h.bf16 %v2426
        %v2452 = vunpack.c.l.bf16 %v2427
        %v2453 = vunpack.c.h.bf16 %v2427
        %v2454 = vunpack.c.l.bf16 %v2428
        %v2455 = vunpack.c.h.bf16 %v2428
        %v2456 = vunpack.c.l.bf16 %v2429
        %v2457 = vunpack.c.h.bf16 %v2429
        %v2458 = vunpack.c.l.bf16 %v2430
        %v2459 = vunpack.c.h.bf16 %v2430
        %v2460 = vunpack.c.l.bf16 %v2431
        %v2461 = vunpack.c.h.bf16 %v2431
        %v2462 = vunpack.c.l.bf16 %v2432
        %v2463 = vunpack.c.h.bf16 %v2432
        %v2464 = vunpack.c.l.bf16 %v2433
        %v2465 = vunpack.c.h.bf16 %v2433
        %v2466 = vmax.f32 %v2434, 0.0
        %v2467 = vmax.f32 %v2435, 0.0
        %v2468 = vmax.f32 %v2436, 0.0
        %v2469 = vmax.f32 %v2437, 0.0
        %v2470 = vmax.f32 %v2438, 0.0
        %v2471 = vmax.f32 %v2439, 0.0
        %v2472 = vmax.f32 %v2440, 0.0
        %v2473 = vmax.f32 %v2441, 0.0
        %v2474 = vmax.f32 %v2442, 0.0
        %v2475 = vmax.f32 %v2443, 0.0
        %v2476 = vmax.f32 %v2444, 0.0
        %v2477 = vmax.f32 %v2445, 0.0
        %v2478 = vmax.f32 %v2446, 0.0
        %v2479 = vmax.f32 %v2447, 0.0
        %v2480 = vmax.f32 %v2448, 0.0
        %v2481 = vmax.f32 %v2449, 0.0
        %v2482 = vmax.f32 %v2450, 0.0
        %v2483 = vmax.f32 %v2451, 0.0
        %v2484 = vmax.f32 %v2452, 0.0
        %v2485 = vmax.f32 %v2453, 0.0
        %v2486 = vmax.f32 %v2454, 0.0
        %v2487 = vmax.f32 %v2455, 0.0
        %v2488 = vmax.f32 %v2456, 0.0
        %v2489 = vmax.f32 %v2457, 0.0
        %v2490 = vmax.f32 %v2458, 0.0
        %v2491 = vmax.f32 %v2459, 0.0
        %v2492 = vmax.f32 %v2460, 0.0
        %v2493 = vmax.f32 %v2461, 0.0
        %v2494 = vmax.f32 %v2462, 0.0
        %v2495 = vmax.f32 %v2463, 0.0
        %v2496 = vmax.f32 %v2464, 0.0
        %v2497 = vmax.f32 %v2465, 0.0
        %v2498 = vmin.f32 %v2466, 1.0
        %v2499 = vmin.f32 %v2467, 1.0
        %v2500 = vmin.f32 %v2468, 1.0
        %v2501 = vmin.f32 %v2469, 1.0
        %v2502 = vmin.f32 %v2470, 1.0
        %v2503 = vmin.f32 %v2471, 1.0
        %v2504 = vmin.f32 %v2472, 1.0
        %v2505 = vmin.f32 %v2473, 1.0
        %v2506 = vmin.f32 %v2474, 1.0
        %v2507 = vmin.f32 %v2475, 1.0
        %v2508 = vmin.f32 %v2476, 1.0
        %v2509 = vmin.f32 %v2477, 1.0
        %v2510 = vmin.f32 %v2478, 1.0
        %v2511 = vmin.f32 %v2479, 1.0
        %v2512 = vmin.f32 %v2480, 1.0
        %v2513 = vmin.f32 %v2481, 1.0
        %v2514 = vmin.f32 %v2482, 1.0
        %v2515 = vmin.f32 %v2483, 1.0
        %v2516 = vmin.f32 %v2484, 1.0
        %v2517 = vmin.f32 %v2485, 1.0
        %v2518 = vmin.f32 %v2486, 1.0
        %v2519 = vmin.f32 %v2487, 1.0
        %v2520 = vmin.f32 %v2488, 1.0
        %v2521 = vmin.f32 %v2489, 1.0
        %v2522 = vmin.f32 %v2490, 1.0
        %v2523 = vmin.f32 %v2491, 1.0
        %v2524 = vmin.f32 %v2492, 1.0
        %v2525 = vmin.f32 %v2493, 1.0
        %v2526 = vmin.f32 %v2494, 1.0
        %v2527 = vmin.f32 %v2495, 1.0
        %v2528 = vmin.f32 %v2496, 1.0
        %v2529 = vmin.f32 %v2497, 1.0
        %v2530 = vld [vmem:[%s174 + $0x180] sm:$0xff]
        %v2531 = vld [vmem:[%s174 + $0x188] sm:$0xff]
        %v2532 = vld [vmem:[%s174 + $0x190] sm:$0xff]
        %v2533 = vld [vmem:[%s174 + $0x198] sm:$0xff]
        %v2534 = vld [vmem:[%s174 + $0x1a0] sm:$0xff]
        %v2535 = vld [vmem:[%s174 + $0x1a8] sm:$0xff]
        %v2536 = vld [vmem:[%s174 + $0x1b0] sm:$0xff]
        %v2537 = vld [vmem:[%s174 + $0x1b8] sm:$0xff]
        %v2538 = vld [vmem:[%s174 + $0x1c0] sm:$0xff]
        %v2539 = vld [vmem:[%s174 + $0x1c8] sm:$0xff]
        %v2540 = vld [vmem:[%s174 + $0x1d0] sm:$0xff]
        %v2541 = vld [vmem:[%s174 + $0x1d8] sm:$0xff]
        %v2542 = vld [vmem:[%s174 + $0x1e0] sm:$0xff]
        %v2543 = vld [vmem:[%s174 + $0x1e8] sm:$0xff]
        %v2544 = vld [vmem:[%s174 + $0x1f0] sm:$0xff]
        %v2545 = vld [vmem:[%s174 + $0x1f8] sm:$0xff]
        %v2546 = vunpack.c.l.bf16 %v2530
        %v2547 = vunpack.c.h.bf16 %v2530
        %v2548 = vunpack.c.l.bf16 %v2531
        %v2549 = vunpack.c.h.bf16 %v2531
        %v2550 = vunpack.c.l.bf16 %v2532
        %v2551 = vunpack.c.h.bf16 %v2532
        %v2552 = vunpack.c.l.bf16 %v2533
        %v2553 = vunpack.c.h.bf16 %v2533
        %v2554 = vunpack.c.l.bf16 %v2534
        %v2555 = vunpack.c.h.bf16 %v2534
        %v2556 = vunpack.c.l.bf16 %v2535
        %v2557 = vunpack.c.h.bf16 %v2535
        %v2558 = vunpack.c.l.bf16 %v2536
        %v2559 = vunpack.c.h.bf16 %v2536
        %v2560 = vunpack.c.l.bf16 %v2537
        %v2561 = vunpack.c.h.bf16 %v2537
        %v2562 = vunpack.c.l.bf16 %v2538
        %v2563 = vunpack.c.h.bf16 %v2538
        %v2564 = vunpack.c.l.bf16 %v2539
        %v2565 = vunpack.c.h.bf16 %v2539
        %v2566 = vunpack.c.l.bf16 %v2540
        %v2567 = vunpack.c.h.bf16 %v2540
        %v2568 = vunpack.c.l.bf16 %v2541
        %v2569 = vunpack.c.h.bf16 %v2541
        %v2570 = vunpack.c.l.bf16 %v2542
        %v2571 = vunpack.c.h.bf16 %v2542
        %v2572 = vunpack.c.l.bf16 %v2543
        %v2573 = vunpack.c.h.bf16 %v2543
        %v2574 = vunpack.c.l.bf16 %v2544
        %v2575 = vunpack.c.h.bf16 %v2544
        %v2576 = vunpack.c.l.bf16 %v2545
        %v2577 = vunpack.c.h.bf16 %v2545
        %v2578 = vmul.f32 %v2546, %v2498
        %v2579 = vmul.f32 %v2547, %v2499
        %v2580 = vmul.f32 %v2548, %v2500
        %v2581 = vmul.f32 %v2549, %v2501
        %v2582 = vmul.f32 %v2550, %v2502
        %v2583 = vmul.f32 %v2551, %v2503
        %v2584 = vmul.f32 %v2552, %v2504
        %v2585 = vmul.f32 %v2553, %v2505
        %v2586 = vmul.f32 %v2554, %v2506
        %v2587 = vmul.f32 %v2555, %v2507
        %v2588 = vmul.f32 %v2556, %v2508
        %v2589 = vmul.f32 %v2557, %v2509
        %v2590 = vmul.f32 %v2558, %v2510
        %v2591 = vmul.f32 %v2559, %v2511
        %v2592 = vmul.f32 %v2560, %v2512
        %v2593 = vmul.f32 %v2561, %v2513
        %v2594 = vmul.f32 %v2562, %v2514
        %v2595 = vmul.f32 %v2563, %v2515
        %v2596 = vmul.f32 %v2564, %v2516
        %v2597 = vmul.f32 %v2565, %v2517
        %v2598 = vmul.f32 %v2566, %v2518
        %v2599 = vmul.f32 %v2567, %v2519
        %v2600 = vmul.f32 %v2568, %v2520
        %v2601 = vmul.f32 %v2569, %v2521
        %v2602 = vmul.f32 %v2570, %v2522
        %v2603 = vmul.f32 %v2571, %v2523
        %v2604 = vmul.f32 %v2572, %v2524
        %v2605 = vmul.f32 %v2573, %v2525
        %v2606 = vmul.f32 %v2574, %v2526
        %v2607 = vmul.f32 %v2575, %v2527
        %v2608 = vmul.f32 %v2576, %v2528
        %v2609 = vmul.f32 %v2577, %v2529
        %v2610 = vadd.f32 %v2578, %v2594
        %v2611 = vrot.slane %v2610, 4
        %v2612 = vadd.f32 %v2610, %v2611
        %v2613 = vrot.slane %v2612, 2
        %v2614 = vadd.f32 %v2612, %v2613
        %v2615 = vrot.slane %v2614, 1
        %v2616 = vadd.f32 %v2614, %v2615
        %v2617 = vadd.f32 %v2579, %v2595
        %v2618 = vrot.slane %v2617, 4
        %v2619 = vadd.f32 %v2617, %v2618
        %v2620 = vrot.slane %v2619, 2
        %v2621 = vadd.f32 %v2619, %v2620
        %v2622 = vrot.slane %v2621, 1
        %v2623 = vadd.f32 %v2621, %v2622
        %v2624 = vadd.f32 %v2580, %v2596
        %v2625 = vrot.slane %v2624, 4
        %v2626 = vadd.f32 %v2624, %v2625
        %v2627 = vrot.slane %v2626, 2
        %v2628 = vadd.f32 %v2626, %v2627
        %v2629 = vrot.slane %v2628, 1
        %v2630 = vadd.f32 %v2628, %v2629
        %v2631 = vadd.f32 %v2581, %v2597
        %v2632 = vrot.slane %v2631, 4
        %v2633 = vadd.f32 %v2631, %v2632
        %v2634 = vrot.slane %v2633, 2
        %v2635 = vadd.f32 %v2633, %v2634
        %v2636 = vrot.slane %v2635, 1
        %v2637 = vadd.f32 %v2635, %v2636
        %v2638 = vadd.f32 %v2582, %v2598
        %v2639 = vrot.slane %v2638, 4
        %v2640 = vadd.f32 %v2638, %v2639
        %v2641 = vrot.slane %v2640, 2
        %v2642 = vadd.f32 %v2640, %v2641
        %v2643 = vrot.slane %v2642, 1
        %v2644 = vadd.f32 %v2642, %v2643
        %v2645 = vadd.f32 %v2583, %v2599
        %v2646 = vrot.slane %v2645, 4
        %v2647 = vadd.f32 %v2645, %v2646
        %v2648 = vrot.slane %v2647, 2
        %v2649 = vadd.f32 %v2647, %v2648
        %v2650 = vrot.slane %v2649, 1
        %v2651 = vadd.f32 %v2649, %v2650
        %v2652 = vadd.f32 %v2584, %v2600
        %v2653 = vrot.slane %v2652, 4
        %v2654 = vadd.f32 %v2652, %v2653
        %v2655 = vrot.slane %v2654, 2
        %v2656 = vadd.f32 %v2654, %v2655
        %v2657 = vrot.slane %v2656, 1
        %v2658 = vadd.f32 %v2656, %v2657
        %v2659 = vadd.f32 %v2585, %v2601
        %v2660 = vrot.slane %v2659, 4
        %v2661 = vadd.f32 %v2659, %v2660
        %v2662 = vrot.slane %v2661, 2
        %v2663 = vadd.f32 %v2661, %v2662
        %v2664 = vrot.slane %v2663, 1
        %v2665 = vadd.f32 %v2663, %v2664
        %v2666 = vadd.f32 %v2586, %v2602
        %v2667 = vrot.slane %v2666, 4
        %v2668 = vadd.f32 %v2666, %v2667
        %v2669 = vrot.slane %v2668, 2
        %v2670 = vadd.f32 %v2668, %v2669
        %v2671 = vrot.slane %v2670, 1
        %v2672 = vadd.f32 %v2670, %v2671
        %v2673 = vadd.f32 %v2587, %v2603
        %v2674 = vrot.slane %v2673, 4
        %v2675 = vadd.f32 %v2673, %v2674
        %v2676 = vrot.slane %v2675, 2
        %v2677 = vadd.f32 %v2675, %v2676
        %v2678 = vrot.slane %v2677, 1
        %v2679 = vadd.f32 %v2677, %v2678
        %v2680 = vadd.f32 %v2588, %v2604
        %v2681 = vrot.slane %v2680, 4
        %v2682 = vadd.f32 %v2680, %v2681
        %v2683 = vrot.slane %v2682, 2
        %v2684 = vadd.f32 %v2682, %v2683
        %v2685 = vrot.slane %v2684, 1
        %v2686 = vadd.f32 %v2684, %v2685
        %v2687 = vadd.f32 %v2589, %v2605
        %v2688 = vrot.slane %v2687, 4
        %v2689 = vadd.f32 %v2687, %v2688
        %v2690 = vrot.slane %v2689, 2
        %v2691 = vadd.f32 %v2689, %v2690
        %v2692 = vrot.slane %v2691, 1
        %v2693 = vadd.f32 %v2691, %v2692
        %v2694 = vadd.f32 %v2590, %v2606
        %v2695 = vrot.slane %v2694, 4
        %v2696 = vadd.f32 %v2694, %v2695
        %v2697 = vrot.slane %v2696, 2
        %v2698 = vadd.f32 %v2696, %v2697
        %v2699 = vrot.slane %v2698, 1
        %v2700 = vadd.f32 %v2698, %v2699
        %v2701 = vadd.f32 %v2591, %v2607
        %v2702 = vrot.slane %v2701, 4
        %v2703 = vadd.f32 %v2701, %v2702
        %v2704 = vrot.slane %v2703, 2
        %v2705 = vadd.f32 %v2703, %v2704
        %v2706 = vrot.slane %v2705, 1
        %v2707 = vadd.f32 %v2705, %v2706
        %v2708 = vadd.f32 %v2592, %v2608
        %v2709 = vrot.slane %v2708, 4
        %v2710 = vadd.f32 %v2708, %v2709
        %v2711 = vrot.slane %v2710, 2
        %v2712 = vadd.f32 %v2710, %v2711
        %v2713 = vrot.slane %v2712, 1
        %v2714 = vadd.f32 %v2712, %v2713
        %v2715 = vadd.f32 %v2593, %v2609
        %v2716 = vrot.slane %v2715, 4
        %v2717 = vadd.f32 %v2715, %v2716
        %v2718 = vrot.slane %v2717, 2
        %v2719 = vadd.f32 %v2717, %v2718
        %v2720 = vrot.slane %v2719, 1
        %v2721 = vadd.f32 %v2719, %v2720
        %v2722 = vadd.f32 %v1986, %v2616
        %v2723 = vadd.f32 %v1987, %v2623
        %v2724 = vadd.f32 %v1988, %v2630
        %v2725 = vadd.f32 %v1989, %v2637
        %v2726 = vadd.f32 %v1990, %v2644
        %v2727 = vadd.f32 %v1991, %v2651
        %v2728 = vadd.f32 %v1992, %v2658
        %v2729 = vadd.f32 %v1993, %v2665
        %v2730 = vadd.f32 %v1994, %v2672
        %v2731 = vadd.f32 %v1995, %v2679
        %v2732 = vadd.f32 %v1996, %v2686
        %v2733 = vadd.f32 %v1997, %v2693
        %v2734 = vadd.f32 %v1998, %v2700
        %v2735 = vadd.f32 %v1999, %v2707
        %v2736 = vadd.f32 %v2000, %v2714
        %v2737 = vadd.f32 %v2001, %v2721
        %v2738 = vld [vmem:[%s528 + $0x180] sm:$0xff]
        %v2739 = vld [vmem:[%s528 + $0x188] sm:$0xff]
        %v2740 = vld [vmem:[%s528 + $0x190] sm:$0xff]
        %v2741 = vld [vmem:[%s528 + $0x198] sm:$0xff]
        %v2742 = vld [vmem:[%s528 + $0x1a0] sm:$0xff]
        %v2743 = vld [vmem:[%s528 + $0x1a8] sm:$0xff]
        %v2744 = vld [vmem:[%s528 + $0x1b0] sm:$0xff]
        %v2745 = vld [vmem:[%s528 + $0x1b8] sm:$0xff]
        %v2746 = vld [vmem:[%s528 + $0x1c0] sm:$0xff]
        %v2747 = vld [vmem:[%s528 + $0x1c8] sm:$0xff]
        %v2748 = vld [vmem:[%s528 + $0x1d0] sm:$0xff]
        %v2749 = vld [vmem:[%s528 + $0x1d8] sm:$0xff]
        %v2750 = vld [vmem:[%s528 + $0x1e0] sm:$0xff]
        %v2751 = vld [vmem:[%s528 + $0x1e8] sm:$0xff]
        %v2752 = vld [vmem:[%s528 + $0x1f0] sm:$0xff]
        %v2753 = vld [vmem:[%s528 + $0x1f8] sm:$0xff]
        %v2754 = vunpack.c.l.bf16 %v2738
        %v2755 = vunpack.c.h.bf16 %v2738
        %v2756 = vunpack.c.l.bf16 %v2739
        %v2757 = vunpack.c.h.bf16 %v2739
        %v2758 = vunpack.c.l.bf16 %v2740
        %v2759 = vunpack.c.h.bf16 %v2740
        %v2760 = vunpack.c.l.bf16 %v2741
        %v2761 = vunpack.c.h.bf16 %v2741
        %v2762 = vunpack.c.l.bf16 %v2742
        %v2763 = vunpack.c.h.bf16 %v2742
        %v2764 = vunpack.c.l.bf16 %v2743
        %v2765 = vunpack.c.h.bf16 %v2743
        %v2766 = vunpack.c.l.bf16 %v2744
        %v2767 = vunpack.c.h.bf16 %v2744
        %v2768 = vunpack.c.l.bf16 %v2745
        %v2769 = vunpack.c.h.bf16 %v2745
        %v2770 = vunpack.c.l.bf16 %v2746
        %v2771 = vunpack.c.h.bf16 %v2746
        %v2772 = vunpack.c.l.bf16 %v2747
        %v2773 = vunpack.c.h.bf16 %v2747
        %v2774 = vunpack.c.l.bf16 %v2748
        %v2775 = vunpack.c.h.bf16 %v2748
        %v2776 = vunpack.c.l.bf16 %v2749
        %v2777 = vunpack.c.h.bf16 %v2749
        %v2778 = vunpack.c.l.bf16 %v2750
        %v2779 = vunpack.c.h.bf16 %v2750
        %v2780 = vunpack.c.l.bf16 %v2751
        %v2781 = vunpack.c.h.bf16 %v2751
        %v2782 = vunpack.c.l.bf16 %v2752
        %v2783 = vunpack.c.h.bf16 %v2752
        %v2784 = vunpack.c.l.bf16 %v2753
        %v2785 = vunpack.c.h.bf16 %v2753
        %v2786 = vmul.f32 %v2754, %v2498
        %v2787 = vmul.f32 %v2755, %v2499
        %v2788 = vmul.f32 %v2756, %v2500
        %v2789 = vmul.f32 %v2757, %v2501
        %v2790 = vmul.f32 %v2758, %v2502
        %v2791 = vmul.f32 %v2759, %v2503
        %v2792 = vmul.f32 %v2760, %v2504
        %v2793 = vmul.f32 %v2761, %v2505
        %v2794 = vmul.f32 %v2762, %v2506
        %v2795 = vmul.f32 %v2763, %v2507
        %v2796 = vmul.f32 %v2764, %v2508
        %v2797 = vmul.f32 %v2765, %v2509
        %v2798 = vmul.f32 %v2766, %v2510
        %v2799 = vmul.f32 %v2767, %v2511
        %v2800 = vmul.f32 %v2768, %v2512
        %v2801 = vmul.f32 %v2769, %v2513
        %v2802 = vmul.f32 %v2770, %v2514
        %v2803 = vmul.f32 %v2771, %v2515
        %v2804 = vmul.f32 %v2772, %v2516
        %v2805 = vmul.f32 %v2773, %v2517
        %v2806 = vmul.f32 %v2774, %v2518
        %v2807 = vmul.f32 %v2775, %v2519
        %v2808 = vmul.f32 %v2776, %v2520
        %v2809 = vmul.f32 %v2777, %v2521
        %v2810 = vmul.f32 %v2778, %v2522
        %v2811 = vmul.f32 %v2779, %v2523
        %v2812 = vmul.f32 %v2780, %v2524
        %v2813 = vmul.f32 %v2781, %v2525
        %v2814 = vmul.f32 %v2782, %v2526
        %v2815 = vmul.f32 %v2783, %v2527
        %v2816 = vmul.f32 %v2784, %v2528
        %v2817 = vmul.f32 %v2785, %v2529
        %v2818 = vadd.f32 %v2786, %v2802
        %v2819 = vrot.slane %v2818, 4
        %v2820 = vadd.f32 %v2818, %v2819
        %v2821 = vrot.slane %v2820, 2
        %v2822 = vadd.f32 %v2820, %v2821
        %v2823 = vrot.slane %v2822, 1
        %v2824 = vadd.f32 %v2822, %v2823
        %v2825 = vadd.f32 %v2787, %v2803
        %v2826 = vrot.slane %v2825, 4
        %v2827 = vadd.f32 %v2825, %v2826
        %v2828 = vrot.slane %v2827, 2
        %v2829 = vadd.f32 %v2827, %v2828
        %v2830 = vrot.slane %v2829, 1
        %v2831 = vadd.f32 %v2829, %v2830
        %v2832 = vadd.f32 %v2788, %v2804
        %v2833 = vrot.slane %v2832, 4
        %v2834 = vadd.f32 %v2832, %v2833
        %v2835 = vrot.slane %v2834, 2
        %v2836 = vadd.f32 %v2834, %v2835
        %v2837 = vrot.slane %v2836, 1
        %v2838 = vadd.f32 %v2836, %v2837
        %v2839 = vadd.f32 %v2789, %v2805
        %v2840 = vrot.slane %v2839, 4
        %v2841 = vadd.f32 %v2839, %v2840
        %v2842 = vrot.slane %v2841, 2
        %v2843 = vadd.f32 %v2841, %v2842
        %v2844 = vrot.slane %v2843, 1
        %v2845 = vadd.f32 %v2843, %v2844
        %v2846 = vadd.f32 %v2790, %v2806
        %v2847 = vrot.slane %v2846, 4
        %v2848 = vadd.f32 %v2846, %v2847
        %v2849 = vrot.slane %v2848, 2
        %v2850 = vadd.f32 %v2848, %v2849
        %v2851 = vrot.slane %v2850, 1
        %v2852 = vadd.f32 %v2850, %v2851
        %v2853 = vadd.f32 %v2791, %v2807
        %v2854 = vrot.slane %v2853, 4
        %v2855 = vadd.f32 %v2853, %v2854
        %v2856 = vrot.slane %v2855, 2
        %v2857 = vadd.f32 %v2855, %v2856
        %v2858 = vrot.slane %v2857, 1
        %v2859 = vadd.f32 %v2857, %v2858
        %v2860 = vadd.f32 %v2792, %v2808
        %v2861 = vrot.slane %v2860, 4
        %v2862 = vadd.f32 %v2860, %v2861
        %v2863 = vrot.slane %v2862, 2
        %v2864 = vadd.f32 %v2862, %v2863
        %v2865 = vrot.slane %v2864, 1
        %v2866 = vadd.f32 %v2864, %v2865
        %v2867 = vadd.f32 %v2793, %v2809
        %v2868 = vrot.slane %v2867, 4
        %v2869 = vadd.f32 %v2867, %v2868
        %v2870 = vrot.slane %v2869, 2
        %v2871 = vadd.f32 %v2869, %v2870
        %v2872 = vrot.slane %v2871, 1
        %v2873 = vadd.f32 %v2871, %v2872
        %v2874 = vadd.f32 %v2794, %v2810
        %v2875 = vrot.slane %v2874, 4
        %v2876 = vadd.f32 %v2874, %v2875
        %v2877 = vrot.slane %v2876, 2
        %v2878 = vadd.f32 %v2876, %v2877
        %v2879 = vrot.slane %v2878, 1
        %v2880 = vadd.f32 %v2878, %v2879
        %v2881 = vadd.f32 %v2795, %v2811
        %v2882 = vrot.slane %v2881, 4
        %v2883 = vadd.f32 %v2881, %v2882
        %v2884 = vrot.slane %v2883, 2
        %v2885 = vadd.f32 %v2883, %v2884
        %v2886 = vrot.slane %v2885, 1
        %v2887 = vadd.f32 %v2885, %v2886
        %v2888 = vadd.f32 %v2796, %v2812
        %v2889 = vrot.slane %v2888, 4
        %v2890 = vadd.f32 %v2888, %v2889
        %v2891 = vrot.slane %v2890, 2
        %v2892 = vadd.f32 %v2890, %v2891
        %v2893 = vrot.slane %v2892, 1
        %v2894 = vadd.f32 %v2892, %v2893
        %v2895 = vadd.f32 %v2797, %v2813
        %v2896 = vrot.slane %v2895, 4
        %v2897 = vadd.f32 %v2895, %v2896
        %v2898 = vrot.slane %v2897, 2
        %v2899 = vadd.f32 %v2897, %v2898
        %v2900 = vrot.slane %v2899, 1
        %v2901 = vadd.f32 %v2899, %v2900
        %v2902 = vadd.f32 %v2798, %v2814
        %v2903 = vrot.slane %v2902, 4
        %v2904 = vadd.f32 %v2902, %v2903
        %v2905 = vrot.slane %v2904, 2
        %v2906 = vadd.f32 %v2904, %v2905
        %v2907 = vrot.slane %v2906, 1
        %v2908 = vadd.f32 %v2906, %v2907
        %v2909 = vadd.f32 %v2799, %v2815
        %v2910 = vrot.slane %v2909, 4
        %v2911 = vadd.f32 %v2909, %v2910
        %v2912 = vrot.slane %v2911, 2
        %v2913 = vadd.f32 %v2911, %v2912
        %v2914 = vrot.slane %v2913, 1
        %v2915 = vadd.f32 %v2913, %v2914
        %v2916 = vadd.f32 %v2800, %v2816
        %v2917 = vrot.slane %v2916, 4
        %v2918 = vadd.f32 %v2916, %v2917
        %v2919 = vrot.slane %v2918, 2
        %v2920 = vadd.f32 %v2918, %v2919
        %v2921 = vrot.slane %v2920, 1
        %v2922 = vadd.f32 %v2920, %v2921
        %v2923 = vadd.f32 %v2801, %v2817
        %v2924 = vrot.slane %v2923, 4
        %v2925 = vadd.f32 %v2923, %v2924
        %v2926 = vrot.slane %v2925, 2
        %v2927 = vadd.f32 %v2925, %v2926
        %v2928 = vrot.slane %v2927, 1
        %v2929 = vadd.f32 %v2927, %v2928
        %v2930 = vadd.f32 %v2194, %v2824
        %v2931 = vadd.f32 %v2195, %v2831
        %v2932 = vadd.f32 %v2196, %v2838
        %v2933 = vadd.f32 %v2197, %v2845
        %v2934 = vadd.f32 %v2198, %v2852
        %v2935 = vadd.f32 %v2199, %v2859
        %v2936 = vadd.f32 %v2200, %v2866
        %v2937 = vadd.f32 %v2201, %v2873
        %v2938 = vadd.f32 %v2202, %v2880
        %v2939 = vadd.f32 %v2203, %v2887
        %v2940 = vadd.f32 %v2204, %v2894
        %v2941 = vadd.f32 %v2205, %v2901
        %v2942 = vadd.f32 %v2206, %v2908
        %v2943 = vadd.f32 %v2207, %v2915
        %v2944 = vadd.f32 %v2208, %v2922
        %v2945 = vadd.f32 %v2209, %v2929
        %v2946 = vld [vmem:[%s737 + $0x180] sm:$0xff]
        %v2947 = vld [vmem:[%s737 + $0x188] sm:$0xff]
        %v2948 = vld [vmem:[%s737 + $0x190] sm:$0xff]
        %v2949 = vld [vmem:[%s737 + $0x198] sm:$0xff]
        %v2950 = vld [vmem:[%s737 + $0x1a0] sm:$0xff]
        %v2951 = vld [vmem:[%s737 + $0x1a8] sm:$0xff]
        %v2952 = vld [vmem:[%s737 + $0x1b0] sm:$0xff]
        %v2953 = vld [vmem:[%s737 + $0x1b8] sm:$0xff]
        %v2954 = vld [vmem:[%s737 + $0x1c0] sm:$0xff]
        %v2955 = vld [vmem:[%s737 + $0x1c8] sm:$0xff]
        %v2956 = vld [vmem:[%s737 + $0x1d0] sm:$0xff]
        %v2957 = vld [vmem:[%s737 + $0x1d8] sm:$0xff]
        %v2958 = vld [vmem:[%s737 + $0x1e0] sm:$0xff]
        %v2959 = vld [vmem:[%s737 + $0x1e8] sm:$0xff]
        %v2960 = vld [vmem:[%s737 + $0x1f0] sm:$0xff]
        %v2961 = vld [vmem:[%s737 + $0x1f8] sm:$0xff]
        %v2962 = vunpack.c.l.bf16 %v2946
        %v2963 = vunpack.c.h.bf16 %v2946
        %v2964 = vunpack.c.l.bf16 %v2947
        %v2965 = vunpack.c.h.bf16 %v2947
        %v2966 = vunpack.c.l.bf16 %v2948
        %v2967 = vunpack.c.h.bf16 %v2948
        %v2968 = vunpack.c.l.bf16 %v2949
        %v2969 = vunpack.c.h.bf16 %v2949
        %v2970 = vunpack.c.l.bf16 %v2950
        %v2971 = vunpack.c.h.bf16 %v2950
        %v2972 = vunpack.c.l.bf16 %v2951
        %v2973 = vunpack.c.h.bf16 %v2951
        %v2974 = vunpack.c.l.bf16 %v2952
        %v2975 = vunpack.c.h.bf16 %v2952
        %v2976 = vunpack.c.l.bf16 %v2953
        %v2977 = vunpack.c.h.bf16 %v2953
        %v2978 = vunpack.c.l.bf16 %v2954
        %v2979 = vunpack.c.h.bf16 %v2954
        %v2980 = vunpack.c.l.bf16 %v2955
        %v2981 = vunpack.c.h.bf16 %v2955
        %v2982 = vunpack.c.l.bf16 %v2956
        %v2983 = vunpack.c.h.bf16 %v2956
        %v2984 = vunpack.c.l.bf16 %v2957
        %v2985 = vunpack.c.h.bf16 %v2957
        %v2986 = vunpack.c.l.bf16 %v2958
        %v2987 = vunpack.c.h.bf16 %v2958
        %v2988 = vunpack.c.l.bf16 %v2959
        %v2989 = vunpack.c.h.bf16 %v2959
        %v2990 = vunpack.c.l.bf16 %v2960
        %v2991 = vunpack.c.h.bf16 %v2960
        %v2992 = vunpack.c.l.bf16 %v2961
        %v2993 = vunpack.c.h.bf16 %v2961
        %v2994 = vmul.f32 %v2962, %v2498
        %v2995 = vmul.f32 %v2963, %v2499
        %v2996 = vmul.f32 %v2964, %v2500
        %v2997 = vmul.f32 %v2965, %v2501
        %v2998 = vmul.f32 %v2966, %v2502
        %v2999 = vmul.f32 %v2967, %v2503
        %v3000 = vmul.f32 %v2968, %v2504
        %v3001 = vmul.f32 %v2969, %v2505
        %v3002 = vmul.f32 %v2970, %v2506
        %v3003 = vmul.f32 %v2971, %v2507
        %v3004 = vmul.f32 %v2972, %v2508
        %v3005 = vmul.f32 %v2973, %v2509
        %v3006 = vmul.f32 %v2974, %v2510
        %v3007 = vmul.f32 %v2975, %v2511
        %v3008 = vmul.f32 %v2976, %v2512
        %v3009 = vmul.f32 %v2977, %v2513
        %v3010 = vmul.f32 %v2978, %v2514
        %v3011 = vmul.f32 %v2979, %v2515
        %v3012 = vmul.f32 %v2980, %v2516
        %v3013 = vmul.f32 %v2981, %v2517
        %v3014 = vmul.f32 %v2982, %v2518
        %v3015 = vmul.f32 %v2983, %v2519
        %v3016 = vmul.f32 %v2984, %v2520
        %v3017 = vmul.f32 %v2985, %v2521
        %v3018 = vmul.f32 %v2986, %v2522
        %v3019 = vmul.f32 %v2987, %v2523
        %v3020 = vmul.f32 %v2988, %v2524
        %v3021 = vmul.f32 %v2989, %v2525
        %v3022 = vmul.f32 %v2990, %v2526
        %v3023 = vmul.f32 %v2991, %v2527
        %v3024 = vmul.f32 %v2992, %v2528
        %v3025 = vmul.f32 %v2993, %v2529
        %v3026 = vadd.f32 %v2994, %v3010
        %v3027 = vrot.slane %v3026, 4
        %v3028 = vadd.f32 %v3026, %v3027
        %v3029 = vrot.slane %v3028, 2
        %v3030 = vadd.f32 %v3028, %v3029
        %v3031 = vrot.slane %v3030, 1
        %v3032 = vadd.f32 %v3030, %v3031
        %v3033 = vadd.f32 %v2995, %v3011
        %v3034 = vrot.slane %v3033, 4
        %v3035 = vadd.f32 %v3033, %v3034
        %v3036 = vrot.slane %v3035, 2
        %v3037 = vadd.f32 %v3035, %v3036
        %v3038 = vrot.slane %v3037, 1
        %v3039 = vadd.f32 %v3037, %v3038
        %v3040 = vadd.f32 %v2996, %v3012
        %v3041 = vrot.slane %v3040, 4
        %v3042 = vadd.f32 %v3040, %v3041
        %v3043 = vrot.slane %v3042, 2
        %v3044 = vadd.f32 %v3042, %v3043
        %v3045 = vrot.slane %v3044, 1
        %v3046 = vadd.f32 %v3044, %v3045
        %v3047 = vadd.f32 %v2997, %v3013
        %v3048 = vrot.slane %v3047, 4
        %v3049 = vadd.f32 %v3047, %v3048
        %v3050 = vrot.slane %v3049, 2
        %v3051 = vadd.f32 %v3049, %v3050
        %v3052 = vrot.slane %v3051, 1
        %v3053 = vadd.f32 %v3051, %v3052
        %v3054 = vadd.f32 %v2998, %v3014
        %v3055 = vrot.slane %v3054, 4
        %v3056 = vadd.f32 %v3054, %v3055
        %v3057 = vrot.slane %v3056, 2
        %v3058 = vadd.f32 %v3056, %v3057
        %v3059 = vrot.slane %v3058, 1
        %v3060 = vadd.f32 %v3058, %v3059
        %v3061 = vadd.f32 %v2999, %v3015
        %v3062 = vrot.slane %v3061, 4
        %v3063 = vadd.f32 %v3061, %v3062
        %v3064 = vrot.slane %v3063, 2
        %v3065 = vadd.f32 %v3063, %v3064
        %v3066 = vrot.slane %v3065, 1
        %v3067 = vadd.f32 %v3065, %v3066
        %v3068 = vadd.f32 %v3000, %v3016
        %v3069 = vrot.slane %v3068, 4
        %v3070 = vadd.f32 %v3068, %v3069
        %v3071 = vrot.slane %v3070, 2
        %v3072 = vadd.f32 %v3070, %v3071
        %v3073 = vrot.slane %v3072, 1
        %v3074 = vadd.f32 %v3072, %v3073
        %v3075 = vadd.f32 %v3001, %v3017
        %v3076 = vrot.slane %v3075, 4
        %v3077 = vadd.f32 %v3075, %v3076
        %v3078 = vrot.slane %v3077, 2
        %v3079 = vadd.f32 %v3077, %v3078
        %v3080 = vrot.slane %v3079, 1
        %v3081 = vadd.f32 %v3079, %v3080
        %v3082 = vadd.f32 %v3002, %v3018
        %v3083 = vrot.slane %v3082, 4
        %v3084 = vadd.f32 %v3082, %v3083
        %v3085 = vrot.slane %v3084, 2
        %v3086 = vadd.f32 %v3084, %v3085
        %v3087 = vrot.slane %v3086, 1
        %v3088 = vadd.f32 %v3086, %v3087
        %v3089 = vadd.f32 %v3003, %v3019
        %v3090 = vrot.slane %v3089, 4
        %v3091 = vadd.f32 %v3089, %v3090
        %v3092 = vrot.slane %v3091, 2
        %v3093 = vadd.f32 %v3091, %v3092
        %v3094 = vrot.slane %v3093, 1
        %v3095 = vadd.f32 %v3093, %v3094
        %v3096 = vadd.f32 %v3004, %v3020
        %v3097 = vrot.slane %v3096, 4
        %v3098 = vadd.f32 %v3096, %v3097
        %v3099 = vrot.slane %v3098, 2
        %v3100 = vadd.f32 %v3098, %v3099
        %v3101 = vrot.slane %v3100, 1
        %v3102 = vadd.f32 %v3100, %v3101
        %v3103 = vadd.f32 %v3005, %v3021
        %v3104 = vrot.slane %v3103, 4
        %v3105 = vadd.f32 %v3103, %v3104
        %v3106 = vrot.slane %v3105, 2
        %v3107 = vadd.f32 %v3105, %v3106
        %v3108 = vrot.slane %v3107, 1
        %v3109 = vadd.f32 %v3107, %v3108
        %v3110 = vadd.f32 %v3006, %v3022
        %v3111 = vrot.slane %v3110, 4
        %v3112 = vadd.f32 %v3110, %v3111
        %v3113 = vrot.slane %v3112, 2
        %v3114 = vadd.f32 %v3112, %v3113
        %v3115 = vrot.slane %v3114, 1
        %v3116 = vadd.f32 %v3114, %v3115
        %v3117 = vadd.f32 %v3007, %v3023
        %v3118 = vrot.slane %v3117, 4
        %v3119 = vadd.f32 %v3117, %v3118
        %v3120 = vrot.slane %v3119, 2
        %v3121 = vadd.f32 %v3119, %v3120
        %v3122 = vrot.slane %v3121, 1
        %v3123 = vadd.f32 %v3121, %v3122
        %v3124 = vadd.f32 %v3008, %v3024
        %v3125 = vrot.slane %v3124, 4
        %v3126 = vadd.f32 %v3124, %v3125
        %v3127 = vrot.slane %v3126, 2
        %v3128 = vadd.f32 %v3126, %v3127
        %v3129 = vrot.slane %v3128, 1
        %v3130 = vadd.f32 %v3128, %v3129
        %v3131 = vadd.f32 %v3009, %v3025
        %v3132 = vrot.slane %v3131, 4
        %v3133 = vadd.f32 %v3131, %v3132
        %v3134 = vrot.slane %v3133, 2
        %v3135 = vadd.f32 %v3133, %v3134
        %v3136 = vrot.slane %v3135, 1
        %v3137 = vadd.f32 %v3135, %v3136
        %v3138 = vadd.f32 %v2402, %v3032
        %v3139 = vadd.f32 %v2403, %v3039
        %v3140 = vadd.f32 %v2404, %v3046
        %v3141 = vadd.f32 %v2405, %v3053
        %v3142 = vadd.f32 %v2406, %v3060
        %v3143 = vadd.f32 %v2407, %v3067
        %v3144 = vadd.f32 %v2408, %v3074
        %v3145 = vadd.f32 %v2409, %v3081
        %v3146 = vadd.f32 %v2410, %v3088
        %v3147 = vadd.f32 %v2411, %v3095
        %v3148 = vadd.f32 %v2412, %v3102
        %v3149 = vadd.f32 %v2413, %v3109
        %v3150 = vadd.f32 %v2414, %v3116
        %v3151 = vadd.f32 %v2415, %v3123
        %v3152 = vadd.f32 %v2416, %v3130
        %v3153 = vadd.f32 %v2417, %v3137
        %vm3154 = vcmask 1040384
        %v3155 = vsel %vm3154, %v2722, %v2930
        %v3156 = vsel %vm3154, %v2723, %v2931
        %v3157 = vsel %vm3154, %v2724, %v2932
        %v3158 = vsel %vm3154, %v2725, %v2933
        %v3159 = vsel %vm3154, %v2726, %v2934
        %v3160 = vsel %vm3154, %v2727, %v2935
        %v3161 = vsel %vm3154, %v2728, %v2936
        %v3162 = vsel %vm3154, %v2729, %v2937
        %v3163 = vsel %vm3154, %v2730, %v2938
        %v3164 = vsel %vm3154, %v2731, %v2939
        %v3165 = vsel %vm3154, %v2732, %v2940
        %v3166 = vsel %vm3154, %v2733, %v2941
        %v3167 = vsel %vm3154, %v2734, %v2942
        %v3168 = vsel %vm3154, %v2735, %v2943
        %v3169 = vsel %vm3154, %v2736, %v2944
        %v3170 = vsel %vm3154, %v2737, %v2945
        %vm3171 = vcmask 1041408
        %v3172 = vsel %vm3171, %v3155, %v3138
        %v3173 = vsel %vm3171, %v3156, %v3139
        %v3174 = vsel %vm3171, %v3157, %v3140
        %v3175 = vsel %vm3171, %v3158, %v3141
        %v3176 = vsel %vm3171, %v3159, %v3142
        %v3177 = vsel %vm3171, %v3160, %v3143
        %v3178 = vsel %vm3171, %v3161, %v3144
        %v3179 = vsel %vm3171, %v3162, %v3145
        %v3180 = vsel %vm3171, %v3163, %v3146
        %v3181 = vsel %vm3171, %v3164, %v3147
        %v3182 = vsel %vm3171, %v3165, %v3148
        %v3183 = vsel %vm3171, %v3166, %v3149
        %v3184 = vsel %vm3171, %v3167, %v3150
        %v3185 = vsel %vm3171, %v3168, %v3151
        %v3186 = vsel %vm3171, %v3169, %v3152
        %v3187 = vsel %vm3171, %v3170, %v3153
        %v3190 = vlaneseq
        %v3191 = vshrl.u32 %v3190, 7
        %v3192 = vsub.s32 0, %v3191
        %v3193 = vrot.slane %v205, %v3192
        %v3194 = vlaneseq
        %v3195 = vshrl.u32 %v3194, 7
        %v3196 = vsub.s32 1, %v3195
        %v3197 = vrot.slane %v205, %v3196
        %v3198 = vlaneseq
        %v3199 = vshrl.u32 %v3198, 7
        %v3200 = vsub.s32 2, %v3199
        %v3201 = vrot.slane %v205, %v3200
        %v3202 = vlaneseq
        %v3203 = vshrl.u32 %v3202, 7
        %v3204 = vsub.s32 3, %v3203
        %v3205 = vrot.slane %v205, %v3204
        %v3206 = vlaneseq
        %v3207 = vshrl.u32 %v3206, 7
        %v3208 = vsub.s32 4, %v3207
        %v3209 = vrot.slane %v205, %v3208
        %v3210 = vlaneseq
        %v3211 = vshrl.u32 %v3210, 7
        %v3212 = vsub.s32 5, %v3211
        %v3213 = vrot.slane %v205, %v3212
        %v3214 = vlaneseq
        %v3215 = vshrl.u32 %v3214, 7
        %v3216 = vsub.s32 6, %v3215
        %v3217 = vrot.slane %v205, %v3216
        %v3218 = vlaneseq
        %v3219 = vshrl.u32 %v3218, 7
        %v3220 = vsub.s32 7, %v3219
        %v3221 = vrot.slane %v205, %v3220
        %v3222 = vlaneseq
        %v3223 = vshrl.u32 %v3222, 7
        %v3224 = vsub.s32 0, %v3223
        %v3225 = vrot.slane %v206, %v3224
        %v3226 = vlaneseq
        %v3227 = vshrl.u32 %v3226, 7
        %v3228 = vsub.s32 1, %v3227
        %v3229 = vrot.slane %v206, %v3228
        %v3230 = vlaneseq
        %v3231 = vshrl.u32 %v3230, 7
        %v3232 = vsub.s32 2, %v3231
        %v3233 = vrot.slane %v206, %v3232
        %v3234 = vlaneseq
        %v3235 = vshrl.u32 %v3234, 7
        %v3236 = vsub.s32 3, %v3235
        %v3237 = vrot.slane %v206, %v3236
        %v3238 = vlaneseq
        %v3239 = vshrl.u32 %v3238, 7
        %v3240 = vsub.s32 4, %v3239
        %v3241 = vrot.slane %v206, %v3240
        %v3242 = vlaneseq
        %v3243 = vshrl.u32 %v3242, 7
        %v3244 = vsub.s32 5, %v3243
        %v3245 = vrot.slane %v206, %v3244
        %v3246 = vlaneseq
        %v3247 = vshrl.u32 %v3246, 7
        %v3248 = vsub.s32 6, %v3247
        %v3249 = vrot.slane %v206, %v3248
        %v3250 = vlaneseq
        %v3251 = vshrl.u32 %v3250, 7
        %v3252 = vsub.s32 7, %v3251
        %v3253 = vrot.slane %v206, %v3252
        %v3270 = vmul.f32 %v3172, %v3193
        %v3271 = vmul.f32 %v3173, %v3197
        %v3272 = vmul.f32 %v3174, %v3201
        %v3273 = vmul.f32 %v3175, %v3205
        %v3274 = vmul.f32 %v3176, %v3209
        %v3275 = vmul.f32 %v3177, %v3213
        %v3276 = vmul.f32 %v3178, %v3217
        %v3277 = vmul.f32 %v3179, %v3221
        %v3278 = vmul.f32 %v3180, %v3225
        %v3279 = vmul.f32 %v3181, %v3229
        %v3280 = vmul.f32 %v3182, %v3233
        %v3281 = vmul.f32 %v3183, %v3237
        %v3282 = vmul.f32 %v3184, %v3241
        %v3283 = vmul.f32 %v3185, %v3245
        %v3284 = vmul.f32 %v3186, %v3249
        %v3285 = vmul.f32 %v3187, %v3253
        %v3302 = vcombine.low %v3270, %v3271
        %v3303 = vcombine.low %v3272, %v3273
        %v3304 = vcombine.low %v3274, %v3275
        %v3305 = vcombine.low %v3276, %v3277
        %v3306 = vcombine.low %v3278, %v3279
        %v3307 = vcombine.low %v3280, %v3281
        %v3308 = vcombine.low %v3282, %v3283
        %v3309 = vcombine.low %v3284, %v3285
        %3318 = vst [vmem:[%s199] sm:$0x77] %v3302
        %3319 = vst [vmem:[%s199 + $0x8] sm:$0x77] %v3303
        %3320 = vst [vmem:[%s199 + $0x10] sm:$0x77] %v3304
        %3321 = vst [vmem:[%s199 + $0x18] sm:$0x77] %v3305
        %3322 = vst [vmem:[%s199 + $0x20] sm:$0x77] %v3306
        %3323 = vst [vmem:[%s199 + $0x28] sm:$0x77] %v3307
        %3324 = vst [vmem:[%s199 + $0x30] sm:$0x77] %v3308
        %3325 = vst [vmem:[%s199 + $0x38] sm:$0x77] %v3309
        %s3326 = sand.u32 %s82, 1
        %s3327 = scalar_lea.sflag [#allocation4], %s3326
        %s3328 = sand.u32 %s82, 1
        %s3329 = smul.addr %s3328, 64
        %s3330 = scalar_lea.vmem [#allocation7], %s3329
        // Predicated region
        $region37: #{tpu_custom_call.1} parent=27 // pred_check
          %p3331 = pneg %p92
        $region38: #{tpu_custom_call.1} parent=27 // pred_check_branch
          %3333 = sbr.rel (%p3331) target = $region40
        $region39: #{tpu_custom_call.1} parent=27 // pred_region
          %s3334 = smul.u32 16, %s22
          %s3336 = ssub.s32 1024, 1024
          %3337 = vsyncadd %s3327, %s3336
          %s3338 = smul.addr %s3334, 64
          %s3339 = scalar_lea.hbm %s2, %s3338
          %s3341 = sshll.u32 %s3330, 4
          %s3342 = int_to_ptr.vmem [resolvable:$true] %s3341
          %3344 = dma.vmem_to_hbm [thread:$0]  %s3342, 1024, %s3339, %s3327
        $region40: #{tpu_custom_call.1} parent=27 // pred_fallthru
          _
      $region28: #{tpu_custom_call.1} parent=5 // pred_fallthru
        _
      %p3345 = scmp.le.s32.totalorder 2, %s17
      // Predicated region
      $region41: #{tpu_custom_call.1} parent=5 // pred_check
        %p3346 = pneg %p3345
      $region42: #{tpu_custom_call.1} parent=5 // pred_check_branch
        %3348 = sbr.rel (%p3346) target = $region44
      $region43: #{tpu_custom_call.1} parent=5 // pred_region
        %s3349 = ssub.s32 %s17, 2
        // Predicated region
        $region45: #{tpu_custom_call.1} parent=43 // pred_check
          %p3350 = pneg %p98
        $region46: #{tpu_custom_call.1} parent=43 // pred_check_branch
          %3352 = sbr.rel (%p3350) target = $region48
        $region47: #{tpu_custom_call.1} parent=43 // pred_region
          %s3353 = sand.u32 %s83, 1
          %s3354 = scalar_lea.sflag [#allocation4], %s3353
          %s3355 = sand.u32 %s83, 1
          %s3356 = smul.addr %s3355, 64
          %s3357 = scalar_lea.vmem [#allocation7], %s3356
          %3358 = dma.done %s3354, 1024
        $region48: #{tpu_custom_call.1} parent=43 // pred_fallthru
          _
      $region44: #{tpu_custom_call.1} parent=5 // pred_fallthru
        _
    $region6: #{tpu_custom_call.1} parent=1 // loop_footer
      %s21 = sadd.s32 1, %s17
    $region7: #{tpu_custom_call.1} parent=1 // loop_footer_branch
      %16 = sbr.rel target = $region3
    $region8: #{tpu_custom_call.1} parent=1 // loop_exit
      _
    %3359 = vsyncpa [#allocation3], 1
    %s3360 = scalar_lea.sflag [#allocation3], 1
    %3361 = vsyncpa %s3360, 1
    %3362 = vsyncpa [#allocation6], 1
    %s3363 = scalar_lea.sflag [#allocation6], 1
    %3364 = vsyncpa %s3363, 1
    %3365 = vsyncpa [#allocation4], 1
    %s3366 = scalar_lea.sflag [#allocation4], 1
    %3367 = vsyncpa %s3366, 1

</llo_original>
